<compile_context>
chip_gen: v7x
topology: tpu7x:2x2x1
jax: 0.10.0
libtpu: 0.0.40
codegen_flags: <defaults>
</compile_context>

<pallas_src>
import jax
import jax.numpy as jnp
from jax import lax
from jax.experimental import pallas as pl
from jax.experimental.pallas import tpu as pltpu

_BN_EPS = 1e-5


# ----------------------------- fused kernel --------------------------------

def _make_fused_kernel(layer_meta, mask_row, H, W, B, max_off, pad_rows, mask_cin):
    """layer_meta: tuple of (ks, dil, cin, cout, has_bn) per fused stage."""
    HW = H * W
    L_pad = HW + 2 * max_off

    def kernel(*refs):
        x_ref, xm_ref = refs[0], refs[1]
        o_ref = refs[-3]
        pad_scr = refs[-2]      # (pad_rows, B*L_pad) f32 flat zero-halo buffer
        col_scr = refs[-1]      # (col_rows, B*HW) bf16 im2col staging

        # Zero only the per-image halo borders; interiors are fully overwritten
        # by every 3x3 layer before being read.  Per-step so it is safe under
        # megacore sharding of the parallel grid axis.
        zb = jnp.zeros((pad_rows, max_off), jnp.float32)
        for b in range(B):
            base = b * L_pad
            pad_scr[:, base:base + max_off] = zb
            pad_scr[:, base + max_off + HW:base + L_pad] = zb

        # Hoisted column-validity masks: load + broadcast once, reuse for all
        # layers and taps (JAX does not CSE broadcast_in_dim).
        masks = {dx: jnp.broadcast_to(xm_ref[r:r + 1, :], (mask_cin, HW))
                 for dx, r in mask_row.items()}

        cur = x_ref[...]                                   # (Cin0, B*HW) f32
        pi = 0
        for (ks, dil, cin, cout, has_bn) in layer_meta:
            if has_bn:
                sc = refs[2 + pi][...]                     # (cin, 1) f32
                sh = refs[2 + pi + 1][...]                 # (cin, 1) f32
                pi += 2
                a = jnp.maximum(cur * sc + sh, 0.0)        # BN affine + ReLU
            else:
                # Dropout (eval identity, or BN folded into previous conv) + ReLU
                a = jnp.maximum(cur, 0.0)
            w_ref = refs[2 + pi]                           # (cout, ks*ks*cin) bf16
            b_ref = refs[2 + pi + 1]                       # (cout, 1) f32
            pi += 2

            if ks == 1:
                out = jnp.dot(w_ref[...], a.astype(jnp.bfloat16),
                              preferred_element_type=jnp.float32)
            else:
                # Stage activation into each image's zero-halo interior.
                for b in range(B):
                    base = b * L_pad + max_off
                    pad_scr[0:cin, base:base + HW] = a[:, b * HW:(b + 1) * HW]
                # Pack all taps (masked + cast to bf16) into the im2col scratch
                # -> single wide MXU matmul over B*HW lanes.
                t = 0
                for ky in range(ks):
                    for kx in range(ks):
                        dy = (ky - ks // 2) * dil
                        dx = (kx - ks // 2) * dil
                        off = dy * W + dx
                        for b in range(B):
                            start = b * L_pad + max_off + off
                            patch = pad_scr[0:cin, start:start + HW]
                            if dx != 0:
                                patch = patch * masks[dx][0:cin, :]
                            col_scr[t * cin:(t + 1) * cin, b * HW:(b + 1) * HW] = (
                                patch.astype(jnp.bfloat16))
                        t += 1
                col = col_scr[0:ks * ks * cin, :]
                out = jnp.dot(w_ref[...], col,
                              preferred_element_type=jnp.float32)
            cur = out + b_ref[...]                         # conv bias, (cout, B*HW)

        o_ref[...] = cur                                   # lane-dense wide store

    return kernel


# ----------------------------- forward wrapper ------------------------------

def deepcon_forward(layers, x_nchw, *, imgs_per_step=None):
    """x_nchw: (N, n_channels, H, W) f32 -> (N, bins, H, W) f32 (NCHW)."""
    N, C0, H, W = x_nchw.shape
    HW = H * W

    if imgs_per_step is None:
        # Keep >=2 parallel grid steps when possible (v7x has 2 TensorCores),
        # otherwise fuse the whole batch into one step.
        imgs_per_step = N // 2 if (N % 2 == 0 and N >= 2) else 1
    B = imgs_per_step
    assert N % B == 0
    n_steps = N // B

    # Lane-dense layout: (C, N*HW) with (image, pixel) flattened on lanes.
    x = jnp.transpose(x_nchw, (1, 0, 2, 3)).reshape(C0, N * HW).astype(jnp.float32)

    conv3 = [l for l in layers if l["ks"] == 3]
    max_off = max(l["dil"] * (W + 1) for l in conv3)
    pad_rows = max(l["cin"] for l in conv3)
    col_rows = max(l["ks"] * l["ks"] * l["cin"] for l in conv3)
    mask_cin = pad_rows
    L_pad = HW + 2 * max_off

    # Precomputed 0/1 column-validity masks per horizontal tap offset dx
    # (kill the row-wrap of the flat-buffer shift at image edges).
    dils = sorted({l["dil"] for l in conv3})
    cols = jnp.arange(HW, dtype=jnp.int32) % W
    mask_row = {}
    mask_list = []
    for d in dils:
        for dx in (-d, d):
            mask_row[dx] = len(mask_list)
            valid = ((cols + dx) >= 0) & ((cols + dx) < W)
            mask_list.append(valid.astype(jnp.float32))
    xmasks = jnp.stack(mask_list, axis=0)                  # (n_masks, HW)

    layer_meta = tuple((l["ks"], l["dil"], l["cin"], l["cout"], l["has_bn"])
                       for l in layers)
    kernel = _make_fused_kernel(layer_meta, mask_row, H, W, B, max_off,
                                pad_rows, mask_cin)

    inputs = [x, xmasks]
    in_specs = [
        pl.BlockSpec((C0, B * HW), lambda n: (0, n)),
        pl.BlockSpec(xmasks.shape, lambda n: (0, 0)),
    ]
    for l in layers:
        if l["has_bn"]:
            inputs += [l["scale"], l["shift"]]
            in_specs += [pl.BlockSpec(l["scale"].shape, lambda n: (0, 0)),
                         pl.BlockSpec(l["shift"].shape, lambda n: (0, 0))]
        inputs += [l["w2"], l["b"]]
        in_specs += [pl.BlockSpec(l["w2"].shape, lambda n: (0, 0)),
                     pl.BlockSpec(l["b"].shape, lambda n: (0, 0))]

    bins = layers[-1]["cout"]

    # Explicit VMEM budget: scratch + double-buffered I/O blocks + params.
    scratch_bytes = pad_rows * B * L_pad * 4 + col_rows * B * HW * 2
    io_bytes = 2 * (C0 * B * HW * 4 + bins * B * HW * 4)
    param_bytes = 2 * sum(int(a.size) * a.dtype.itemsize for a in inputs[1:])
    vmem_limit = int(min(max(2 * (scratch_bytes + io_bytes + param_bytes) + (8 << 20),
                             32 << 20), 48 << 20))

    out = pl.pallas_call(
        kernel,
        out_shape=jax.ShapeDtypeStruct((bins, N * HW), jnp.float32),
        grid_spec=pltpu.PrefetchScalarGridSpec(
            num_scalar_prefetch=0,
            grid=(n_steps,),
            in_specs=in_specs,
            out_specs=pl.BlockSpec((bins, B * HW), lambda n: (0, n)),
            scratch_shapes=[
                pltpu.VMEM((pad_rows, B * L_pad), jnp.float32),
                pltpu.VMEM((col_rows, B * HW), jnp.bfloat16),
            ],
        ),
        compiler_params=pltpu.CompilerParams(
            dimension_semantics=("parallel",),
            vmem_limit_bytes=vmem_limit,
        ),
    )(*inputs)

    return out.reshape(bins, N, H, W).transpose(1, 0, 2, 3)


# ----------------------------- parameter setup -----------------------------

def _bn_affine(key, c):
    """Synthetic BN (gamma, beta, running mean/var) folded into scale/shift."""
    k1, k2, k3, k4 = jax.random.split(key, 4)
    gamma = 1.0 + 0.1 * jax.random.normal(k1, (c,), jnp.float32)
    beta = 0.1 * jax.random.normal(k2, (c,), jnp.float32)
    mean = 0.1 * jax.random.normal(k3, (c,), jnp.float32)
    var = jnp.abs(1.0 + 0.1 * jax.random.normal(k4, (c,), jnp.float32))
    scale = gamma / jnp.sqrt(var + _BN_EPS)
    shift = beta - mean * scale
    return scale, shift


def init_raw_params(key, num_blocks, width, bins, n_channels):
    """Full-precision per-stage params: BN?(scale,shift) -> ReLU -> Conv(w,b)."""
    n_stages = 2 + 2 * num_blocks
    keys = iter(jax.random.split(key, 2 * n_stages + 4))

    def conv(ks, cin, cout):
        k1, k2 = jax.random.split(next(keys))
        fan_in = cin * ks * ks
        bound = 1.0 / float(fan_in) ** 0.5
        # NOTE: weights kept as (kh, kw, cin, cout) (HWIO).  Importing PyTorch
        # Conv2d weights (cout, cin, kh, kw) requires w.transpose(2, 3, 1, 0).
        w = jax.random.uniform(k1, (ks, ks, cin, cout), jnp.float32, -bound, bound)
        b = jax.random.uniform(k2, (cout,), jnp.float32, -bound, bound)
        return w, b

    raw = []

    # input_block: BN(n_channels) -> ReLU -> Conv1x1(n_channels -> width)
    sc, sh = _bn_affine(next(keys), n_channels)
    w, b = conv(1, n_channels, width)
    raw.append(dict(ks=1, dil=1, cin=n_channels, cout=width,
                    scale=sc, shift=sh, w=w, b=b))

    # mid_block
    d_rate = 1
    for _ in range(num_blocks):
        sc, sh = _bn_affine(next(keys), width)
        w, b = conv(3, width, width)
        raw.append(dict(ks=3, dil=1, cin=width, cout=width,
                        scale=sc, shift=sh, w=w, b=b))
        w, b = conv(3, width, width)
        raw.append(dict(ks=3, dil=d_rate, cin=width, cout=width,
                        scale=None, shift=None, w=w, b=b))
        d_rate = 2 if d_rate == 1 else (4 if d_rate == 2 else 1)

    # output_block: BN(width) -> ReLU -> Conv3x3(pad=1) -> bins
    sc, sh = _bn_affine(next(keys), width)
    w, b = conv(3, width, bins)
    raw.append(dict(ks=3, dil=1, cin=width, cout=bins,
                    scale=sc, shift=sh, w=w, b=b))
    return raw


def prepare_kernel_layers(raw_layers):
    """Fold each FOLLOWING-stage BN affine into the preceding conv (f32, exact),
    then pack weights as (cout, ks*ks*cin) bf16 tap-major MXU operands."""
    n = len(raw_layers)
    ws = [l["w"] for l in raw_layers]
    bs = [l["b"] for l in raw_layers]
    keep = [l["scale"] is not None for l in raw_layers]
    for k in range(n - 1):
        if raw_layers[k + 1]["scale"] is not None:
            sc = raw_layers[k + 1]["scale"]
            sh = raw_layers[k + 1]["shift"]
            ws[k] = ws[k] * sc[None, None, None, :]        # per-output-channel
            bs[k] = sc * bs[k] + sh
            keep[k + 1] = False                            # BN now folded away

    layers = []
    for k, l in enumerate(raw_layers):
        ks, cin, cout = l["ks"], l["cin"], l["cout"]
        # Tap-major (ky,kx,ci) flattening -> (cout, ks*ks*cin), bf16 MXU operand.
        w2 = ws[k].reshape(ks * ks * cin, cout).T.astype(jnp.bfloat16)
        entry = dict(ks=ks, dil=l["dil"], cin=cin, cout=cout, has_bn=keep[k],
                     w2=w2, b=bs[k].reshape(cout, 1).astype(jnp.float32))
        if keep[k]:
            entry["scale"] = l["scale"].reshape(cin, 1).astype(jnp.float32)
            entry["shift"] = l["shift"].reshape(cin, 1).astype(jnp.float32)
        layers.append(entry)
    return layers


# ----------------------------- pure-JAX reference ---------------------------

def deepcon_reference(raw_layers, x_nchw):
    x = x_nchw.astype(jnp.float32)
    for l in raw_layers:
        if l["scale"] is not None:
            x = x * l["scale"].reshape(1, -1, 1, 1) + l["shift"].reshape(1, -1, 1, 1)
        x = jnp.maximum(x, 0.0)
        d = l["dil"]
        pad = (l["ks"] // 2) * d
        x = lax.conv_general_dilated(
            x, l["w"], window_strides=(1, 1),
            padding=((pad, pad), (pad, pad)),
            rhs_dilation=(d, d),
            dimension_numbers=("NCHW", "HWIO", "NCHW"),
            precision=lax.Precision.HIGHEST)
        x = x + l["b"].reshape(1, -1, 1, 1)
    return x


if __name__ == "__main__":
    # Small configuration consistent with DeepConRDDBinned(L, num_blocks, width, bins, n_channels)
    L = 16
    num_blocks = 2      # dilation schedule used: block0 -> 1, block1 -> 2
    width = 8
    bins = 6
    n_channels = 4
    N = 4               # 2 parallel grid steps x 2 images/step (wide lane dim)

    key = jax.random.PRNGKey(0)
    kx_, kp_ = jax.random.split(key)
    x = jax.random.normal(kx_, (N, n_channels, L, L), jnp.float32)

    raw = init_raw_params(kp_, num_blocks, width, bins, n_channels)
    layers = prepare_kernel_layers(raw)

    y = deepcon_forward(layers, x)
    y = jax.block_until_ready(y)

    assert y.shape == (N, bins, L, L), y.shape
    assert bool(jnp.all(jnp.isfinite(y)))

    # Correctness vs. f32 reference (tolerance accounts for bf16 MXU operands).
    y_ref = deepcon_reference(raw, x)
    err = float(jnp.max(jnp.abs(y - y_ref)))
    scale = float(jnp.max(jnp.abs(y_ref)))
    assert err <= 3e-2 * max(1.0, scale), (err, scale)

    print("KERNEL_OK")
</pallas_src>

<mosaic_0001>
module attributes {stable_mosaic.version = 11 : i64} {
  func.func @kernel(%arg0: i32, %arg1: memref<4x512xf32, #tpu.memory_space<vmem>>, %arg2: memref<4x256xf32, #tpu.memory_space<vmem>>, %arg3: memref<4x1xf32, #tpu.memory_space<vmem>>, %arg4: memref<4x1xf32, #tpu.memory_space<vmem>>, %arg5: memref<8x4xbf16, #tpu.memory_space<vmem>>, %arg6: memref<8x1xf32, #tpu.memory_space<vmem>>, %arg7: memref<8x72xbf16, #tpu.memory_space<vmem>>, %arg8: memref<8x1xf32, #tpu.memory_space<vmem>>, %arg9: memref<8x72xbf16, #tpu.memory_space<vmem>>, %arg10: memref<8x1xf32, #tpu.memory_space<vmem>>, %arg11: memref<8x72xbf16, #tpu.memory_space<vmem>>, %arg12: memref<8x1xf32, #tpu.memory_space<vmem>>, %arg13: memref<8x72xbf16, #tpu.memory_space<vmem>>, %arg14: memref<8x1xf32, #tpu.memory_space<vmem>>, %arg15: memref<6x72xbf16, #tpu.memory_space<vmem>>, %arg16: memref<6x1xf32, #tpu.memory_space<vmem>>, %arg17: memref<6x512xf32, #tpu.memory_space<vmem>>, %arg18: memref<8x648xf32, #tpu.memory_space<vmem>>, %arg19: memref<72x512xbf16, #tpu.memory_space<vmem>>) attributes {dimension_semantics = [#tpu.dimension_semantics<parallel>], iteration_bounds = array<i64: 2>, scalar_prefetch = 0 : i64, scratch_operands = 2 : i64, tpu.core_type = #tpu.core_type<tc>, window_params = [{transform_indices = @transform_0, window_bounds = array<i64: 4, 512>}, {pipeline_mode = #tpu.pipeline_mode<synchronous>, transform_indices = @transform_1, window_bounds = array<i64: 4, 256>}, {pipeline_mode = #tpu.pipeline_mode<synchronous>, transform_indices = @transform_2, window_bounds = array<i64: 4, 1>}, {pipeline_mode = #tpu.pipeline_mode<synchronous>, transform_indices = @transform_3, window_bounds = array<i64: 4, 1>}, {pipeline_mode = #tpu.pipeline_mode<synchronous>, transform_indices = @transform_4, window_bounds = array<i64: 8, 4>}, {pipeline_mode = #tpu.pipeline_mode<synchronous>, transform_indices = @transform_5, window_bounds = array<i64: 8, 1>}, {pipeline_mode = #tpu.pipeline_mode<synchronous>, transform_indices = @transform_6, window_bounds = array<i64: 8, 72>}, {pipeline_mode = #tpu.pipeline_mode<synchronous>, transform_indices = @transform_7, window_bounds = array<i64: 8, 1>}, {pipeline_mode = #tpu.pipeline_mode<synchronous>, transform_indices = @transform_8, window_bounds = array<i64: 8, 72>}, {pipeline_mode = #tpu.pipeline_mode<synchronous>, transform_indices = @transform_9, window_bounds = array<i64: 8, 1>}, {pipeline_mode = #tpu.pipeline_mode<synchronous>, transform_indices = @transform_10, window_bounds = array<i64: 8, 72>}, {pipeline_mode = #tpu.pipeline_mode<synchronous>, transform_indices = @transform_11, window_bounds = array<i64: 8, 1>}, {pipeline_mode = #tpu.pipeline_mode<synchronous>, transform_indices = @transform_12, window_bounds = array<i64: 8, 72>}, {pipeline_mode = #tpu.pipeline_mode<synchronous>, transform_indices = @transform_13, window_bounds = array<i64: 8, 1>}, {pipeline_mode = #tpu.pipeline_mode<synchronous>, transform_indices = @transform_14, window_bounds = array<i64: 6, 72>}, {pipeline_mode = #tpu.pipeline_mode<synchronous>, transform_indices = @transform_15, window_bounds = array<i64: 6, 1>}, {transform_indices = @transform_16, window_bounds = array<i64: 6, 512>}]} {
    %cst = arith.constant 0.000000e+00 : f32
    %0 = vector.broadcast %cst : f32 to vector<8x34xf32>
    %c0 = arith.constant 0 : index
    %c0_0 = arith.constant 0 : index
    %1 = vector.load %arg18[%c0, %c0_0] : memref<8x648xf32, #tpu.memory_space<vmem>>, vector<8x34xf32>
    tpu.vector_store %arg18[%c0, %c0_0], %0 {strides = array<i32>} : memref<8x648xf32, #tpu.memory_space<vmem>>, vector<8x34xf32>,
    %c0_1 = arith.constant 0 : index
    %c290 = arith.constant 290 : index
    %2 = vector.load %arg18[%c0_1, %c290] : memref<8x648xf32, #tpu.memory_space<vmem>>, vector<8x34xf32>
    tpu.vector_store %arg18[%c0_1, %c290], %0 {strides = array<i32>} : memref<8x648xf32, #tpu.memory_space<vmem>>, vector<8x34xf32>,
    %c0_2 = arith.constant 0 : index
    %c324 = arith.constant 324 : index
    %3 = vector.load %arg18[%c0_2, %c324] : memref<8x648xf32, #tpu.memory_space<vmem>>, vector<8x34xf32>
    tpu.vector_store %arg18[%c0_2, %c324], %0 {strides = array<i32>} : memref<8x648xf32, #tpu.memory_space<vmem>>, vector<8x34xf32>,
    %c0_3 = arith.constant 0 : index
    %c614 = arith.constant 614 : index
    %4 = vector.load %arg18[%c0_3, %c614] : memref<8x648xf32, #tpu.memory_space<vmem>>, vector<8x34xf32>
    tpu.vector_store %arg18[%c0_3, %c614], %0 {strides = array<i32>} : memref<8x648xf32, #tpu.memory_space<vmem>>, vector<8x34xf32>,
    %c0_4 = arith.constant 0 : index
    %c0_5 = arith.constant 0 : index
    %5 = vector.load %arg2[%c0_4, %c0_5] : memref<4x256xf32, #tpu.memory_space<vmem>>, vector<1x256xf32>
    %6 = vector.shape_cast %5 : vector<1x256xf32> to vector<1x256xf32>
    %7 = vector.broadcast %6 : vector<1x256xf32> to vector<8x256xf32>
    %c1 = arith.constant 1 : index
    %c0_6 = arith.constant 0 : index
    %8 = vector.load %arg2[%c1, %c0_6] : memref<4x256xf32, #tpu.memory_space<vmem>>, vector<1x256xf32>
    %9 = vector.shape_cast %8 : vector<1x256xf32> to vector<1x256xf32>
    %10 = vector.broadcast %9 : vector<1x256xf32> to vector<8x256xf32>
    %c2 = arith.constant 2 : index
    %c0_7 = arith.constant 0 : index
    %11 = vector.load %arg2[%c2, %c0_7] : memref<4x256xf32, #tpu.memory_space<vmem>>, vector<1x256xf32>
    %12 = vector.shape_cast %11 : vector<1x256xf32> to vector<1x256xf32>
    %13 = vector.broadcast %12 : vector<1x256xf32> to vector<8x256xf32>
    %c3 = arith.constant 3 : index
    %c0_8 = arith.constant 0 : index
    %14 = vector.load %arg2[%c3, %c0_8] : memref<4x256xf32, #tpu.memory_space<vmem>>, vector<1x256xf32>
    %15 = vector.shape_cast %14 : vector<1x256xf32> to vector<1x256xf32>
    %16 = vector.broadcast %15 : vector<1x256xf32> to vector<8x256xf32>
    %c0_9 = arith.constant 0 : index
    %c0_10 = arith.constant 0 : index
    %17 = vector.load %arg1[%c0_9, %c0_10] : memref<4x512xf32, #tpu.memory_space<vmem>>, vector<4x512xf32>
    %c0_11 = arith.constant 0 : index
    %c0_12 = arith.constant 0 : index
    %18 = vector.load %arg3[%c0_11, %c0_12] : memref<4x1xf32, #tpu.memory_space<vmem>>, vector<4x1xf32>
    %c0_13 = arith.constant 0 : index
    %c0_14 = arith.constant 0 : index
    %19 = vector.load %arg4[%c0_13, %c0_14] : memref<4x1xf32, #tpu.memory_space<vmem>>, vector<4x1xf32>
    %20 = vector.broadcast %18 : vector<4x1xf32> to vector<4x512xf32>
    %21 = arith.mulf %17, %20 : vector<4x512xf32>
    %22 = vector.broadcast %19 : vector<4x1xf32> to vector<4x512xf32>
    %23 = arith.addf %21, %22 : vector<4x512xf32>
    %cst_15 = arith.constant 0.000000e+00 : f32
    %24 = vector.broadcast %cst_15 : f32 to vector<4x512xf32>
    %25 = arith.maximumf %23, %24 : vector<4x512xf32>
    %c0_16 = arith.constant 0 : index
    %c0_17 = arith.constant 0 : index
    %26 = vector.load %arg5[%c0_16, %c0_17] : memref<8x4xbf16, #tpu.memory_space<vmem>>, vector<8x4xbf16>
    %27 = arith.truncf %25 : vector<4x512xf32> to vector<4x512xbf16>
    %cst_18 = arith.constant dense<0.000000e+00> : vector<8x512xf32>
    %28 = tpu.matmul %26, %27, %cst_18 {dimension_numbers = #tpu.dot_dimension_numbers<[1], [0], [0], [1], [0, 0, 1, 1], [], []>} : vector<8x4xbf16>, vector<4x512xbf16>, vector<8x512xf32> -> vector<8x512xf32>
    %c0_19 = arith.constant 0 : index
    %c0_20 = arith.constant 0 : index
    %29 = vector.load %arg6[%c0_19, %c0_20] : memref<8x1xf32, #tpu.memory_space<vmem>>, vector<8x1xf32>
    %30 = vector.broadcast %29 : vector<8x1xf32> to vector<8x512xf32>
    %31 = arith.addf %28, %30 : vector<8x512xf32>
    %cst_21 = arith.constant 0.000000e+00 : f32
    %32 = vector.broadcast %cst_21 : f32 to vector<8x512xf32>
    %33 = arith.maximumf %31, %32 : vector<8x512xf32>
    %34 = vector.extract_strided_slice %33 {offsets = [0, 0], sizes = [8, 256], strides = [1, 1]} : vector<8x512xf32> to vector<8x256xf32>
    %c0_22 = arith.constant 0 : index
    %c34 = arith.constant 34 : index
    %35 = vector.load %arg18[%c0_22, %c34] : memref<8x648xf32, #tpu.memory_space<vmem>>, vector<8x256xf32>
    tpu.vector_store %arg18[%c0_22, %c34], %34 {strides = array<i32>} : memref<8x648xf32, #tpu.memory_space<vmem>>, vector<8x256xf32>,
    %36 = vector.extract_strided_slice %33 {offsets = [0, 256], sizes = [8, 256], strides = [1, 1]} : vector<8x512xf32> to vector<8x256xf32>
    %c0_23 = arith.constant 0 : index
    %c358 = arith.constant 358 : index
    %37 = vector.load %arg18[%c0_23, %c358] : memref<8x648xf32, #tpu.memory_space<vmem>>, vector<8x256xf32>
    tpu.vector_store %arg18[%c0_23, %c358], %36 {strides = array<i32>} : memref<8x648xf32, #tpu.memory_space<vmem>>, vector<8x256xf32>,
    %c0_24 = arith.constant 0 : index
    %c17 = arith.constant 17 : index
    %38 = vector.load %arg18[%c0_24, %c17] : memref<8x648xf32, #tpu.memory_space<vmem>>, vector<8x256xf32>
    %39 = arith.mulf %38, %7 : vector<8x256xf32>
    %40 = arith.truncf %39 : vector<8x256xf32> to vector<8x256xbf16>
    %c0_25 = arith.constant 0 : index
    %c0_26 = arith.constant 0 : index
    %41 = vector.load %arg19[%c0_25, %c0_26] : memref<72x512xbf16, #tpu.memory_space<vmem>>, vector<8x256xbf16>
    tpu.vector_store %arg19[%c0_25, %c0_26], %40 {strides = array<i32>} : memref<72x512xbf16, #tpu.memory_space<vmem>>, vector<8x256xbf16>,
    %c0_27 = arith.constant 0 : index
    %c341 = arith.constant 341 : index
    %42 = vector.load %arg18[%c0_27, %c341] : memref<8x648xf32, #tpu.memory_space<vmem>>, vector<8x256xf32>
    %43 = arith.mulf %42, %7 : vector<8x256xf32>
    %44 = arith.truncf %43 : vector<8x256xf32> to vector<8x256xbf16>
    %c0_28 = arith.constant 0 : index
    %c256 = arith.constant 256 : index
    %45 = vector.load %arg19[%c0_28, %c256] : memref<72x512xbf16, #tpu.memory_space<vmem>>, vector<8x256xbf16>
    tpu.vector_store %arg19[%c0_28, %c256], %44 {strides = array<i32>} : memref<72x512xbf16, #tpu.memory_space<vmem>>, vector<8x256xbf16>,
    %c0_29 = arith.constant 0 : index
    %c18 = arith.constant 18 : index
    %46 = vector.load %arg18[%c0_29, %c18] : memref<8x648xf32, #tpu.memory_space<vmem>>, vector<8x256xf32>
    %47 = arith.truncf %46 : vector<8x256xf32> to vector<8x256xbf16>
    %c8 = arith.constant 8 : index
    %c0_30 = arith.constant 0 : index
    %48 = vector.load %arg19[%c8, %c0_30] : memref<72x512xbf16, #tpu.memory_space<vmem>>, vector<8x256xbf16>
    tpu.vector_store %arg19[%c8, %c0_30], %47 {strides = array<i32>} : memref<72x512xbf16, #tpu.memory_space<vmem>>, vector<8x256xbf16>,
    %c0_31 = arith.constant 0 : index
    %c342 = arith.constant 342 : index
    %49 = vector.load %arg18[%c0_31, %c342] : memref<8x648xf32, #tpu.memory_space<vmem>>, vector<8x256xf32>
    %50 = arith.truncf %49 : vector<8x256xf32> to vector<8x256xbf16>
    %c8_32 = arith.constant 8 : index
    %c256_33 = arith.constant 256 : index
    %51 = vector.load %arg19[%c8_32, %c256_33] : memref<72x512xbf16, #tpu.memory_space<vmem>>, vector<8x256xbf16>
    tpu.vector_store %arg19[%c8_32, %c256_33], %50 {strides = array<i32>} : memref<72x512xbf16, #tpu.memory_space<vmem>>, vector<8x256xbf16>,
    %c0_34 = arith.constant 0 : index
    %c19 = arith.constant 19 : index
    %52 = vector.load %arg18[%c0_34, %c19] : memref<8x648xf32, #tpu.memory_space<vmem>>, vector<8x256xf32>
    %53 = arith.mulf %52, %10 : vector<8x256xf32>
    %54 = arith.truncf %53 : vector<8x256xf32> to vector<8x256xbf16>
    %c16 = arith.constant 16 : index
    %c0_35 = arith.constant 0 : index
    %55 = vector.load %arg19[%c16, %c0_35] : memref<72x512xbf16, #tpu.memory_space<vmem>>, vector<8x256xbf16>
    tpu.vector_store %arg19[%c16, %c0_35], %54 {strides = array<i32>} : memref<72x512xbf16, #tpu.memory_space<vmem>>, vector<8x256xbf16>,
    %c0_36 = arith.constant 0 : index
    %c343 = arith.constant 343 : index
    %56 = vector.load %arg18[%c0_36, %c343] : memref<8x648xf32, #tpu.memory_space<vmem>>, vector<8x256xf32>
    %57 = arith.mulf %56, %10 : vector<8x256xf32>
    %58 = arith.truncf %57 : vector<8x256xf32> to vector<8x256xbf16>
    %c16_37 = arith.constant 16 : index
    %c256_38 = arith.constant 256 : index
    %59 = vector.load %arg19[%c16_37, %c256_38] : memref<72x512xbf16, #tpu.memory_space<vmem>>, vector<8x256xbf16>
    tpu.vector_store %arg19[%c16_37, %c256_38], %58 {strides = array<i32>} : memref<72x512xbf16, #tpu.memory_space<vmem>>, vector<8x256xbf16>,
    %c0_39 = arith.constant 0 : index
    %c33 = arith.constant 33 : index
    %60 = vector.load %arg18[%c0_39, %c33] : memref<8x648xf32, #tpu.memory_space<vmem>>, vector<8x256xf32>
    %61 = arith.mulf %60, %7 : vector<8x256xf32>
    %62 = arith.truncf %61 : vector<8x256xf32> to vector<8x256xbf16>
    %c24 = arith.constant 24 : index
    %c0_40 = arith.constant 0 : index
    %63 = vector.load %arg19[%c24, %c0_40] : memref<72x512xbf16, #tpu.memory_space<vmem>>, vector<8x256xbf16>
    tpu.vector_store %arg19[%c24, %c0_40], %62 {strides = array<i32>} : memref<72x512xbf16, #tpu.memory_space<vmem>>, vector<8x256xbf16>,
    %c0_41 = arith.constant 0 : index
    %c357 = arith.constant 357 : index
    %64 = vector.load %arg18[%c0_41, %c357] : memref<8x648xf32, #tpu.memory_space<vmem>>, vector<8x256xf32>
    %65 = arith.mulf %64, %7 : vector<8x256xf32>
    %66 = arith.truncf %65 : vector<8x256xf32> to vector<8x256xbf16>
    %c24_42 = arith.constant 24 : index
    %c256_43 = arith.constant 256 : index
    %67 = vector.load %arg19[%c24_42, %c256_43] : memref<72x512xbf16, #tpu.memory_space<vmem>>, vector<8x256xbf16>
    tpu.vector_store %arg19[%c24_42, %c256_43], %66 {strides = array<i32>} : memref<72x512xbf16, #tpu.memory_space<vmem>>, vector<8x256xbf16>,
    %c0_44 = arith.constant 0 : index
    %c34_45 = arith.constant 34 : index
    %68 = vector.load %arg18[%c0_44, %c34_45] : memref<8x648xf32, #tpu.memory_space<vmem>>, vector<8x256xf32>
    %69 = arith.truncf %68 : vector<8x256xf32> to vector<8x256xbf16>
    %c32 = arith.constant 32 : index
    %c0_46 = arith.constant 0 : index
    %70 = vector.load %arg19[%c32, %c0_46] : memref<72x512xbf16, #tpu.memory_space<vmem>>, vector<8x256xbf16>
    tpu.vector_store %arg19[%c32, %c0_46], %69 {strides = array<i32>} : memref<72x512xbf16, #tpu.memory_space<vmem>>, vector<8x256xbf16>,
    %c0_47 = arith.constant 0 : index
    %c358_48 = arith.constant 358 : index
    %71 = vector.load %arg18[%c0_47, %c358_48] : memref<8x648xf32, #tpu.memory_space<vmem>>, vector<8x256xf32>
    %72 = arith.truncf %71 : vector<8x256xf32> to vector<8x256xbf16>
    %c32_49 = arith.constant 32 : index
    %c256_50 = arith.constant 256 : index
    %73 = vector.load %arg19[%c32_49, %c256_50] : memref<72x512xbf16, #tpu.memory_space<vmem>>, vector<8x256xbf16>
    tpu.vector_store %arg19[%c32_49, %c256_50], %72 {strides = array<i32>} : memref<72x512xbf16, #tpu.memory_space<vmem>>, vector<8x256xbf16>,
    %c0_51 = arith.constant 0 : index
    %c35 = arith.constant 35 : index
    %74 = vector.load %arg18[%c0_51, %c35] : memref<8x648xf32, #tpu.memory_space<vmem>>, vector<8x256xf32>
    %75 = arith.mulf %74, %10 : vector<8x256xf32>
    %76 = arith.truncf %75 : vector<8x256xf32> to vector<8x256xbf16>
    %c40 = arith.constant 40 : index
    %c0_52 = arith.constant 0 : index
    %77 = vector.load %arg19[%c40, %c0_52] : memref<72x512xbf16, #tpu.memory_space<vmem>>, vector<8x256xbf16>
    tpu.vector_store %arg19[%c40, %c0_52], %76 {strides = array<i32>} : memref<72x512xbf16, #tpu.memory_space<vmem>>, vector<8x256xbf16>,
    %c0_53 = arith.constant 0 : index
    %c359 = arith.constant 359 : index
    %78 = vector.load %arg18[%c0_53, %c359] : memref<8x648xf32, #tpu.memory_space<vmem>>, vector<8x256xf32>
    %79 = arith.mulf %78, %10 : vector<8x256xf32>
    %80 = arith.truncf %79 : vector<8x256xf32> to vector<8x256xbf16>
    %c40_54 = arith.constant 40 : index
    %c256_55 = arith.constant 256 : index
    %81 = vector.load %arg19[%c40_54, %c256_55] : memref<72x512xbf16, #tpu.memory_space<vmem>>, vector<8x256xbf16>
    tpu.vector_store %arg19[%c40_54, %c256_55], %80 {strides = array<i32>} : memref<72x512xbf16, #tpu.memory_space<vmem>>, vector<8x256xbf16>,
    %c0_56 = arith.constant 0 : index
    %c49 = arith.constant 49 : index
    %82 = vector.load %arg18[%c0_56, %c49] : memref<8x648xf32, #tpu.memory_space<vmem>>, vector<8x256xf32>
    %83 = arith.mulf %82, %7 : vector<8x256xf32>
    %84 = arith.truncf %83 : vector<8x256xf32> to vector<8x256xbf16>
    %c48 = arith.constant 48 : index
    %c0_57 = arith.constant 0 : index
    %85 = vector.load %arg19[%c48, %c0_57] : memref<72x512xbf16, #tpu.memory_space<vmem>>, vector<8x256xbf16>
    tpu.vector_store %arg19[%c48, %c0_57], %84 {strides = array<i32>} : memref<72x512xbf16, #tpu.memory_space<vmem>>, vector<8x256xbf16>,
    %c0_58 = arith.constant 0 : index
    %c373 = arith.constant 373 : index
    %86 = vector.load %arg18[%c0_58, %c373] : memref<8x648xf32, #tpu.memory_space<vmem>>, vector<8x256xf32>
    %87 = arith.mulf %86, %7 : vector<8x256xf32>
    %88 = arith.truncf %87 : vector<8x256xf32> to vector<8x256xbf16>
    %c48_59 = arith.constant 48 : index
    %c256_60 = arith.constant 256 : index
    %89 = vector.load %arg19[%c48_59, %c256_60] : memref<72x512xbf16, #tpu.memory_space<vmem>>, vector<8x256xbf16>
    tpu.vector_store %arg19[%c48_59, %c256_60], %88 {strides = array<i32>} : memref<72x512xbf16, #tpu.memory_space<vmem>>, vector<8x256xbf16>,
    %c0_61 = arith.constant 0 : index
    %c50 = arith.constant 50 : index
    %90 = vector.load %arg18[%c0_61, %c50] : memref<8x648xf32, #tpu.memory_space<vmem>>, vector<8x256xf32>
    %91 = arith.truncf %90 : vector<8x256xf32> to vector<8x256xbf16>
    %c56 = arith.constant 56 : index
    %c0_62 = arith.constant 0 : index
    %92 = vector.load %arg19[%c56, %c0_62] : memref<72x512xbf16, #tpu.memory_space<vmem>>, vector<8x256xbf16>
    tpu.vector_store %arg19[%c56, %c0_62], %91 {strides = array<i32>} : memref<72x512xbf16, #tpu.memory_space<vmem>>, vector<8x256xbf16>,
    %c0_63 = arith.constant 0 : index
    %c374 = arith.constant 374 : index
    %93 = vector.load %arg18[%c0_63, %c374] : memref<8x648xf32, #tpu.memory_space<vmem>>, vector<8x256xf32>
    %94 = arith.truncf %93 : vector<8x256xf32> to vector<8x256xbf16>
    %c56_64 = arith.constant 56 : index
    %c256_65 = arith.constant 256 : index
    %95 = vector.load %arg19[%c56_64, %c256_65] : memref<72x512xbf16, #tpu.memory_space<vmem>>, vector<8x256xbf16>
    tpu.vector_store %arg19[%c56_64, %c256_65], %94 {strides = array<i32>} : memref<72x512xbf16, #tpu.memory_space<vmem>>, vector<8x256xbf16>,
    %c0_66 = arith.constant 0 : index
    %c51 = arith.constant 51 : index
    %96 = vector.load %arg18[%c0_66, %c51] : memref<8x648xf32, #tpu.memory_space<vmem>>, vector<8x256xf32>
    %97 = arith.mulf %96, %10 : vector<8x256xf32>
    %98 = arith.truncf %97 : vector<8x256xf32> to vector<8x256xbf16>
    %c64 = arith.constant 64 : index
    %c0_67 = arith.constant 0 : index
    %99 = vector.load %arg19[%c64, %c0_67] : memref<72x512xbf16, #tpu.memory_space<vmem>>, vector<8x256xbf16>
    tpu.vector_store %arg19[%c64, %c0_67], %98 {strides = array<i32>} : memref<72x512xbf16, #tpu.memory_space<vmem>>, vector<8x256xbf16>,
    %c0_68 = arith.constant 0 : index
    %c375 = arith.constant 375 : index
    %100 = vector.load %arg18[%c0_68, %c375] : memref<8x648xf32, #tpu.memory_space<vmem>>, vector<8x256xf32>
    %101 = arith.mulf %100, %10 : vector<8x256xf32>
    %102 = arith.truncf %101 : vector<8x256xf32> to vector<8x256xbf16>
    %c64_69 = arith.constant 64 : index
    %c256_70 = arith.constant 256 : index
    %103 = vector.load %arg19[%c64_69, %c256_70] : memref<72x512xbf16, #tpu.memory_space<vmem>>, vector<8x256xbf16>
    tpu.vector_store %arg19[%c64_69, %c256_70], %102 {strides = array<i32>} : memref<72x512xbf16, #tpu.memory_space<vmem>>, vector<8x256xbf16>,
    %c0_71 = arith.constant 0 : index
    %c0_72 = arith.constant 0 : index
    %104 = vector.load %arg19[%c0_71, %c0_72] : memref<72x512xbf16, #tpu.memory_space<vmem>>, vector<72x512xbf16>
    %c0_73 = arith.constant 0 : index
    %c0_74 = arith.constant 0 : index
    %105 = vector.load %arg7[%c0_73, %c0_74] : memref<8x72xbf16, #tpu.memory_space<vmem>>, vector<8x72xbf16>
    %cst_75 = arith.constant dense<0.000000e+00> : vector<8x512xf32>
    %106 = tpu.matmul %105, %104, %cst_75 {dimension_numbers = #tpu.dot_dimension_numbers<[1], [0], [0], [1], [0, 0, 1, 1], [], []>} : vector<8x72xbf16>, vector<72x512xbf16>, vector<8x512xf32> -> vector<8x512xf32>
    %c0_76 = arith.constant 0 : index
    %c0_77 = arith.constant 0 : index
    %107 = vector.load %arg8[%c0_76, %c0_77] : memref<8x1xf32, #tpu.memory_space<vmem>>, vector<8x1xf32>
    %108 = vector.broadcast %107 : vector<8x1xf32> to vector<8x512xf32>
    %109 = arith.addf %106, %108 : vector<8x512xf32>
    %cst_78 = arith.constant 0.000000e+00 : f32
    %110 = vector.broadcast %cst_78 : f32 to vector<8x512xf32>
    %111 = arith.maximumf %109, %110 : vector<8x512xf32>
    %112 = vector.extract_strided_slice %111 {offsets = [0, 0], sizes = [8, 256], strides = [1, 1]} : vector<8x512xf32> to vector<8x256xf32>
    %c0_79 = arith.constant 0 : index
    %c34_80 = arith.constant 34 : index
    %113 = vector.load %arg18[%c0_79, %c34_80] : memref<8x648xf32, #tpu.memory_space<vmem>>, vector<8x256xf32>
    tpu.vector_store %arg18[%c0_79, %c34_80], %112 {strides = array<i32>} : memref<8x648xf32, #tpu.memory_space<vmem>>, vector<8x256xf32>,
    %114 = vector.extract_strided_slice %111 {offsets = [0, 256], sizes = [8, 256], strides = [1, 1]} : vector<8x512xf32> to vector<8x256xf32>
    %c0_81 = arith.constant 0 : index
    %c358_82 = arith.constant 358 : index
    %115 = vector.load %arg18[%c0_81, %c358_82] : memref<8x648xf32, #tpu.memory_space<vmem>>, vector<8x256xf32>
    tpu.vector_store %arg18[%c0_81, %c358_82], %114 {strides = array<i32>} : memref<8x648xf32, #tpu.memory_space<vmem>>, vector<8x256xf32>,
    %c0_83 = arith.constant 0 : index
    %c17_84 = arith.constant 17 : index
    %116 = vector.load %arg18[%c0_83, %c17_84] : memref<8x648xf32, #tpu.memory_space<vmem>>, vector<8x256xf32>
    %117 = arith.mulf %116, %7 : vector<8x256xf32>
    %118 = arith.truncf %117 : vector<8x256xf32> to vector<8x256xbf16>
    %c0_85 = arith.constant 0 : index
    %c0_86 = arith.constant 0 : index
    %119 = vector.load %arg19[%c0_85, %c0_86] : memref<72x512xbf16, #tpu.memory_space<vmem>>, vector<8x256xbf16>
    tpu.vector_store %arg19[%c0_85, %c0_86], %118 {strides = array<i32>} : memref<72x512xbf16, #tpu.memory_space<vmem>>, vector<8x256xbf16>,
    %c0_87 = arith.constant 0 : index
    %c341_88 = arith.constant 341 : index
    %120 = vector.load %arg18[%c0_87, %c341_88] : memref<8x648xf32, #tpu.memory_space<vmem>>, vector<8x256xf32>
    %121 = arith.mulf %120, %7 : vector<8x256xf32>
    %122 = arith.truncf %121 : vector<8x256xf32> to vector<8x256xbf16>
    %c0_89 = arith.constant 0 : index
    %c256_90 = arith.constant 256 : index
    %123 = vector.load %arg19[%c0_89, %c256_90] : memref<72x512xbf16, #tpu.memory_space<vmem>>, vector<8x256xbf16>
    tpu.vector_store %arg19[%c0_89, %c256_90], %122 {strides = array<i32>} : memref<72x512xbf16, #tpu.memory_space<vmem>>, vector<8x256xbf16>,
    %c0_91 = arith.constant 0 : index
    %c18_92 = arith.constant 18 : index
    %124 = vector.load %arg18[%c0_91, %c18_92] : memref<8x648xf32, #tpu.memory_space<vmem>>, vector<8x256xf32>
    %125 = arith.truncf %124 : vector<8x256xf32> to vector<8x256xbf16>
    %c8_93 = arith.constant 8 : index
    %c0_94 = arith.constant 0 : index
    %126 = vector.load %arg19[%c8_93, %c0_94] : memref<72x512xbf16, #tpu.memory_space<vmem>>, vector<8x256xbf16>
    tpu.vector_store %arg19[%c8_93, %c0_94], %125 {strides = array<i32>} : memref<72x512xbf16, #tpu.memory_space<vmem>>, vector<8x256xbf16>,
    %c0_95 = arith.constant 0 : index
    %c342_96 = arith.constant 342 : index
    %127 = vector.load %arg18[%c0_95, %c342_96] : memref<8x648xf32, #tpu.memory_space<vmem>>, vector<8x256xf32>
    %128 = arith.truncf %127 : vector<8x256xf32> to vector<8x256xbf16>
    %c8_97 = arith.constant 8 : index
    %c256_98 = arith.constant 256 : index
    %129 = vector.load %arg19[%c8_97, %c256_98] : memref<72x512xbf16, #tpu.memory_space<vmem>>, vector<8x256xbf16>
    tpu.vector_store %arg19[%c8_97, %c256_98], %128 {strides = array<i32>} : memref<72x512xbf16, #tpu.memory_space<vmem>>, vector<8x256xbf16>,
    %c0_99 = arith.constant 0 : index
    %c19_100 = arith.constant 19 : index
    %130 = vector.load %arg18[%c0_99, %c19_100] : memref<8x648xf32, #tpu.memory_space<vmem>>, vector<8x256xf32>
    %131 = arith.mulf %130, %10 : vector<8x256xf32>
    %132 = arith.truncf %131 : vector<8x256xf32> to vector<8x256xbf16>
    %c16_101 = arith.constant 16 : index
    %c0_102 = arith.constant 0 : index
    %133 = vector.load %arg19[%c16_101, %c0_102] : memref<72x512xbf16, #tpu.memory_space<vmem>>, vector<8x256xbf16>
    tpu.vector_store %arg19[%c16_101, %c0_102], %132 {strides = array<i32>} : memref<72x512xbf16, #tpu.memory_space<vmem>>, vector<8x256xbf16>,
    %c0_103 = arith.constant 0 : index
    %c343_104 = arith.constant 343 : index
    %134 = vector.load %arg18[%c0_103, %c343_104] : memref<8x648xf32, #tpu.memory_space<vmem>>, vector<8x256xf32>
    %135 = arith.mulf %134, %10 : vector<8x256xf32>
    %136 = arith.truncf %135 : vector<8x256xf32> to vector<8x256xbf16>
    %c16_105 = arith.constant 16 : index
    %c256_106 = arith.constant 256 : index
    %137 = vector.load %arg19[%c16_105, %c256_106] : memref<72x512xbf16, #tpu.memory_space<vmem>>, vector<8x256xbf16>
    tpu.vector_store %arg19[%c16_105, %c256_106], %136 {strides = array<i32>} : memref<72x512xbf16, #tpu.memory_space<vmem>>, vector<8x256xbf16>,
    %c0_107 = arith.constant 0 : index
    %c33_108 = arith.constant 33 : index
    %138 = vector.load %arg18[%c0_107, %c33_108] : memref<8x648xf32, #tpu.memory_space<vmem>>, vector<8x256xf32>
    %139 = arith.mulf %138, %7 : vector<8x256xf32>
    %140 = arith.truncf %139 : vector<8x256xf32> to vector<8x256xbf16>
    %c24_109 = arith.constant 24 : index
    %c0_110 = arith.constant 0 : index
    %141 = vector.load %arg19[%c24_109, %c0_110] : memref<72x512xbf16, #tpu.memory_space<vmem>>, vector<8x256xbf16>
    tpu.vector_store %arg19[%c24_109, %c0_110], %140 {strides = array<i32>} : memref<72x512xbf16, #tpu.memory_space<vmem>>, vector<8x256xbf16>,
    %c0_111 = arith.constant 0 : index
    %c357_112 = arith.constant 357 : index
    %142 = vector.load %arg18[%c0_111, %c357_112] : memref<8x648xf32, #tpu.memory_space<vmem>>, vector<8x256xf32>
    %143 = arith.mulf %142, %7 : vector<8x256xf32>
    %144 = arith.truncf %143 : vector<8x256xf32> to vector<8x256xbf16>
    %c24_113 = arith.constant 24 : index
    %c256_114 = arith.constant 256 : index
    %145 = vector.load %arg19[%c24_113, %c256_114] : memref<72x512xbf16, #tpu.memory_space<vmem>>, vector<8x256xbf16>
    tpu.vector_store %arg19[%c24_113, %c256_114], %144 {strides = array<i32>} : memref<72x512xbf16, #tpu.memory_space<vmem>>, vector<8x256xbf16>,
    %c0_115 = arith.constant 0 : index
    %c34_116 = arith.constant 34 : index
    %146 = vector.load %arg18[%c0_115, %c34_116] : memref<8x648xf32, #tpu.memory_space<vmem>>, vector<8x256xf32>
    %147 = arith.truncf %146 : vector<8x256xf32> to vector<8x256xbf16>
    %c32_117 = arith.constant 32 : index
    %c0_118 = arith.constant 0 : index
    %148 = vector.load %arg19[%c32_117, %c0_118] : memref<72x512xbf16, #tpu.memory_space<vmem>>, vector<8x256xbf16>
    tpu.vector_store %arg19[%c32_117, %c0_118], %147 {strides = array<i32>} : memref<72x512xbf16, #tpu.memory_space<vmem>>, vector<8x256xbf16>,
    %c0_119 = arith.constant 0 : index
    %c358_120 = arith.constant 358 : index
    %149 = vector.load %arg18[%c0_119, %c358_120] : memref<8x648xf32, #tpu.memory_space<vmem>>, vector<8x256xf32>
    %150 = arith.truncf %149 : vector<8x256xf32> to vector<8x256xbf16>
    %c32_121 = arith.constant 32 : index
    %c256_122 = arith.constant 256 : index
    %151 = vector.load %arg19[%c32_121, %c256_122] : memref<72x512xbf16, #tpu.memory_space<vmem>>, vector<8x256xbf16>
    tpu.vector_store %arg19[%c32_121, %c256_122], %150 {strides = array<i32>} : memref<72x512xbf16, #tpu.memory_space<vmem>>, vector<8x256xbf16>,
    %c0_123 = arith.constant 0 : index
    %c35_124 = arith.constant 35 : index
    %152 = vector.load %arg18[%c0_123, %c35_124] : memref<8x648xf32, #tpu.memory_space<vmem>>, vector<8x256xf32>
    %153 = arith.mulf %152, %10 : vector<8x256xf32>
    %154 = arith.truncf %153 : vector<8x256xf32> to vector<8x256xbf16>
    %c40_125 = arith.constant 40 : index
    %c0_126 = arith.constant 0 : index
    %155 = vector.load %arg19[%c40_125, %c0_126] : memref<72x512xbf16, #tpu.memory_space<vmem>>, vector<8x256xbf16>
    tpu.vector_store %arg19[%c40_125, %c0_126], %154 {strides = array<i32>} : memref<72x512xbf16, #tpu.memory_space<vmem>>, vector<8x256xbf16>,
    %c0_127 = arith.constant 0 : index
    %c359_128 = arith.constant 359 : index
    %156 = vector.load %arg18[%c0_127, %c359_128] : memref<8x648xf32, #tpu.memory_space<vmem>>, vector<8x256xf32>
    %157 = arith.mulf %156, %10 : vector<8x256xf32>
    %158 = arith.truncf %157 : vector<8x256xf32> to vector<8x256xbf16>
    %c40_129 = arith.constant 40 : index
    %c256_130 = arith.constant 256 : index
    %159 = vector.load %arg19[%c40_129, %c256_130] : memref<72x512xbf16, #tpu.memory_space<vmem>>, vector<8x256xbf16>
    tpu.vector_store %arg19[%c40_129, %c256_130], %158 {strides = array<i32>} : memref<72x512xbf16, #tpu.memory_space<vmem>>, vector<8x256xbf16>,
    %c0_131 = arith.constant 0 : index
    %c49_132 = arith.constant 49 : index
    %160 = vector.load %arg18[%c0_131, %c49_132] : memref<8x648xf32, #tpu.memory_space<vmem>>, vector<8x256xf32>
    %161 = arith.mulf %160, %7 : vector<8x256xf32>
    %162 = arith.truncf %161 : vector<8x256xf32> to vector<8x256xbf16>
    %c48_133 = arith.constant 48 : index
    %c0_134 = arith.constant 0 : index
    %163 = vector.load %arg19[%c48_133, %c0_134] : memref<72x512xbf16, #tpu.memory_space<vmem>>, vector<8x256xbf16>
    tpu.vector_store %arg19[%c48_133, %c0_134], %162 {strides = array<i32>} : memref<72x512xbf16, #tpu.memory_space<vmem>>, vector<8x256xbf16>,
    %c0_135 = arith.constant 0 : index
    %c373_136 = arith.constant 373 : index
    %164 = vector.load %arg18[%c0_135, %c373_136] : memref<8x648xf32, #tpu.memory_space<vmem>>, vector<8x256xf32>
    %165 = arith.mulf %164, %7 : vector<8x256xf32>
    %166 = arith.truncf %165 : vector<8x256xf32> to vector<8x256xbf16>
    %c48_137 = arith.constant 48 : index
    %c256_138 = arith.constant 256 : index
    %167 = vector.load %arg19[%c48_137, %c256_138] : memref<72x512xbf16, #tpu.memory_space<vmem>>, vector<8x256xbf16>
    tpu.vector_store %arg19[%c48_137, %c256_138], %166 {strides = array<i32>} : memref<72x512xbf16, #tpu.memory_space<vmem>>, vector<8x256xbf16>,
    %c0_139 = arith.constant 0 : index
    %c50_140 = arith.constant 50 : index
    %168 = vector.load %arg18[%c0_139, %c50_140] : memref<8x648xf32, #tpu.memory_space<vmem>>, vector<8x256xf32>
    %169 = arith.truncf %168 : vector<8x256xf32> to vector<8x256xbf16>
    %c56_141 = arith.constant 56 : index
    %c0_142 = arith.constant 0 : index
    %170 = vector.load %arg19[%c56_141, %c0_142] : memref<72x512xbf16, #tpu.memory_space<vmem>>, vector<8x256xbf16>
    tpu.vector_store %arg19[%c56_141, %c0_142], %169 {strides = array<i32>} : memref<72x512xbf16, #tpu.memory_space<vmem>>, vector<8x256xbf16>,
    %c0_143 = arith.constant 0 : index
    %c374_144 = arith.constant 374 : index
    %171 = vector.load %arg18[%c0_143, %c374_144] : memref<8x648xf32, #tpu.memory_space<vmem>>, vector<8x256xf32>
    %172 = arith.truncf %171 : vector<8x256xf32> to vector<8x256xbf16>
    %c56_145 = arith.constant 56 : index
    %c256_146 = arith.constant 256 : index
    %173 = vector.load %arg19[%c56_145, %c256_146] : memref<72x512xbf16, #tpu.memory_space<vmem>>, vector<8x256xbf16>
    tpu.vector_store %arg19[%c56_145, %c256_146], %172 {strides = array<i32>} : memref<72x512xbf16, #tpu.memory_space<vmem>>, vector<8x256xbf16>,
    %c0_147 = arith.constant 0 : index
    %c51_148 = arith.constant 51 : index
    %174 = vector.load %arg18[%c0_147, %c51_148] : memref<8x648xf32, #tpu.memory_space<vmem>>, vector<8x256xf32>
    %175 = arith.mulf %174, %10 : vector<8x256xf32>
    %176 = arith.truncf %175 : vector<8x256xf32> to vector<8x256xbf16>
    %c64_149 = arith.constant 64 : index
    %c0_150 = arith.constant 0 : index
    %177 = vector.load %arg19[%c64_149, %c0_150] : memref<72x512xbf16, #tpu.memory_space<vmem>>, vector<8x256xbf16>
    tpu.vector_store %arg19[%c64_149, %c0_150], %176 {strides = array<i32>} : memref<72x512xbf16, #tpu.memory_space<vmem>>, vector<8x256xbf16>,
    %c0_151 = arith.constant 0 : index
    %c375_152 = arith.constant 375 : index
    %178 = vector.load %arg18[%c0_151, %c375_152] : memref<8x648xf32, #tpu.memory_space<vmem>>, vector<8x256xf32>
    %179 = arith.mulf %178, %10 : vector<8x256xf32>
    %180 = arith.truncf %179 : vector<8x256xf32> to vector<8x256xbf16>
    %c64_153 = arith.constant 64 : index
    %c256_154 = arith.constant 256 : index
    %181 = vector.load %arg19[%c64_153, %c256_154] : memref<72x512xbf16, #tpu.memory_space<vmem>>, vector<8x256xbf16>
    tpu.vector_store %arg19[%c64_153, %c256_154], %180 {strides = array<i32>} : memref<72x512xbf16, #tpu.memory_space<vmem>>, vector<8x256xbf16>,
    %c0_155 = arith.constant 0 : index
    %c0_156 = arith.constant 0 : index
    %182 = vector.load %arg19[%c0_155, %c0_156] : memref<72x512xbf16, #tpu.memory_space<vmem>>, vector<72x512xbf16>
    %c0_157 = arith.constant 0 : index
    %c0_158 = arith.constant 0 : index
    %183 = vector.load %arg9[%c0_157, %c0_158] : memref<8x72xbf16, #tpu.memory_space<vmem>>, vector<8x72xbf16>
    %cst_159 = arith.constant dense<0.000000e+00> : vector<8x512xf32>
    %184 = tpu.matmul %183, %182, %cst_159 {dimension_numbers = #tpu.dot_dimension_numbers<[1], [0], [0], [1], [0, 0, 1, 1], [], []>} : vector<8x72xbf16>, vector<72x512xbf16>, vector<8x512xf32> -> vector<8x512xf32>
    %c0_160 = arith.constant 0 : index
    %c0_161 = arith.constant 0 : index
    %185 = vector.load %arg10[%c0_160, %c0_161] : memref<8x1xf32, #tpu.memory_space<vmem>>, vector<8x1xf32>
    %186 = vector.broadcast %185 : vector<8x1xf32> to vector<8x512xf32>
    %187 = arith.addf %184, %186 : vector<8x512xf32>
    %cst_162 = arith.constant 0.000000e+00 : f32
    %188 = vector.broadcast %cst_162 : f32 to vector<8x512xf32>
    %189 = arith.maximumf %187, %188 : vector<8x512xf32>
    %190 = vector.extract_strided_slice %189 {offsets = [0, 0], sizes = [8, 256], strides = [1, 1]} : vector<8x512xf32> to vector<8x256xf32>
    %c0_163 = arith.constant 0 : index
    %c34_164 = arith.constant 34 : index
    %191 = vector.load %arg18[%c0_163, %c34_164] : memref<8x648xf32, #tpu.memory_space<vmem>>, vector<8x256xf32>
    tpu.vector_store %arg18[%c0_163, %c34_164], %190 {strides = array<i32>} : memref<8x648xf32, #tpu.memory_space<vmem>>, vector<8x256xf32>,
    %192 = vector.extract_strided_slice %189 {offsets = [0, 256], sizes = [8, 256], strides = [1, 1]} : vector<8x512xf32> to vector<8x256xf32>
    %c0_165 = arith.constant 0 : index
    %c358_166 = arith.constant 358 : index
    %193 = vector.load %arg18[%c0_165, %c358_166] : memref<8x648xf32, #tpu.memory_space<vmem>>, vector<8x256xf32>
    tpu.vector_store %arg18[%c0_165, %c358_166], %192 {strides = array<i32>} : memref<8x648xf32, #tpu.memory_space<vmem>>, vector<8x256xf32>,
    %c0_167 = arith.constant 0 : index
    %c17_168 = arith.constant 17 : index
    %194 = vector.load %arg18[%c0_167, %c17_168] : memref<8x648xf32, #tpu.memory_space<vmem>>, vector<8x256xf32>
    %195 = arith.mulf %194, %7 : vector<8x256xf32>
    %196 = arith.truncf %195 : vector<8x256xf32> to vector<8x256xbf16>
    %c0_169 = arith.constant 0 : index
    %c0_170 = arith.constant 0 : index
    %197 = vector.load %arg19[%c0_169, %c0_170] : memref<72x512xbf16, #tpu.memory_space<vmem>>, vector<8x256xbf16>
    tpu.vector_store %arg19[%c0_169, %c0_170], %196 {strides = array<i32>} : memref<72x512xbf16, #tpu.memory_space<vmem>>, vector<8x256xbf16>,
    %c0_171 = arith.constant 0 : index
    %c341_172 = arith.constant 341 : index
    %198 = vector.load %arg18[%c0_171, %c341_172] : memref<8x648xf32, #tpu.memory_space<vmem>>, vector<8x256xf32>
    %199 = arith.mulf %198, %7 : vector<8x256xf32>
    %200 = arith.truncf %199 : vector<8x256xf32> to vector<8x256xbf16>
    %c0_173 = arith.constant 0 : index
    %c256_174 = arith.constant 256 : index
    %201 = vector.load %arg19[%c0_173, %c256_174] : memref<72x512xbf16, #tpu.memory_space<vmem>>, vector<8x256xbf16>
    tpu.vector_store %arg19[%c0_173, %c256_174], %200 {strides = array<i32>} : memref<72x512xbf16, #tpu.memory_space<vmem>>, vector<8x256xbf16>,
    %c0_175 = arith.constant 0 : index
    %c18_176 = arith.constant 18 : index
    %202 = vector.load %arg18[%c0_175, %c18_176] : memref<8x648xf32, #tpu.memory_space<vmem>>, vector<8x256xf32>
    %203 = arith.truncf %202 : vector<8x256xf32> to vector<8x256xbf16>
    %c8_177 = arith.constant 8 : index
    %c0_178 = arith.constant 0 : index
    %204 = vector.load %arg19[%c8_177, %c0_178] : memref<72x512xbf16, #tpu.memory_space<vmem>>, vector<8x256xbf16>
    tpu.vector_store %arg19[%c8_177, %c0_178], %203 {strides = array<i32>} : memref<72x512xbf16, #tpu.memory_space<vmem>>, vector<8x256xbf16>,
    %c0_179 = arith.constant 0 : index
    %c342_180 = arith.constant 342 : index
    %205 = vector.load %arg18[%c0_179, %c342_180] : memref<8x648xf32, #tpu.memory_space<vmem>>, vector<8x256xf32>
    %206 = arith.truncf %205 : vector<8x256xf32> to vector<8x256xbf16>
    %c8_181 = arith.constant 8 : index
    %c256_182 = arith.constant 256 : index
    %207 = vector.load %arg19[%c8_181, %c256_182] : memref<72x512xbf16, #tpu.memory_space<vmem>>, vector<8x256xbf16>
    tpu.vector_store %arg19[%c8_181, %c256_182], %206 {strides = array<i32>} : memref<72x512xbf16, #tpu.memory_space<vmem>>, vector<8x256xbf16>,
    %c0_183 = arith.constant 0 : index
    %c19_184 = arith.constant 19 : index
    %208 = vector.load %arg18[%c0_183, %c19_184] : memref<8x648xf32, #tpu.memory_space<vmem>>, vector<8x256xf32>
    %209 = arith.mulf %208, %10 : vector<8x256xf32>
    %210 = arith.truncf %209 : vector<8x256xf32> to vector<8x256xbf16>
    %c16_185 = arith.constant 16 : index
    %c0_186 = arith.constant 0 : index
    %211 = vector.load %arg19[%c16_185, %c0_186] : memref<72x512xbf16, #tpu.memory_space<vmem>>, vector<8x256xbf16>
    tpu.vector_store %arg19[%c16_185, %c0_186], %210 {strides = array<i32>} : memref<72x512xbf16, #tpu.memory_space<vmem>>, vector<8x256xbf16>,
    %c0_187 = arith.constant 0 : index
    %c343_188 = arith.constant 343 : index
    %212 = vector.load %arg18[%c0_187, %c343_188] : memref<8x648xf32, #tpu.memory_space<vmem>>, vector<8x256xf32>
    %213 = arith.mulf %212, %10 : vector<8x256xf32>
    %214 = arith.truncf %213 : vector<8x256xf32> to vector<8x256xbf16>
    %c16_189 = arith.constant 16 : index
    %c256_190 = arith.constant 256 : index
    %215 = vector.load %arg19[%c16_189, %c256_190] : memref<72x512xbf16, #tpu.memory_space<vmem>>, vector<8x256xbf16>
    tpu.vector_store %arg19[%c16_189, %c256_190], %214 {strides = array<i32>} : memref<72x512xbf16, #tpu.memory_space<vmem>>, vector<8x256xbf16>,
    %c0_191 = arith.constant 0 : index
    %c33_192 = arith.constant 33 : index
    %216 = vector.load %arg18[%c0_191, %c33_192] : memref<8x648xf32, #tpu.memory_space<vmem>>, vector<8x256xf32>
    %217 = arith.mulf %216, %7 : vector<8x256xf32>
    %218 = arith.truncf %217 : vector<8x256xf32> to vector<8x256xbf16>
    %c24_193 = arith.constant 24 : index
    %c0_194 = arith.constant 0 : index
    %219 = vector.load %arg19[%c24_193, %c0_194] : memref<72x512xbf16, #tpu.memory_space<vmem>>, vector<8x256xbf16>
    tpu.vector_store %arg19[%c24_193, %c0_194], %218 {strides = array<i32>} : memref<72x512xbf16, #tpu.memory_space<vmem>>, vector<8x256xbf16>,
    %c0_195 = arith.constant 0 : index
    %c357_196 = arith.constant 357 : index
    %220 = vector.load %arg18[%c0_195, %c357_196] : memref<8x648xf32, #tpu.memory_space<vmem>>, vector<8x256xf32>
    %221 = arith.mulf %220, %7 : vector<8x256xf32>
    %222 = arith.truncf %221 : vector<8x256xf32> to vector<8x256xbf16>
    %c24_197 = arith.constant 24 : index
    %c256_198 = arith.constant 256 : index
    %223 = vector.load %arg19[%c24_197, %c256_198] : memref<72x512xbf16, #tpu.memory_space<vmem>>, vector<8x256xbf16>
    tpu.vector_store %arg19[%c24_197, %c256_198], %222 {strides = array<i32>} : memref<72x512xbf16, #tpu.memory_space<vmem>>, vector<8x256xbf16>,
    %c0_199 = arith.constant 0 : index
    %c34_200 = arith.constant 34 : index
    %224 = vector.load %arg18[%c0_199, %c34_200] : memref<8x648xf32, #tpu.memory_space<vmem>>, vector<8x256xf32>
    %225 = arith.truncf %224 : vector<8x256xf32> to vector<8x256xbf16>
    %c32_201 = arith.constant 32 : index
    %c0_202 = arith.constant 0 : index
    %226 = vector.load %arg19[%c32_201, %c0_202] : memref<72x512xbf16, #tpu.memory_space<vmem>>, vector<8x256xbf16>
    tpu.vector_store %arg19[%c32_201, %c0_202], %225 {strides = array<i32>} : memref<72x512xbf16, #tpu.memory_space<vmem>>, vector<8x256xbf16>,
    %c0_203 = arith.constant 0 : index
    %c358_204 = arith.constant 358 : index
    %227 = vector.load %arg18[%c0_203, %c358_204] : memref<8x648xf32, #tpu.memory_space<vmem>>, vector<8x256xf32>
    %228 = arith.truncf %227 : vector<8x256xf32> to vector<8x256xbf16>
    %c32_205 = arith.constant 32 : index
    %c256_206 = arith.constant 256 : index
    %229 = vector.load %arg19[%c32_205, %c256_206] : memref<72x512xbf16, #tpu.memory_space<vmem>>, vector<8x256xbf16>
    tpu.vector_store %arg19[%c32_205, %c256_206], %228 {strides = array<i32>} : memref<72x512xbf16, #tpu.memory_space<vmem>>, vector<8x256xbf16>,
    %c0_207 = arith.constant 0 : index
    %c35_208 = arith.constant 35 : index
    %230 = vector.load %arg18[%c0_207, %c35_208] : memref<8x648xf32, #tpu.memory_space<vmem>>, vector<8x256xf32>
    %231 = arith.mulf %230, %10 : vector<8x256xf32>
    %232 = arith.truncf %231 : vector<8x256xf32> to vector<8x256xbf16>
    %c40_209 = arith.constant 40 : index
    %c0_210 = arith.constant 0 : index
    %233 = vector.load %arg19[%c40_209, %c0_210] : memref<72x512xbf16, #tpu.memory_space<vmem>>, vector<8x256xbf16>
    tpu.vector_store %arg19[%c40_209, %c0_210], %232 {strides = array<i32>} : memref<72x512xbf16, #tpu.memory_space<vmem>>, vector<8x256xbf16>,
    %c0_211 = arith.constant 0 : index
    %c359_212 = arith.constant 359 : index
    %234 = vector.load %arg18[%c0_211, %c359_212] : memref<8x648xf32, #tpu.memory_space<vmem>>, vector<8x256xf32>
    %235 = arith.mulf %234, %10 : vector<8x256xf32>
    %236 = arith.truncf %235 : vector<8x256xf32> to vector<8x256xbf16>
    %c40_213 = arith.constant 40 : index
    %c256_214 = arith.constant 256 : index
    %237 = vector.load %arg19[%c40_213, %c256_214] : memref<72x512xbf16, #tpu.memory_space<vmem>>, vector<8x256xbf16>
    tpu.vector_store %arg19[%c40_213, %c256_214], %236 {strides = array<i32>} : memref<72x512xbf16, #tpu.memory_space<vmem>>, vector<8x256xbf16>,
    %c0_215 = arith.constant 0 : index
    %c49_216 = arith.constant 49 : index
    %238 = vector.load %arg18[%c0_215, %c49_216] : memref<8x648xf32, #tpu.memory_space<vmem>>, vector<8x256xf32>
    %239 = arith.mulf %238, %7 : vector<8x256xf32>
    %240 = arith.truncf %239 : vector<8x256xf32> to vector<8x256xbf16>
    %c48_217 = arith.constant 48 : index
    %c0_218 = arith.constant 0 : index
    %241 = vector.load %arg19[%c48_217, %c0_218] : memref<72x512xbf16, #tpu.memory_space<vmem>>, vector<8x256xbf16>
    tpu.vector_store %arg19[%c48_217, %c0_218], %240 {strides = array<i32>} : memref<72x512xbf16, #tpu.memory_space<vmem>>, vector<8x256xbf16>,
    %c0_219 = arith.constant 0 : index
    %c373_220 = arith.constant 373 : index
    %242 = vector.load %arg18[%c0_219, %c373_220] : memref<8x648xf32, #tpu.memory_space<vmem>>, vector<8x256xf32>
    %243 = arith.mulf %242, %7 : vector<8x256xf32>
    %244 = arith.truncf %243 : vector<8x256xf32> to vector<8x256xbf16>
    %c48_221 = arith.constant 48 : index
    %c256_222 = arith.constant 256 : index
    %245 = vector.load %arg19[%c48_221, %c256_222] : memref<72x512xbf16, #tpu.memory_space<vmem>>, vector<8x256xbf16>
    tpu.vector_store %arg19[%c48_221, %c256_222], %244 {strides = array<i32>} : memref<72x512xbf16, #tpu.memory_space<vmem>>, vector<8x256xbf16>,
    %c0_223 = arith.constant 0 : index
    %c50_224 = arith.constant 50 : index
    %246 = vector.load %arg18[%c0_223, %c50_224] : memref<8x648xf32, #tpu.memory_space<vmem>>, vector<8x256xf32>
    %247 = arith.truncf %246 : vector<8x256xf32> to vector<8x256xbf16>
    %c56_225 = arith.constant 56 : index
    %c0_226 = arith.constant 0 : index
    %248 = vector.load %arg19[%c56_225, %c0_226] : memref<72x512xbf16, #tpu.memory_space<vmem>>, vector<8x256xbf16>
    tpu.vector_store %arg19[%c56_225, %c0_226], %247 {strides = array<i32>} : memref<72x512xbf16, #tpu.memory_space<vmem>>, vector<8x256xbf16>,
    %c0_227 = arith.constant 0 : index
    %c374_228 = arith.constant 374 : index
    %249 = vector.load %arg18[%c0_227, %c374_228] : memref<8x648xf32, #tpu.memory_space<vmem>>, vector<8x256xf32>
    %250 = arith.truncf %249 : vector<8x256xf32> to vector<8x256xbf16>
    %c56_229 = arith.constant 56 : index
    %c256_230 = arith.constant 256 : index
    %251 = vector.load %arg19[%c56_229, %c256_230] : memref<72x512xbf16, #tpu.memory_space<vmem>>, vector<8x256xbf16>
    tpu.vector_store %arg19[%c56_229, %c256_230], %250 {strides = array<i32>} : memref<72x512xbf16, #tpu.memory_space<vmem>>, vector<8x256xbf16>,
    %c0_231 = arith.constant 0 : index
    %c51_232 = arith.constant 51 : index
    %252 = vector.load %arg18[%c0_231, %c51_232] : memref<8x648xf32, #tpu.memory_space<vmem>>, vector<8x256xf32>
    %253 = arith.mulf %252, %10 : vector<8x256xf32>
    %254 = arith.truncf %253 : vector<8x256xf32> to vector<8x256xbf16>
    %c64_233 = arith.constant 64 : index
    %c0_234 = arith.constant 0 : index
    %255 = vector.load %arg19[%c64_233, %c0_234] : memref<72x512xbf16, #tpu.memory_space<vmem>>, vector<8x256xbf16>
    tpu.vector_store %arg19[%c64_233, %c0_234], %254 {strides = array<i32>} : memref<72x512xbf16, #tpu.memory_space<vmem>>, vector<8x256xbf16>,
    %c0_235 = arith.constant 0 : index
    %c375_236 = arith.constant 375 : index
    %256 = vector.load %arg18[%c0_235, %c375_236] : memref<8x648xf32, #tpu.memory_space<vmem>>, vector<8x256xf32>
    %257 = arith.mulf %256, %10 : vector<8x256xf32>
    %258 = arith.truncf %257 : vector<8x256xf32> to vector<8x256xbf16>
    %c64_237 = arith.constant 64 : index
    %c256_238 = arith.constant 256 : index
    %259 = vector.load %arg19[%c64_237, %c256_238] : memref<72x512xbf16, #tpu.memory_space<vmem>>, vector<8x256xbf16>
    tpu.vector_store %arg19[%c64_237, %c256_238], %258 {strides = array<i32>} : memref<72x512xbf16, #tpu.memory_space<vmem>>, vector<8x256xbf16>,
    %c0_239 = arith.constant 0 : index
    %c0_240 = arith.constant 0 : index
    %260 = vector.load %arg19[%c0_239, %c0_240] : memref<72x512xbf16, #tpu.memory_space<vmem>>, vector<72x512xbf16>
    %c0_241 = arith.constant 0 : index
    %c0_242 = arith.constant 0 : index
    %261 = vector.load %arg11[%c0_241, %c0_242] : memref<8x72xbf16, #tpu.memory_space<vmem>>, vector<8x72xbf16>
    %cst_243 = arith.constant dense<0.000000e+00> : vector<8x512xf32>
    %262 = tpu.matmul %261, %260, %cst_243 {dimension_numbers = #tpu.dot_dimension_numbers<[1], [0], [0], [1], [0, 0, 1, 1], [], []>} : vector<8x72xbf16>, vector<72x512xbf16>, vector<8x512xf32> -> vector<8x512xf32>
    %c0_244 = arith.constant 0 : index
    %c0_245 = arith.constant 0 : index
    %263 = vector.load %arg12[%c0_244, %c0_245] : memref<8x1xf32, #tpu.memory_space<vmem>>, vector<8x1xf32>
    %264 = vector.broadcast %263 : vector<8x1xf32> to vector<8x512xf32>
    %265 = arith.addf %262, %264 : vector<8x512xf32>
    %cst_246 = arith.constant 0.000000e+00 : f32
    %266 = vector.broadcast %cst_246 : f32 to vector<8x512xf32>
    %267 = arith.maximumf %265, %266 : vector<8x512xf32>
    %268 = vector.extract_strided_slice %267 {offsets = [0, 0], sizes = [8, 256], strides = [1, 1]} : vector<8x512xf32> to vector<8x256xf32>
    %c0_247 = arith.constant 0 : index
    %c34_248 = arith.constant 34 : index
    %269 = vector.load %arg18[%c0_247, %c34_248] : memref<8x648xf32, #tpu.memory_space<vmem>>, vector<8x256xf32>
    tpu.vector_store %arg18[%c0_247, %c34_248], %268 {strides = array<i32>} : memref<8x648xf32, #tpu.memory_space<vmem>>, vector<8x256xf32>,
    %270 = vector.extract_strided_slice %267 {offsets = [0, 256], sizes = [8, 256], strides = [1, 1]} : vector<8x512xf32> to vector<8x256xf32>
    %c0_249 = arith.constant 0 : index
    %c358_250 = arith.constant 358 : index
    %271 = vector.load %arg18[%c0_249, %c358_250] : memref<8x648xf32, #tpu.memory_space<vmem>>, vector<8x256xf32>
    tpu.vector_store %arg18[%c0_249, %c358_250], %270 {strides = array<i32>} : memref<8x648xf32, #tpu.memory_space<vmem>>, vector<8x256xf32>,
    %c0_251 = arith.constant 0 : index
    %c0_252 = arith.constant 0 : index
    %272 = vector.load %arg18[%c0_251, %c0_252] : memref<8x648xf32, #tpu.memory_space<vmem>>, vector<8x256xf32>
    %273 = arith.mulf %272, %13 : vector<8x256xf32>
    %274 = arith.truncf %273 : vector<8x256xf32> to vector<8x256xbf16>
    %c0_253 = arith.constant 0 : index
    %c0_254 = arith.constant 0 : index
    %275 = vector.load %arg19[%c0_253, %c0_254] : memref<72x512xbf16, #tpu.memory_space<vmem>>, vector<8x256xbf16>
    tpu.vector_store %arg19[%c0_253, %c0_254], %274 {strides = array<i32>} : memref<72x512xbf16, #tpu.memory_space<vmem>>, vector<8x256xbf16>,
    %c0_255 = arith.constant 0 : index
    %c324_256 = arith.constant 324 : index
    %276 = vector.load %arg18[%c0_255, %c324_256] : memref<8x648xf32, #tpu.memory_space<vmem>>, vector<8x256xf32>
    %277 = arith.mulf %276, %13 : vector<8x256xf32>
    %278 = arith.truncf %277 : vector<8x256xf32> to vector<8x256xbf16>
    %c0_257 = arith.constant 0 : index
    %c256_258 = arith.constant 256 : index
    %279 = vector.load %arg19[%c0_257, %c256_258] : memref<72x512xbf16, #tpu.memory_space<vmem>>, vector<8x256xbf16>
    tpu.vector_store %arg19[%c0_257, %c256_258], %278 {strides = array<i32>} : memref<72x512xbf16, #tpu.memory_space<vmem>>, vector<8x256xbf16>,
    %c0_259 = arith.constant 0 : index
    %c2_260 = arith.constant 2 : index
    %280 = vector.load %arg18[%c0_259, %c2_260] : memref<8x648xf32, #tpu.memory_space<vmem>>, vector<8x256xf32>
    %281 = arith.truncf %280 : vector<8x256xf32> to vector<8x256xbf16>
    %c8_261 = arith.constant 8 : index
    %c0_262 = arith.constant 0 : index
    %282 = vector.load %arg19[%c8_261, %c0_262] : memref<72x512xbf16, #tpu.memory_space<vmem>>, vector<8x256xbf16>
    tpu.vector_store %arg19[%c8_261, %c0_262], %281 {strides = array<i32>} : memref<72x512xbf16, #tpu.memory_space<vmem>>, vector<8x256xbf16>,
    %c0_263 = arith.constant 0 : index
    %c326 = arith.constant 326 : index
    %283 = vector.load %arg18[%c0_263, %c326] : memref<8x648xf32, #tpu.memory_space<vmem>>, vector<8x256xf32>
    %284 = arith.truncf %283 : vector<8x256xf32> to vector<8x256xbf16>
    %c8_264 = arith.constant 8 : index
    %c256_265 = arith.constant 256 : index
    %285 = vector.load %arg19[%c8_264, %c256_265] : memref<72x512xbf16, #tpu.memory_space<vmem>>, vector<8x256xbf16>
    tpu.vector_store %arg19[%c8_264, %c256_265], %284 {strides = array<i32>} : memref<72x512xbf16, #tpu.memory_space<vmem>>, vector<8x256xbf16>,
    %c0_266 = arith.constant 0 : index
    %c4 = arith.constant 4 : index
    %286 = vector.load %arg18[%c0_266, %c4] : memref<8x648xf32, #tpu.memory_space<vmem>>, vector<8x256xf32>
    %287 = arith.mulf %286, %16 : vector<8x256xf32>
    %288 = arith.truncf %287 : vector<8x256xf32> to vector<8x256xbf16>
    %c16_267 = arith.constant 16 : index
    %c0_268 = arith.constant 0 : index
    %289 = vector.load %arg19[%c16_267, %c0_268] : memref<72x512xbf16, #tpu.memory_space<vmem>>, vector<8x256xbf16>
    tpu.vector_store %arg19[%c16_267, %c0_268], %288 {strides = array<i32>} : memref<72x512xbf16, #tpu.memory_space<vmem>>, vector<8x256xbf16>,
    %c0_269 = arith.constant 0 : index
    %c328 = arith.constant 328 : index
    %290 = vector.load %arg18[%c0_269, %c328] : memref<8x648xf32, #tpu.memory_space<vmem>>, vector<8x256xf32>
    %291 = arith.mulf %290, %16 : vector<8x256xf32>
    %292 = arith.truncf %291 : vector<8x256xf32> to vector<8x256xbf16>
    %c16_270 = arith.constant 16 : index
    %c256_271 = arith.constant 256 : index
    %293 = vector.load %arg19[%c16_270, %c256_271] : memref<72x512xbf16, #tpu.memory_space<vmem>>, vector<8x256xbf16>
    tpu.vector_store %arg19[%c16_270, %c256_271], %292 {strides = array<i32>} : memref<72x512xbf16, #tpu.memory_space<vmem>>, vector<8x256xbf16>,
    %c0_272 = arith.constant 0 : index
    %c32_273 = arith.constant 32 : index
    %294 = vector.load %arg18[%c0_272, %c32_273] : memref<8x648xf32, #tpu.memory_space<vmem>>, vector<8x256xf32>
    %295 = arith.mulf %294, %13 : vector<8x256xf32>
    %296 = arith.truncf %295 : vector<8x256xf32> to vector<8x256xbf16>
    %c24_274 = arith.constant 24 : index
    %c0_275 = arith.constant 0 : index
    %297 = vector.load %arg19[%c24_274, %c0_275] : memref<72x512xbf16, #tpu.memory_space<vmem>>, vector<8x256xbf16>
    tpu.vector_store %arg19[%c24_274, %c0_275], %296 {strides = array<i32>} : memref<72x512xbf16, #tpu.memory_space<vmem>>, vector<8x256xbf16>,
    %c0_276 = arith.constant 0 : index
    %c356 = arith.constant 356 : index
    %298 = vector.load %arg18[%c0_276, %c356] : memref<8x648xf32, #tpu.memory_space<vmem>>, vector<8x256xf32>
    %299 = arith.mulf %298, %13 : vector<8x256xf32>
    %300 = arith.truncf %299 : vector<8x256xf32> to vector<8x256xbf16>
    %c24_277 = arith.constant 24 : index
    %c256_278 = arith.constant 256 : index
    %301 = vector.load %arg19[%c24_277, %c256_278] : memref<72x512xbf16, #tpu.memory_space<vmem>>, vector<8x256xbf16>
    tpu.vector_store %arg19[%c24_277, %c256_278], %300 {strides = array<i32>} : memref<72x512xbf16, #tpu.memory_space<vmem>>, vector<8x256xbf16>,
    %c0_279 = arith.constant 0 : index
    %c34_280 = arith.constant 34 : index
    %302 = vector.load %arg18[%c0_279, %c34_280] : memref<8x648xf32, #tpu.memory_space<vmem>>, vector<8x256xf32>
    %303 = arith.truncf %302 : vector<8x256xf32> to vector<8x256xbf16>
    %c32_281 = arith.constant 32 : index
    %c0_282 = arith.constant 0 : index
    %304 = vector.load %arg19[%c32_281, %c0_282] : memref<72x512xbf16, #tpu.memory_space<vmem>>, vector<8x256xbf16>
    tpu.vector_store %arg19[%c32_281, %c0_282], %303 {strides = array<i32>} : memref<72x512xbf16, #tpu.memory_space<vmem>>, vector<8x256xbf16>,
    %c0_283 = arith.constant 0 : index
    %c358_284 = arith.constant 358 : index
    %305 = vector.load %arg18[%c0_283, %c358_284] : memref<8x648xf32, #tpu.memory_space<vmem>>, vector<8x256xf32>
    %306 = arith.truncf %305 : vector<8x256xf32> to vector<8x256xbf16>
    %c32_285 = arith.constant 32 : index
    %c256_286 = arith.constant 256 : index
    %307 = vector.load %arg19[%c32_285, %c256_286] : memref<72x512xbf16, #tpu.memory_space<vmem>>, vector<8x256xbf16>
    tpu.vector_store %arg19[%c32_285, %c256_286], %306 {strides = array<i32>} : memref<72x512xbf16, #tpu.memory_space<vmem>>, vector<8x256xbf16>,
    %c0_287 = arith.constant 0 : index
    %c36 = arith.constant 36 : index
    %308 = vector.load %arg18[%c0_287, %c36] : memref<8x648xf32, #tpu.memory_space<vmem>>, vector<8x256xf32>
    %309 = arith.mulf %308, %16 : vector<8x256xf32>
    %310 = arith.truncf %309 : vector<8x256xf32> to vector<8x256xbf16>
    %c40_288 = arith.constant 40 : index
    %c0_289 = arith.constant 0 : index
    %311 = vector.load %arg19[%c40_288, %c0_289] : memref<72x512xbf16, #tpu.memory_space<vmem>>, vector<8x256xbf16>
    tpu.vector_store %arg19[%c40_288, %c0_289], %310 {strides = array<i32>} : memref<72x512xbf16, #tpu.memory_space<vmem>>, vector<8x256xbf16>,
    %c0_290 = arith.constant 0 : index
    %c360 = arith.constant 360 : index
    %312 = vector.load %arg18[%c0_290, %c360] : memref<8x648xf32, #tpu.memory_space<vmem>>, vector<8x256xf32>
    %313 = arith.mulf %312, %16 : vector<8x256xf32>
    %314 = arith.truncf %313 : vector<8x256xf32> to vector<8x256xbf16>
    %c40_291 = arith.constant 40 : index
    %c256_292 = arith.constant 256 : index
    %315 = vector.load %arg19[%c40_291, %c256_292] : memref<72x512xbf16, #tpu.memory_space<vmem>>, vector<8x256xbf16>
    tpu.vector_store %arg19[%c40_291, %c256_292], %314 {strides = array<i32>} : memref<72x512xbf16, #tpu.memory_space<vmem>>, vector<8x256xbf16>,
    %c0_293 = arith.constant 0 : index
    %c64_294 = arith.constant 64 : index
    %316 = vector.load %arg18[%c0_293, %c64_294] : memref<8x648xf32, #tpu.memory_space<vmem>>, vector<8x256xf32>
    %317 = arith.mulf %316, %13 : vector<8x256xf32>
    %318 = arith.truncf %317 : vector<8x256xf32> to vector<8x256xbf16>
    %c48_295 = arith.constant 48 : index
    %c0_296 = arith.constant 0 : index
    %319 = vector.load %arg19[%c48_295, %c0_296] : memref<72x512xbf16, #tpu.memory_space<vmem>>, vector<8x256xbf16>
    tpu.vector_store %arg19[%c48_295, %c0_296], %318 {strides = array<i32>} : memref<72x512xbf16, #tpu.memory_space<vmem>>, vector<8x256xbf16>,
    %c0_297 = arith.constant 0 : index
    %c388 = arith.constant 388 : index
    %320 = vector.load %arg18[%c0_297, %c388] : memref<8x648xf32, #tpu.memory_space<vmem>>, vector<8x256xf32>
    %321 = arith.mulf %320, %13 : vector<8x256xf32>
    %322 = arith.truncf %321 : vector<8x256xf32> to vector<8x256xbf16>
    %c48_298 = arith.constant 48 : index
    %c256_299 = arith.constant 256 : index
    %323 = vector.load %arg19[%c48_298, %c256_299] : memref<72x512xbf16, #tpu.memory_space<vmem>>, vector<8x256xbf16>
    tpu.vector_store %arg19[%c48_298, %c256_299], %322 {strides = array<i32>} : memref<72x512xbf16, #tpu.memory_space<vmem>>, vector<8x256xbf16>,
    %c0_300 = arith.constant 0 : index
    %c66 = arith.constant 66 : index
    %324 = vector.load %arg18[%c0_300, %c66] : memref<8x648xf32, #tpu.memory_space<vmem>>, vector<8x256xf32>
    %325 = arith.truncf %324 : vector<8x256xf32> to vector<8x256xbf16>
    %c56_301 = arith.constant 56 : index
    %c0_302 = arith.constant 0 : index
    %326 = vector.load %arg19[%c56_301, %c0_302] : memref<72x512xbf16, #tpu.memory_space<vmem>>, vector<8x256xbf16>
    tpu.vector_store %arg19[%c56_301, %c0_302], %325 {strides = array<i32>} : memref<72x512xbf16, #tpu.memory_space<vmem>>, vector<8x256xbf16>,
    %c0_303 = arith.constant 0 : index
    %c390 = arith.constant 390 : index
    %327 = vector.load %arg18[%c0_303, %c390] : memref<8x648xf32, #tpu.memory_space<vmem>>, vector<8x256xf32>
    %328 = arith.truncf %327 : vector<8x256xf32> to vector<8x256xbf16>
    %c56_304 = arith.constant 56 : index
    %c256_305 = arith.constant 256 : index
    %329 = vector.load %arg19[%c56_304, %c256_305] : memref<72x512xbf16, #tpu.memory_space<vmem>>, vector<8x256xbf16>
    tpu.vector_store %arg19[%c56_304, %c256_305], %328 {strides = array<i32>} : memref<72x512xbf16, #tpu.memory_space<vmem>>, vector<8x256xbf16>,
    %c0_306 = arith.constant 0 : index
    %c68 = arith.constant 68 : index
    %330 = vector.load %arg18[%c0_306, %c68] : memref<8x648xf32, #tpu.memory_space<vmem>>, vector<8x256xf32>
    %331 = arith.mulf %330, %16 : vector<8x256xf32>
    %332 = arith.truncf %331 : vector<8x256xf32> to vector<8x256xbf16>
    %c64_307 = arith.constant 64 : index
    %c0_308 = arith.constant 0 : index
    %333 = vector.load %arg19[%c64_307, %c0_308] : memref<72x512xbf16, #tpu.memory_space<vmem>>, vector<8x256xbf16>
    tpu.vector_store %arg19[%c64_307, %c0_308], %332 {strides = array<i32>} : memref<72x512xbf16, #tpu.memory_space<vmem>>, vector<8x256xbf16>,
    %c0_309 = arith.constant 0 : index
    %c392 = arith.constant 392 : index
    %334 = vector.load %arg18[%c0_309, %c392] : memref<8x648xf32, #tpu.memory_space<vmem>>, vector<8x256xf32>
    %335 = arith.mulf %334, %16 : vector<8x256xf32>
    %336 = arith.truncf %335 : vector<8x256xf32> to vector<8x256xbf16>
    %c64_310 = arith.constant 64 : index
    %c256_311 = arith.constant 256 : index
    %337 = vector.load %arg19[%c64_310, %c256_311] : memref<72x512xbf16, #tpu.memory_space<vmem>>, vector<8x256xbf16>
    tpu.vector_store %arg19[%c64_310, %c256_311], %336 {strides = array<i32>} : memref<72x512xbf16, #tpu.memory_space<vmem>>, vector<8x256xbf16>,
    %c0_312 = arith.constant 0 : index
    %c0_313 = arith.constant 0 : index
    %338 = vector.load %arg19[%c0_312, %c0_313] : memref<72x512xbf16, #tpu.memory_space<vmem>>, vector<72x512xbf16>
    %c0_314 = arith.constant 0 : index
    %c0_315 = arith.constant 0 : index
    %339 = vector.load %arg13[%c0_314, %c0_315] : memref<8x72xbf16, #tpu.memory_space<vmem>>, vector<8x72xbf16>
    %cst_316 = arith.constant dense<0.000000e+00> : vector<8x512xf32>
    %340 = tpu.matmul %339, %338, %cst_316 {dimension_numbers = #tpu.dot_dimension_numbers<[1], [0], [0], [1], [0, 0, 1, 1], [], []>} : vector<8x72xbf16>, vector<72x512xbf16>, vector<8x512xf32> -> vector<8x512xf32>
    %c0_317 = arith.constant 0 : index
    %c0_318 = arith.constant 0 : index
    %341 = vector.load %arg14[%c0_317, %c0_318] : memref<8x1xf32, #tpu.memory_space<vmem>>, vector<8x1xf32>
    %342 = vector.broadcast %341 : vector<8x1xf32> to vector<8x512xf32>
    %343 = arith.addf %340, %342 : vector<8x512xf32>
    %cst_319 = arith.constant 0.000000e+00 : f32
    %344 = vector.broadcast %cst_319 : f32 to vector<8x512xf32>
    %345 = arith.maximumf %343, %344 : vector<8x512xf32>
    %346 = vector.extract_strided_slice %345 {offsets = [0, 0], sizes = [8, 256], strides = [1, 1]} : vector<8x512xf32> to vector<8x256xf32>
    %c0_320 = arith.constant 0 : index
    %c34_321 = arith.constant 34 : index
    %347 = vector.load %arg18[%c0_320, %c34_321] : memref<8x648xf32, #tpu.memory_space<vmem>>, vector<8x256xf32>
    tpu.vector_store %arg18[%c0_320, %c34_321], %346 {strides = array<i32>} : memref<8x648xf32, #tpu.memory_space<vmem>>, vector<8x256xf32>,
    %348 = vector.extract_strided_slice %345 {offsets = [0, 256], sizes = [8, 256], strides = [1, 1]} : vector<8x512xf32> to vector<8x256xf32>
    %c0_322 = arith.constant 0 : index
    %c358_323 = arith.constant 358 : index
    %349 = vector.load %arg18[%c0_322, %c358_323] : memref<8x648xf32, #tpu.memory_space<vmem>>, vector<8x256xf32>
    tpu.vector_store %arg18[%c0_322, %c358_323], %348 {strides = array<i32>} : memref<8x648xf32, #tpu.memory_space<vmem>>, vector<8x256xf32>,
    %c0_324 = arith.constant 0 : index
    %c17_325 = arith.constant 17 : index
    %350 = vector.load %arg18[%c0_324, %c17_325] : memref<8x648xf32, #tpu.memory_space<vmem>>, vector<8x256xf32>
    %351 = arith.mulf %350, %7 : vector<8x256xf32>
    %352 = arith.truncf %351 : vector<8x256xf32> to vector<8x256xbf16>
    %c0_326 = arith.constant 0 : index
    %c0_327 = arith.constant 0 : index
    %353 = vector.load %arg19[%c0_326, %c0_327] : memref<72x512xbf16, #tpu.memory_space<vmem>>, vector<8x256xbf16>
    tpu.vector_store %arg19[%c0_326, %c0_327], %352 {strides = array<i32>} : memref<72x512xbf16, #tpu.memory_space<vmem>>, vector<8x256xbf16>,
    %c0_328 = arith.constant 0 : index
    %c341_329 = arith.constant 341 : index
    %354 = vector.load %arg18[%c0_328, %c341_329] : memref<8x648xf32, #tpu.memory_space<vmem>>, vector<8x256xf32>
    %355 = arith.mulf %354, %7 : vector<8x256xf32>
    %356 = arith.truncf %355 : vector<8x256xf32> to vector<8x256xbf16>
    %c0_330 = arith.constant 0 : index
    %c256_331 = arith.constant 256 : index
    %357 = vector.load %arg19[%c0_330, %c256_331] : memref<72x512xbf16, #tpu.memory_space<vmem>>, vector<8x256xbf16>
    tpu.vector_store %arg19[%c0_330, %c256_331], %356 {strides = array<i32>} : memref<72x512xbf16, #tpu.memory_space<vmem>>, vector<8x256xbf16>,
    %c0_332 = arith.constant 0 : index
    %c18_333 = arith.constant 18 : index
    %358 = vector.load %arg18[%c0_332, %c18_333] : memref<8x648xf32, #tpu.memory_space<vmem>>, vector<8x256xf32>
    %359 = arith.truncf %358 : vector<8x256xf32> to vector<8x256xbf16>
    %c8_334 = arith.constant 8 : index
    %c0_335 = arith.constant 0 : index
    %360 = vector.load %arg19[%c8_334, %c0_335] : memref<72x512xbf16, #tpu.memory_space<vmem>>, vector<8x256xbf16>
    tpu.vector_store %arg19[%c8_334, %c0_335], %359 {strides = array<i32>} : memref<72x512xbf16, #tpu.memory_space<vmem>>, vector<8x256xbf16>,
    %c0_336 = arith.constant 0 : index
    %c342_337 = arith.constant 342 : index
    %361 = vector.load %arg18[%c0_336, %c342_337] : memref<8x648xf32, #tpu.memory_space<vmem>>, vector<8x256xf32>
    %362 = arith.truncf %361 : vector<8x256xf32> to vector<8x256xbf16>
    %c8_338 = arith.constant 8 : index
    %c256_339 = arith.constant 256 : index
    %363 = vector.load %arg19[%c8_338, %c256_339] : memref<72x512xbf16, #tpu.memory_space<vmem>>, vector<8x256xbf16>
    tpu.vector_store %arg19[%c8_338, %c256_339], %362 {strides = array<i32>} : memref<72x512xbf16, #tpu.memory_space<vmem>>, vector<8x256xbf16>,
    %c0_340 = arith.constant 0 : index
    %c19_341 = arith.constant 19 : index
    %364 = vector.load %arg18[%c0_340, %c19_341] : memref<8x648xf32, #tpu.memory_space<vmem>>, vector<8x256xf32>
    %365 = arith.mulf %364, %10 : vector<8x256xf32>
    %366 = arith.truncf %365 : vector<8x256xf32> to vector<8x256xbf16>
    %c16_342 = arith.constant 16 : index
    %c0_343 = arith.constant 0 : index
    %367 = vector.load %arg19[%c16_342, %c0_343] : memref<72x512xbf16, #tpu.memory_space<vmem>>, vector<8x256xbf16>
    tpu.vector_store %arg19[%c16_342, %c0_343], %366 {strides = array<i32>} : memref<72x512xbf16, #tpu.memory_space<vmem>>, vector<8x256xbf16>,
    %c0_344 = arith.constant 0 : index
    %c343_345 = arith.constant 343 : index
    %368 = vector.load %arg18[%c0_344, %c343_345] : memref<8x648xf32, #tpu.memory_space<vmem>>, vector<8x256xf32>
    %369 = arith.mulf %368, %10 : vector<8x256xf32>
    %370 = arith.truncf %369 : vector<8x256xf32> to vector<8x256xbf16>
    %c16_346 = arith.constant 16 : index
    %c256_347 = arith.constant 256 : index
    %371 = vector.load %arg19[%c16_346, %c256_347] : memref<72x512xbf16, #tpu.memory_space<vmem>>, vector<8x256xbf16>
    tpu.vector_store %arg19[%c16_346, %c256_347], %370 {strides = array<i32>} : memref<72x512xbf16, #tpu.memory_space<vmem>>, vector<8x256xbf16>,
    %c0_348 = arith.constant 0 : index
    %c33_349 = arith.constant 33 : index
    %372 = vector.load %arg18[%c0_348, %c33_349] : memref<8x648xf32, #tpu.memory_space<vmem>>, vector<8x256xf32>
    %373 = arith.mulf %372, %7 : vector<8x256xf32>
    %374 = arith.truncf %373 : vector<8x256xf32> to vector<8x256xbf16>
    %c24_350 = arith.constant 24 : index
    %c0_351 = arith.constant 0 : index
    %375 = vector.load %arg19[%c24_350, %c0_351] : memref<72x512xbf16, #tpu.memory_space<vmem>>, vector<8x256xbf16>
    tpu.vector_store %arg19[%c24_350, %c0_351], %374 {strides = array<i32>} : memref<72x512xbf16, #tpu.memory_space<vmem>>, vector<8x256xbf16>,
    %c0_352 = arith.constant 0 : index
    %c357_353 = arith.constant 357 : index
    %376 = vector.load %arg18[%c0_352, %c357_353] : memref<8x648xf32, #tpu.memory_space<vmem>>, vector<8x256xf32>
    %377 = arith.mulf %376, %7 : vector<8x256xf32>
    %378 = arith.truncf %377 : vector<8x256xf32> to vector<8x256xbf16>
    %c24_354 = arith.constant 24 : index
    %c256_355 = arith.constant 256 : index
    %379 = vector.load %arg19[%c24_354, %c256_355] : memref<72x512xbf16, #tpu.memory_space<vmem>>, vector<8x256xbf16>
    tpu.vector_store %arg19[%c24_354, %c256_355], %378 {strides = array<i32>} : memref<72x512xbf16, #tpu.memory_space<vmem>>, vector<8x256xbf16>,
    %c0_356 = arith.constant 0 : index
    %c34_357 = arith.constant 34 : index
    %380 = vector.load %arg18[%c0_356, %c34_357] : memref<8x648xf32, #tpu.memory_space<vmem>>, vector<8x256xf32>
    %381 = arith.truncf %380 : vector<8x256xf32> to vector<8x256xbf16>
    %c32_358 = arith.constant 32 : index
    %c0_359 = arith.constant 0 : index
    %382 = vector.load %arg19[%c32_358, %c0_359] : memref<72x512xbf16, #tpu.memory_space<vmem>>, vector<8x256xbf16>
    tpu.vector_store %arg19[%c32_358, %c0_359], %381 {strides = array<i32>} : memref<72x512xbf16, #tpu.memory_space<vmem>>, vector<8x256xbf16>,
    %c0_360 = arith.constant 0 : index
    %c358_361 = arith.constant 358 : index
    %383 = vector.load %arg18[%c0_360, %c358_361] : memref<8x648xf32, #tpu.memory_space<vmem>>, vector<8x256xf32>
    %384 = arith.truncf %383 : vector<8x256xf32> to vector<8x256xbf16>
    %c32_362 = arith.constant 32 : index
    %c256_363 = arith.constant 256 : index
    %385 = vector.load %arg19[%c32_362, %c256_363] : memref<72x512xbf16, #tpu.memory_space<vmem>>, vector<8x256xbf16>
    tpu.vector_store %arg19[%c32_362, %c256_363], %384 {strides = array<i32>} : memref<72x512xbf16, #tpu.memory_space<vmem>>, vector<8x256xbf16>,
    %c0_364 = arith.constant 0 : index
    %c35_365 = arith.constant 35 : index
    %386 = vector.load %arg18[%c0_364, %c35_365] : memref<8x648xf32, #tpu.memory_space<vmem>>, vector<8x256xf32>
    %387 = arith.mulf %386, %10 : vector<8x256xf32>
    %388 = arith.truncf %387 : vector<8x256xf32> to vector<8x256xbf16>
    %c40_366 = arith.constant 40 : index
    %c0_367 = arith.constant 0 : index
    %389 = vector.load %arg19[%c40_366, %c0_367] : memref<72x512xbf16, #tpu.memory_space<vmem>>, vector<8x256xbf16>
    tpu.vector_store %arg19[%c40_366, %c0_367], %388 {strides = array<i32>} : memref<72x512xbf16, #tpu.memory_space<vmem>>, vector<8x256xbf16>,
    %c0_368 = arith.constant 0 : index
    %c359_369 = arith.constant 359 : index
    %390 = vector.load %arg18[%c0_368, %c359_369] : memref<8x648xf32, #tpu.memory_space<vmem>>, vector<8x256xf32>
    %391 = arith.mulf %390, %10 : vector<8x256xf32>
    %392 = arith.truncf %391 : vector<8x256xf32> to vector<8x256xbf16>
    %c40_370 = arith.constant 40 : index
    %c256_371 = arith.constant 256 : index
    %393 = vector.load %arg19[%c40_370, %c256_371] : memref<72x512xbf16, #tpu.memory_space<vmem>>, vector<8x256xbf16>
    tpu.vector_store %arg19[%c40_370, %c256_371], %392 {strides = array<i32>} : memref<72x512xbf16, #tpu.memory_space<vmem>>, vector<8x256xbf16>,
    %c0_372 = arith.constant 0 : index
    %c49_373 = arith.constant 49 : index
    %394 = vector.load %arg18[%c0_372, %c49_373] : memref<8x648xf32, #tpu.memory_space<vmem>>, vector<8x256xf32>
    %395 = arith.mulf %394, %7 : vector<8x256xf32>
    %396 = arith.truncf %395 : vector<8x256xf32> to vector<8x256xbf16>
    %c48_374 = arith.constant 48 : index
    %c0_375 = arith.constant 0 : index
    %397 = vector.load %arg19[%c48_374, %c0_375] : memref<72x512xbf16, #tpu.memory_space<vmem>>, vector<8x256xbf16>
    tpu.vector_store %arg19[%c48_374, %c0_375], %396 {strides = array<i32>} : memref<72x512xbf16, #tpu.memory_space<vmem>>, vector<8x256xbf16>,
    %c0_376 = arith.constant 0 : index
    %c373_377 = arith.constant 373 : index
    %398 = vector.load %arg18[%c0_376, %c373_377] : memref<8x648xf32, #tpu.memory_space<vmem>>, vector<8x256xf32>
    %399 = arith.mulf %398, %7 : vector<8x256xf32>
    %400 = arith.truncf %399 : vector<8x256xf32> to vector<8x256xbf16>
    %c48_378 = arith.constant 48 : index
    %c256_379 = arith.constant 256 : index
    %401 = vector.load %arg19[%c48_378, %c256_379] : memref<72x512xbf16, #tpu.memory_space<vmem>>, vector<8x256xbf16>
    tpu.vector_store %arg19[%c48_378, %c256_379], %400 {strides = array<i32>} : memref<72x512xbf16, #tpu.memory_space<vmem>>, vector<8x256xbf16>,
    %c0_380 = arith.constant 0 : index
    %c50_381 = arith.constant 50 : index
    %402 = vector.load %arg18[%c0_380, %c50_381] : memref<8x648xf32, #tpu.memory_space<vmem>>, vector<8x256xf32>
    %403 = arith.truncf %402 : vector<8x256xf32> to vector<8x256xbf16>
    %c56_382 = arith.constant 56 : index
    %c0_383 = arith.constant 0 : index
    %404 = vector.load %arg19[%c56_382, %c0_383] : memref<72x512xbf16, #tpu.memory_space<vmem>>, vector<8x256xbf16>
    tpu.vector_store %arg19[%c56_382, %c0_383], %403 {strides = array<i32>} : memref<72x512xbf16, #tpu.memory_space<vmem>>, vector<8x256xbf16>,
    %c0_384 = arith.constant 0 : index
    %c374_385 = arith.constant 374 : index
    %405 = vector.load %arg18[%c0_384, %c374_385] : memref<8x648xf32, #tpu.memory_space<vmem>>, vector<8x256xf32>
    %406 = arith.truncf %405 : vector<8x256xf32> to vector<8x256xbf16>
    %c56_386 = arith.constant 56 : index
    %c256_387 = arith.constant 256 : index
    %407 = vector.load %arg19[%c56_386, %c256_387] : memref<72x512xbf16, #tpu.memory_space<vmem>>, vector<8x256xbf16>
    tpu.vector_store %arg19[%c56_386, %c256_387], %406 {strides = array<i32>} : memref<72x512xbf16, #tpu.memory_space<vmem>>, vector<8x256xbf16>,
    %c0_388 = arith.constant 0 : index
    %c51_389 = arith.constant 51 : index
    %408 = vector.load %arg18[%c0_388, %c51_389] : memref<8x648xf32, #tpu.memory_space<vmem>>, vector<8x256xf32>
    %409 = arith.mulf %408, %10 : vector<8x256xf32>
    %410 = arith.truncf %409 : vector<8x256xf32> to vector<8x256xbf16>
    %c64_390 = arith.constant 64 : index
    %c0_391 = arith.constant 0 : index
    %411 = vector.load %arg19[%c64_390, %c0_391] : memref<72x512xbf16, #tpu.memory_space<vmem>>, vector<8x256xbf16>
    tpu.vector_store %arg19[%c64_390, %c0_391], %410 {strides = array<i32>} : memref<72x512xbf16, #tpu.memory_space<vmem>>, vector<8x256xbf16>,
    %c0_392 = arith.constant 0 : index
    %c375_393 = arith.constant 375 : index
    %412 = vector.load %arg18[%c0_392, %c375_393] : memref<8x648xf32, #tpu.memory_space<vmem>>, vector<8x256xf32>
    %413 = arith.mulf %412, %10 : vector<8x256xf32>
    %414 = arith.truncf %413 : vector<8x256xf32> to vector<8x256xbf16>
    %c64_394 = arith.constant 64 : index
    %c256_395 = arith.constant 256 : index
    %415 = vector.load %arg19[%c64_394, %c256_395] : memref<72x512xbf16, #tpu.memory_space<vmem>>, vector<8x256xbf16>
    tpu.vector_store %arg19[%c64_394, %c256_395], %414 {strides = array<i32>} : memref<72x512xbf16, #tpu.memory_space<vmem>>, vector<8x256xbf16>,
    %c0_396 = arith.constant 0 : index
    %c0_397 = arith.constant 0 : index
    %416 = vector.load %arg19[%c0_396, %c0_397] : memref<72x512xbf16, #tpu.memory_space<vmem>>, vector<72x512xbf16>
    %c0_398 = arith.constant 0 : index
    %c0_399 = arith.constant 0 : index
    %417 = vector.load %arg15[%c0_398, %c0_399] : memref<6x72xbf16, #tpu.memory_space<vmem>>, vector<6x72xbf16>
    %cst_400 = arith.constant dense<0.000000e+00> : vector<6x512xf32>
    %418 = tpu.matmul %417, %416, %cst_400 {dimension_numbers = #tpu.dot_dimension_numbers<[1], [0], [0], [1], [0, 0, 1, 1], [], []>} : vector<6x72xbf16>, vector<72x512xbf16>, vector<6x512xf32> -> vector<6x512xf32>
    %c0_401 = arith.constant 0 : index
    %c0_402 = arith.constant 0 : index
    %419 = vector.load %arg16[%c0_401, %c0_402] : memref<6x1xf32, #tpu.memory_space<vmem>>, vector<6x1xf32>
    %420 = vector.broadcast %419 : vector<6x1xf32> to vector<6x512xf32>
    %421 = arith.addf %418, %420 : vector<6x512xf32>
    %c0_403 = arith.constant 0 : index
    %c0_404 = arith.constant 0 : index
    %422 = vector.load %arg17[%c0_403, %c0_404] : memref<6x512xf32, #tpu.memory_space<vmem>>, vector<6x512xf32>
    tpu.vector_store %arg17[%c0_403, %c0_404], %421 {strides = array<i32>} : memref<6x512xf32, #tpu.memory_space<vmem>>, vector<6x512xf32>,
    return
  }
  func.func @transform_0(%arg0: i32) -> (i32, i32) {
    %c0_i32 = arith.constant 0 : i32
    %c0_i32_0 = arith.constant 0 : i32
    return %c0_i32, %arg0 : i32, i32
  }
  func.func @transform_1(%arg0: i32) -> (i32, i32) {
    %c0_i32 = arith.constant 0 : i32
    %c0_i32_0 = arith.constant 0 : i32
    %c0_i32_1 = arith.constant 0 : i32
    return %c0_i32, %c0_i32_0 : i32, i32
  }
  func.func @transform_2(%arg0: i32) -> (i32, i32) {
    %c0_i32 = arith.constant 0 : i32
    %c0_i32_0 = arith.constant 0 : i32
    %c0_i32_1 = arith.constant 0 : i32
    return %c0_i32, %c0_i32_0 : i32, i32
  }
  func.func @transform_3(%arg0: i32) -> (i32, i32) {
    %c0_i32 = arith.constant 0 : i32
    %c0_i32_0 = arith.constant 0 : i32
    %c0_i32_1 = arith.constant 0 : i32
    return %c0_i32, %c0_i32_0 : i32, i32
  }
  func.func @transform_4(%arg0: i32) -> (i32, i32) {
    %c0_i32 = arith.constant 0 : i32
    %c0_i32_0 = arith.constant 0 : i32
    %c0_i32_1 = arith.constant 0 : i32
    return %c0_i32, %c0_i32_0 : i32, i32
  }
  func.func @transform_5(%arg0: i32) -> (i32, i32) {
    %c0_i32 = arith.constant 0 : i32
    %c0_i32_0 = arith.constant 0 : i32
    %c0_i32_1 = arith.constant 0 : i32
    return %c0_i32, %c0_i32_0 : i32, i32
  }
  func.func @transform_6(%arg0: i32) -> (i32, i32) {
    %c0_i32 = arith.constant 0 : i32
    %c0_i32_0 = arith.constant 0 : i32
    %c0_i32_1 = arith.constant 0 : i32
    return %c0_i32, %c0_i32_0 : i32, i32
  }
  func.func @transform_7(%arg0: i32) -> (i32, i32) {
    %c0_i32 = arith.constant 0 : i32
    %c0_i32_0 = arith.constant 0 : i32
    %c0_i32_1 = arith.constant 0 : i32
    return %c0_i32, %c0_i32_0 : i32, i32
  }
  func.func @transform_8(%arg0: i32) -> (i32, i32) {
    %c0_i32 = arith.constant 0 : i32
    %c0_i32_0 = arith.constant 0 : i32
    %c0_i32_1 = arith.constant 0 : i32
    return %c0_i32, %c0_i32_0 : i32, i32
  }
  func.func @transform_9(%arg0: i32) -> (i32, i32) {
    %c0_i32 = arith.constant 0 : i32
    %c0_i32_0 = arith.constant 0 : i32
    %c0_i32_1 = arith.constant 0 : i32
    return %c0_i32, %c0_i32_0 : i32, i32
  }
  func.func @transform_10(%arg0: i32) -> (i32, i32) {
    %c0_i32 = arith.constant 0 : i32
    %c0_i32_0 = arith.constant 0 : i32
    %c0_i32_1 = arith.constant 0 : i32
    return %c0_i32, %c0_i32_0 : i32, i32
  }
  func.func @transform_11(%arg0: i32) -> (i32, i32) {
    %c0_i32 = arith.constant 0 : i32
    %c0_i32_0 = arith.constant 0 : i32
    %c0_i32_1 = arith.constant 0 : i32
    return %c0_i32, %c0_i32_0 : i32, i32
  }
  func.func @transform_12(%arg0: i32) -> (i32, i32) {
    %c0_i32 = arith.constant 0 : i32
    %c0_i32_0 = arith.constant 0 : i32
    %c0_i32_1 = arith.constant 0 : i32
    return %c0_i32, %c0_i32_0 : i32, i32
  }
  func.func @transform_13(%arg0: i32) -> (i32, i32) {
    %c0_i32 = arith.constant 0 : i32
    %c0_i32_0 = arith.constant 0 : i32
    %c0_i32_1 = arith.constant 0 : i32
    return %c0_i32, %c0_i32_0 : i32, i32
  }
  func.func @transform_14(%arg0: i32) -> (i32, i32) {
    %c0_i32 = arith.constant 0 : i32
    %c0_i32_0 = arith.constant 0 : i32
    %c0_i32_1 = arith.constant 0 : i32
    return %c0_i32, %c0_i32_0 : i32, i32
  }
  func.func @transform_15(%arg0: i32) -> (i32, i32) {
    %c0_i32 = arith.constant 0 : i32
    %c0_i32_0 = arith.constant 0 : i32
    %c0_i32_1 = arith.constant 0 : i32
    return %c0_i32, %c0_i32_0 : i32, i32
  }
  func.func @transform_16(%arg0: i32) -> (i32, i32) {
    %c0_i32 = arith.constant 0 : i32
    %c0_i32_0 = arith.constant 0 : i32
    return %c0_i32, %arg0 : i32, i32
  }
}

</mosaic_0001>

<llo_original>
// kernel: tpu_custom_call.1
$region0: #{tpu_custom_call.1}
  #allocation0 [shape = 'u32[]', space=smem, size = 0x4, offset = 0x4, fixed_abs, tag = 'smem constant byte address 0x4 - core index']
  #allocation1 [shape = 'u32[144,128]{1,0:T(1,128)}', space=vmem, size = 0x12000, scoped, tag = 'internal scratch']
  #allocation2 [shape = 'f32[8,648]{1,0:T(8,128)}', space=vmem, size = 0x6000, scoped, tag = 'scratch operand']
  #allocation3 [shape = 'bf16[72,512]{1,0:T(8,128)(2,1)}', space=vmem, size = 0x12000, scoped, tag = 'scratch operand']
  %s0 = inlined_call_operand.vmem [shape: f32[4,1024], index: 0, kind: input, shape index: {}]
  %s1 = inlined_call_operand.vmem [shape: f32[4,256], index: 1, kind: input, shape index: {}]
  %s2 = inlined_call_operand.vmem [shape: f32[4,1], index: 2, kind: input, shape index: {}]
  %s3 = inlined_call_operand.vmem [shape: f32[4,1], index: 3, kind: input, shape index: {}]
  %s4 = inlined_call_operand.vmem [shape: bf16[8,4], index: 4, kind: input, shape index: {}]
  %s5 = inlined_call_operand.vmem [shape: f32[8,1], index: 5, kind: input, shape index: {}]
  %s6 = inlined_call_operand.vmem [shape: bf16[8,72], index: 6, kind: input, shape index: {}]
  %s7 = inlined_call_operand.vmem [shape: f32[8,1], index: 7, kind: input, shape index: {}]
  %s8 = inlined_call_operand.vmem [shape: bf16[8,72], index: 8, kind: input, shape index: {}]
  %s9 = inlined_call_operand.vmem [shape: f32[8,1], index: 9, kind: input, shape index: {}]
  %s10 = inlined_call_operand.vmem [shape: bf16[8,72], index: 10, kind: input, shape index: {}]
  %s11 = inlined_call_operand.vmem [shape: f32[8,1], index: 11, kind: input, shape index: {}]
  %s12 = inlined_call_operand.vmem [shape: bf16[8,72], index: 12, kind: input, shape index: {}]
  %s13 = inlined_call_operand.vmem [shape: f32[8,1], index: 13, kind: input, shape index: {}]
  %s14 = inlined_call_operand.vmem [shape: bf16[6,72], index: 14, kind: input, shape index: {}]
  %s15 = inlined_call_operand.vmem [shape: f32[6,1], index: 15, kind: input, shape index: {}]
  %s16 = inlined_call_operand.hbm [shape: f32[6,1024], index: 16, kind: output, shape index: {}]
  %s17 = sld [smem:[#allocation0]]
  $region97: #{tpu_custom_call.1} parent=0
    _
  %s19 = ssub.s32 1, %s17
  %s20 = scalar_select 0, %s19, %s17
  $region1: #{tpu_custom_call.1} parent=0
    #allocation4 [shape = 'u8[32768]{0}', space=vmem, size = 0x8000, scoped, tag = 'output window, operand 0']
    #allocation5 [shape = 's32[2]{0}', space=sflag, size = 0x8, scoped, tag = 'scoped memory for tpu_custom_call.1']
    %21 = vsyncpa [#allocation5], 0
    %s22 = scalar_lea.sflag [#allocation5], 1
    %23 = vsyncpa %s22, 0
    loop: start=0, step=1, limit=4
    $region2: #{tpu_custom_call.1} parent=1 // loop_pre_header
      _
    $region3: #{tpu_custom_call.1} parent=1 // loop_header
      %s25 = sphi 0, %s29
      %p26 = scmp.ge.s32.totalorder %s25, 4
      %s35 = sphi 0, %s37
      %s38 = sphi 0, %s35
      %s39 = sphi 0, %s38
      %s55 = sphi 0, %s39
      %s59 = sphi 0, %s59
      %s61 = sphi 0, %s59
      %s62 = sphi 0, %s61
      %s76 = sphi 0, %s62
      %s80 = sphi 0, %s80
      %s82 = sphi 0, %s80
      %s83 = sphi 0, %s82
      %s97 = sphi 0, %s83
      %s101 = sphi 0, %s101
      %s103 = sphi 0, %s101
      %s104 = sphi 0, %s103
      %s118 = sphi 0, %s104
      %s122 = sphi 0, %s122
      %s124 = sphi 0, %s122
      %s125 = sphi 0, %s124
      %s139 = sphi 0, %s125
      %s143 = sphi 0, %s143
      %s145 = sphi 0, %s143
      %s146 = sphi 0, %s145
      %s160 = sphi 0, %s146
      %s164 = sphi 0, %s164
      %s166 = sphi 0, %s164
      %s167 = sphi 0, %s166
      %s181 = sphi 0, %s167
      %s185 = sphi 0, %s185
      %s187 = sphi 0, %s185
      %s188 = sphi 0, %s187
      %s202 = sphi 0, %s188
      %s206 = sphi 0, %s206
      %s208 = sphi 0, %s206
      %s209 = sphi 0, %s208
      %s223 = sphi 0, %s209
      %s227 = sphi 0, %s227
      %s229 = sphi 0, %s227
      %s230 = sphi 0, %s229
      %s244 = sphi 0, %s230
      %s248 = sphi 0, %s248
      %s250 = sphi 0, %s248
      %s251 = sphi 0, %s250
      %s265 = sphi 0, %s251
      %s269 = sphi 0, %s269
      %s271 = sphi 0, %s269
      %s272 = sphi 0, %s271
      %s286 = sphi 0, %s272
      %s290 = sphi 0, %s290
      %s292 = sphi 0, %s290
      %s293 = sphi 0, %s292
      %s307 = sphi 0, %s293
      %s311 = sphi 0, %s311
      %s313 = sphi 0, %s311
      %s314 = sphi 0, %s313
      %s328 = sphi 0, %s314
      %s332 = sphi 0, %s332
      %s334 = sphi 0, %s332
      %s335 = sphi 0, %s334
      %s349 = sphi 0, %s335
      %s353 = sphi 0, %s353
      %s355 = sphi 0, %s353
      %s356 = sphi 0, %s355
      %s370 = sphi 0, %s356
      %s376 = sphi 0, %s378
      %s379 = sphi 0, %s376
      %s380 = sphi 0, %s379
      %s396 = sphi 0, %s380
    $region4: #{tpu_custom_call.1} parent=1 // loop_header_branch
      %28 = sbr.rel (%p26) target = $region8
    $region5: #{tpu_custom_call.1} parent=1 // loop_body
      %s30 = ssub.s32 %s25, 1
      %s31 = ssub.s32 %s25, 2
      %s32 = sadd.s32 %s25, 1
      %s33 = ssub.s32 %s25, %s32
      %p34 = scmp.eq.s32.totalorder %s33, 0
      %s36 = sadd.s32 %s35, 1
      %s37 = scalar_select %p34, %s35, %s36
      %p40 = pneg %p34
      %p41 = scmp.eq.s32.totalorder %s25, 1
      %p42 = por %p40, %p41
      %p43 = scmp.ne.s32.totalorder %s35, %s38
      %p44 = scmp.eq.s32.totalorder %s25, 0
      %p45 = por %p43, %p44
      %p46 = scmp.ne.s32.totalorder %s35, %s38
      %p47 = scmp.eq.s32.totalorder %s30, 1
      %p48 = por %p46, %p47
      %p49 = scmp.ne.s32.totalorder %s38, %s39
      %p50 = scmp.eq.s32.totalorder %s30, 0
      %p51 = por %p49, %p50
      %p52 = scmp.ne.s32.totalorder %s38, %s39
      %p53 = scmp.eq.s32.totalorder %s31, 1
      %p54 = por %p52, %p53
      %p56 = scmp.ne.s32.totalorder %s39, %s55
      %p57 = scmp.eq.s32.totalorder %s31, 0
      %p58 = por %p56, %p57
      %s60 = sadd.s32 %s59, 1
      %p63 = scmp.eq.s32.totalorder %s25, 1
      %p64 = scmp.ne.s32.totalorder %s59, %s61
      %p65 = scmp.eq.s32.totalorder %s25, 0
      %p66 = por %p64, %p65
      %p67 = scmp.ne.s32.totalorder %s59, %s61
      %p68 = scmp.eq.s32.totalorder %s30, 1
      %p69 = por %p67, %p68
      %p70 = scmp.ne.s32.totalorder %s61, %s62
      %p71 = scmp.eq.s32.totalorder %s30, 0
      %p72 = por %p70, %p71
      %p73 = scmp.ne.s32.totalorder %s61, %s62
      %p74 = scmp.eq.s32.totalorder %s31, 1
      %p75 = por %p73, %p74
      %p77 = scmp.ne.s32.totalorder %s62, %s76
      %p78 = scmp.eq.s32.totalorder %s31, 0
      %p79 = por %p77, %p78
      %s81 = sadd.s32 %s80, 1
      %p84 = scmp.eq.s32.totalorder %s25, 1
      %p85 = scmp.ne.s32.totalorder %s80, %s82
      %p86 = scmp.eq.s32.totalorder %s25, 0
      %p87 = por %p85, %p86
      %p88 = scmp.ne.s32.totalorder %s80, %s82
      %p89 = scmp.eq.s32.totalorder %s30, 1
      %p90 = por %p88, %p89
      %p91 = scmp.ne.s32.totalorder %s82, %s83
      %p92 = scmp.eq.s32.totalorder %s30, 0
      %p93 = por %p91, %p92
      %p94 = scmp.ne.s32.totalorder %s82, %s83
      %p95 = scmp.eq.s32.totalorder %s31, 1
      %p96 = por %p94, %p95
      %p98 = scmp.ne.s32.totalorder %s83, %s97
      %p99 = scmp.eq.s32.totalorder %s31, 0
      %p100 = por %p98, %p99
      %s102 = sadd.s32 %s101, 1
      %p105 = scmp.eq.s32.totalorder %s25, 1
      %p106 = scmp.ne.s32.totalorder %s101, %s103
      %p107 = scmp.eq.s32.totalorder %s25, 0
      %p108 = por %p106, %p107
      %p109 = scmp.ne.s32.totalorder %s101, %s103
      %p110 = scmp.eq.s32.totalorder %s30, 1
      %p111 = por %p109, %p110
      %p112 = scmp.ne.s32.totalorder %s103, %s104
      %p113 = scmp.eq.s32.totalorder %s30, 0
      %p114 = por %p112, %p113
      %p115 = scmp.ne.s32.totalorder %s103, %s104
      %p116 = scmp.eq.s32.totalorder %s31, 1
      %p117 = por %p115, %p116
      %p119 = scmp.ne.s32.totalorder %s104, %s118
      %p120 = scmp.eq.s32.totalorder %s31, 0
      %p121 = por %p119, %p120
      %s123 = sadd.s32 %s122, 1
      %p126 = scmp.eq.s32.totalorder %s25, 1
      %p127 = scmp.ne.s32.totalorder %s122, %s124
      %p128 = scmp.eq.s32.totalorder %s25, 0
      %p129 = por %p127, %p128
      %p130 = scmp.ne.s32.totalorder %s122, %s124
      %p131 = scmp.eq.s32.totalorder %s30, 1
      %p132 = por %p130, %p131
      %p133 = scmp.ne.s32.totalorder %s124, %s125
      %p134 = scmp.eq.s32.totalorder %s30, 0
      %p135 = por %p133, %p134
      %p136 = scmp.ne.s32.totalorder %s124, %s125
      %p137 = scmp.eq.s32.totalorder %s31, 1
      %p138 = por %p136, %p137
      %p140 = scmp.ne.s32.totalorder %s125, %s139
      %p141 = scmp.eq.s32.totalorder %s31, 0
      %p142 = por %p140, %p141
      %s144 = sadd.s32 %s143, 1
      %p147 = scmp.eq.s32.totalorder %s25, 1
      %p148 = scmp.ne.s32.totalorder %s143, %s145
      %p149 = scmp.eq.s32.totalorder %s25, 0
      %p150 = por %p148, %p149
      %p151 = scmp.ne.s32.totalorder %s143, %s145
      %p152 = scmp.eq.s32.totalorder %s30, 1
      %p153 = por %p151, %p152
      %p154 = scmp.ne.s32.totalorder %s145, %s146
      %p155 = scmp.eq.s32.totalorder %s30, 0
      %p156 = por %p154, %p155
      %p157 = scmp.ne.s32.totalorder %s145, %s146
      %p158 = scmp.eq.s32.totalorder %s31, 1
      %p159 = por %p157, %p158
      %p161 = scmp.ne.s32.totalorder %s146, %s160
      %p162 = scmp.eq.s32.totalorder %s31, 0
      %p163 = por %p161, %p162
      %s165 = sadd.s32 %s164, 1
      %p168 = scmp.eq.s32.totalorder %s25, 1
      %p169 = scmp.ne.s32.totalorder %s164, %s166
      %p170 = scmp.eq.s32.totalorder %s25, 0
      %p171 = por %p169, %p170
      %p172 = scmp.ne.s32.totalorder %s164, %s166
      %p173 = scmp.eq.s32.totalorder %s30, 1
      %p174 = por %p172, %p173
      %p175 = scmp.ne.s32.totalorder %s166, %s167
      %p176 = scmp.eq.s32.totalorder %s30, 0
      %p177 = por %p175, %p176
      %p178 = scmp.ne.s32.totalorder %s166, %s167
      %p179 = scmp.eq.s32.totalorder %s31, 1
      %p180 = por %p178, %p179
      %p182 = scmp.ne.s32.totalorder %s167, %s181
      %p183 = scmp.eq.s32.totalorder %s31, 0
      %p184 = por %p182, %p183
      %s186 = sadd.s32 %s185, 1
      %p189 = scmp.eq.s32.totalorder %s25, 1
      %p190 = scmp.ne.s32.totalorder %s185, %s187
      %p191 = scmp.eq.s32.totalorder %s25, 0
      %p192 = por %p190, %p191
      %p193 = scmp.ne.s32.totalorder %s185, %s187
      %p194 = scmp.eq.s32.totalorder %s30, 1
      %p195 = por %p193, %p194
      %p196 = scmp.ne.s32.totalorder %s187, %s188
      %p197 = scmp.eq.s32.totalorder %s30, 0
      %p198 = por %p196, %p197
      %p199 = scmp.ne.s32.totalorder %s187, %s188
      %p200 = scmp.eq.s32.totalorder %s31, 1
      %p201 = por %p199, %p200
      %p203 = scmp.ne.s32.totalorder %s188, %s202
      %p204 = scmp.eq.s32.totalorder %s31, 0
      %p205 = por %p203, %p204
      %s207 = sadd.s32 %s206, 1
      %p210 = scmp.eq.s32.totalorder %s25, 1
      %p211 = scmp.ne.s32.totalorder %s206, %s208
      %p212 = scmp.eq.s32.totalorder %s25, 0
      %p213 = por %p211, %p212
      %p214 = scmp.ne.s32.totalorder %s206, %s208
      %p215 = scmp.eq.s32.totalorder %s30, 1
      %p216 = por %p214, %p215
      %p217 = scmp.ne.s32.totalorder %s208, %s209
      %p218 = scmp.eq.s32.totalorder %s30, 0
      %p219 = por %p217, %p218
      %p220 = scmp.ne.s32.totalorder %s208, %s209
      %p221 = scmp.eq.s32.totalorder %s31, 1
      %p222 = por %p220, %p221
      %p224 = scmp.ne.s32.totalorder %s209, %s223
      %p225 = scmp.eq.s32.totalorder %s31, 0
      %p226 = por %p224, %p225
      %s228 = sadd.s32 %s227, 1
      %p231 = scmp.eq.s32.totalorder %s25, 1
      %p232 = scmp.ne.s32.totalorder %s227, %s229
      %p233 = scmp.eq.s32.totalorder %s25, 0
      %p234 = por %p232, %p233
      %p235 = scmp.ne.s32.totalorder %s227, %s229
      %p236 = scmp.eq.s32.totalorder %s30, 1
      %p237 = por %p235, %p236
      %p238 = scmp.ne.s32.totalorder %s229, %s230
      %p239 = scmp.eq.s32.totalorder %s30, 0
      %p240 = por %p238, %p239
      %p241 = scmp.ne.s32.totalorder %s229, %s230
      %p242 = scmp.eq.s32.totalorder %s31, 1
      %p243 = por %p241, %p242
      %p245 = scmp.ne.s32.totalorder %s230, %s244
      %p246 = scmp.eq.s32.totalorder %s31, 0
      %p247 = por %p245, %p246
      %s249 = sadd.s32 %s248, 1
      %p252 = scmp.eq.s32.totalorder %s25, 1
      %p253 = scmp.ne.s32.totalorder %s248, %s250
      %p254 = scmp.eq.s32.totalorder %s25, 0
      %p255 = por %p253, %p254
      %p256 = scmp.ne.s32.totalorder %s248, %s250
      %p257 = scmp.eq.s32.totalorder %s30, 1
      %p258 = por %p256, %p257
      %p259 = scmp.ne.s32.totalorder %s250, %s251
      %p260 = scmp.eq.s32.totalorder %s30, 0
      %p261 = por %p259, %p260
      %p262 = scmp.ne.s32.totalorder %s250, %s251
      %p263 = scmp.eq.s32.totalorder %s31, 1
      %p264 = por %p262, %p263
      %p266 = scmp.ne.s32.totalorder %s251, %s265
      %p267 = scmp.eq.s32.totalorder %s31, 0
      %p268 = por %p266, %p267
      %s270 = sadd.s32 %s269, 1
      %p273 = scmp.eq.s32.totalorder %s25, 1
      %p274 = scmp.ne.s32.totalorder %s269, %s271
      %p275 = scmp.eq.s32.totalorder %s25, 0
      %p276 = por %p274, %p275
      %p277 = scmp.ne.s32.totalorder %s269, %s271
      %p278 = scmp.eq.s32.totalorder %s30, 1
      %p279 = por %p277, %p278
      %p280 = scmp.ne.s32.totalorder %s271, %s272
      %p281 = scmp.eq.s32.totalorder %s30, 0
      %p282 = por %p280, %p281
      %p283 = scmp.ne.s32.totalorder %s271, %s272
      %p284 = scmp.eq.s32.totalorder %s31, 1
      %p285 = por %p283, %p284
      %p287 = scmp.ne.s32.totalorder %s272, %s286
      %p288 = scmp.eq.s32.totalorder %s31, 0
      %p289 = por %p287, %p288
      %s291 = sadd.s32 %s290, 1
      %p294 = scmp.eq.s32.totalorder %s25, 1
      %p295 = scmp.ne.s32.totalorder %s290, %s292
      %p296 = scmp.eq.s32.totalorder %s25, 0
      %p297 = por %p295, %p296
      %p298 = scmp.ne.s32.totalorder %s290, %s292
      %p299 = scmp.eq.s32.totalorder %s30, 1
      %p300 = por %p298, %p299
      %p301 = scmp.ne.s32.totalorder %s292, %s293
      %p302 = scmp.eq.s32.totalorder %s30, 0
      %p303 = por %p301, %p302
      %p304 = scmp.ne.s32.totalorder %s292, %s293
      %p305 = scmp.eq.s32.totalorder %s31, 1
      %p306 = por %p304, %p305
      %p308 = scmp.ne.s32.totalorder %s293, %s307
      %p309 = scmp.eq.s32.totalorder %s31, 0
      %p310 = por %p308, %p309
      %s312 = sadd.s32 %s311, 1
      %p315 = scmp.eq.s32.totalorder %s25, 1
      %p316 = scmp.ne.s32.totalorder %s311, %s313
      %p317 = scmp.eq.s32.totalorder %s25, 0
      %p318 = por %p316, %p317
      %p319 = scmp.ne.s32.totalorder %s311, %s313
      %p320 = scmp.eq.s32.totalorder %s30, 1
      %p321 = por %p319, %p320
      %p322 = scmp.ne.s32.totalorder %s313, %s314
      %p323 = scmp.eq.s32.totalorder %s30, 0
      %p324 = por %p322, %p323
      %p325 = scmp.ne.s32.totalorder %s313, %s314
      %p326 = scmp.eq.s32.totalorder %s31, 1
      %p327 = por %p325, %p326
      %p329 = scmp.ne.s32.totalorder %s314, %s328
      %p330 = scmp.eq.s32.totalorder %s31, 0
      %p331 = por %p329, %p330
      %s333 = sadd.s32 %s332, 1
      %p336 = scmp.eq.s32.totalorder %s25, 1
      %p337 = scmp.ne.s32.totalorder %s332, %s334
      %p338 = scmp.eq.s32.totalorder %s25, 0
      %p339 = por %p337, %p338
      %p340 = scmp.ne.s32.totalorder %s332, %s334
      %p341 = scmp.eq.s32.totalorder %s30, 1
      %p342 = por %p340, %p341
      %p343 = scmp.ne.s32.totalorder %s334, %s335
      %p344 = scmp.eq.s32.totalorder %s30, 0
      %p345 = por %p343, %p344
      %p346 = scmp.ne.s32.totalorder %s334, %s335
      %p347 = scmp.eq.s32.totalorder %s31, 1
      %p348 = por %p346, %p347
      %p350 = scmp.ne.s32.totalorder %s335, %s349
      %p351 = scmp.eq.s32.totalorder %s31, 0
      %p352 = por %p350, %p351
      %s354 = sadd.s32 %s353, 1
      %p357 = scmp.eq.s32.totalorder %s25, 1
      %p358 = scmp.ne.s32.totalorder %s353, %s355
      %p359 = scmp.eq.s32.totalorder %s25, 0
      %p360 = por %p358, %p359
      %p361 = scmp.ne.s32.totalorder %s353, %s355
      %p362 = scmp.eq.s32.totalorder %s30, 1
      %p363 = por %p361, %p362
      %p364 = scmp.ne.s32.totalorder %s355, %s356
      %p365 = scmp.eq.s32.totalorder %s30, 0
      %p366 = por %p364, %p365
      %p367 = scmp.ne.s32.totalorder %s355, %s356
      %p368 = scmp.eq.s32.totalorder %s31, 1
      %p369 = por %p367, %p368
      %p371 = scmp.ne.s32.totalorder %s356, %s370
      %p372 = scmp.eq.s32.totalorder %s31, 0
      %p373 = por %p371, %p372
      %s374 = ssub.s32 %s25, %s32
      %p375 = scmp.eq.s32.totalorder %s374, 0
      %s377 = sadd.s32 %s376, 1
      %s378 = scalar_select %p375, %s376, %s377
      %p381 = pneg %p375
      %p382 = scmp.eq.s32.totalorder %s25, 1
      %p383 = por %p381, %p382
      %p384 = scmp.ne.s32.totalorder %s376, %s379
      %p385 = scmp.eq.s32.totalorder %s25, 0
      %p386 = por %p384, %p385
      %p387 = scmp.ne.s32.totalorder %s376, %s379
      %p388 = scmp.eq.s32.totalorder %s30, 1
      %p389 = por %p387, %p388
      %p390 = scmp.ne.s32.totalorder %s379, %s380
      %p391 = scmp.eq.s32.totalorder %s30, 0
      %p392 = por %p390, %p391
      %p393 = scmp.ne.s32.totalorder %s379, %s380
      %p394 = scmp.eq.s32.totalorder %s31, 1
      %p395 = por %p393, %p394
      %p397 = scmp.ne.s32.totalorder %s380, %s396
      %p398 = scmp.eq.s32.totalorder %s31, 0
      %p399 = por %p397, %p398
      %p400 = scmp.le.s32.totalorder 1, %s25
      %p401 = scmp.lt.s32.totalorder %s25, 3
      %p402 = pnand %p400, %p401
      %p403 = pneg %p402
      // Predicated region
      $region9: #{tpu_custom_call.1} parent=5 // pred_check
        _
      $region10: #{tpu_custom_call.1} parent=5 // pred_check_branch
        %405 = sbr.rel (%p402) target = $region12
      $region11: #{tpu_custom_call.1} parent=5 // pred_region
        %s406 = ssub.s32 %s25, 1
        // Predicated region
        $region13: #{tpu_custom_call.1} parent=11 // pred_check
          %p407 = pneg %p72
        $region14: #{tpu_custom_call.1} parent=11 // pred_check_branch
          %409 = sbr.rel (%p407) target = $region16
        $region15: #{tpu_custom_call.1} parent=11 // pred_region
          _
        $region16: #{tpu_custom_call.1} parent=11 // pred_fallthru
          _
        // Predicated region
        $region17: #{tpu_custom_call.1} parent=11 // pred_check
          %p410 = pneg %p93
        $region18: #{tpu_custom_call.1} parent=11 // pred_check_branch
          %412 = sbr.rel (%p410) target = $region20
        $region19: #{tpu_custom_call.1} parent=11 // pred_region
          _
        $region20: #{tpu_custom_call.1} parent=11 // pred_fallthru
          _
        // Predicated region
        $region21: #{tpu_custom_call.1} parent=11 // pred_check
          %p413 = pneg %p114
        $region22: #{tpu_custom_call.1} parent=11 // pred_check_branch
          %415 = sbr.rel (%p413) target = $region24
        $region23: #{tpu_custom_call.1} parent=11 // pred_region
          _
        $region24: #{tpu_custom_call.1} parent=11 // pred_fallthru
          _
        // Predicated region
        $region25: #{tpu_custom_call.1} parent=11 // pred_check
          %p416 = pneg %p135
        $region26: #{tpu_custom_call.1} parent=11 // pred_check_branch
          %418 = sbr.rel (%p416) target = $region28
        $region27: #{tpu_custom_call.1} parent=11 // pred_region
          _
        $region28: #{tpu_custom_call.1} parent=11 // pred_fallthru
          _
        // Predicated region
        $region29: #{tpu_custom_call.1} parent=11 // pred_check
          %p419 = pneg %p156
        $region30: #{tpu_custom_call.1} parent=11 // pred_check_branch
          %421 = sbr.rel (%p419) target = $region32
        $region31: #{tpu_custom_call.1} parent=11 // pred_region
          _
        $region32: #{tpu_custom_call.1} parent=11 // pred_fallthru
          _
        // Predicated region
        $region33: #{tpu_custom_call.1} parent=11 // pred_check
          %p422 = pneg %p177
        $region34: #{tpu_custom_call.1} parent=11 // pred_check_branch
          %424 = sbr.rel (%p422) target = $region36
        $region35: #{tpu_custom_call.1} parent=11 // pred_region
          _
        $region36: #{tpu_custom_call.1} parent=11 // pred_fallthru
          _
        // Predicated region
        $region37: #{tpu_custom_call.1} parent=11 // pred_check
          %p425 = pneg %p198
        $region38: #{tpu_custom_call.1} parent=11 // pred_check_branch
          %427 = sbr.rel (%p425) target = $region40
        $region39: #{tpu_custom_call.1} parent=11 // pred_region
          _
        $region40: #{tpu_custom_call.1} parent=11 // pred_fallthru
          _
        // Predicated region
        $region41: #{tpu_custom_call.1} parent=11 // pred_check
          %p428 = pneg %p219
        $region42: #{tpu_custom_call.1} parent=11 // pred_check_branch
          %430 = sbr.rel (%p428) target = $region44
        $region43: #{tpu_custom_call.1} parent=11 // pred_region
          _
        $region44: #{tpu_custom_call.1} parent=11 // pred_fallthru
          _
        // Predicated region
        $region45: #{tpu_custom_call.1} parent=11 // pred_check
          %p431 = pneg %p240
        $region46: #{tpu_custom_call.1} parent=11 // pred_check_branch
          %433 = sbr.rel (%p431) target = $region48
        $region47: #{tpu_custom_call.1} parent=11 // pred_region
          _
        $region48: #{tpu_custom_call.1} parent=11 // pred_fallthru
          _
        // Predicated region
        $region49: #{tpu_custom_call.1} parent=11 // pred_check
          %p434 = pneg %p261
        $region50: #{tpu_custom_call.1} parent=11 // pred_check_branch
          %436 = sbr.rel (%p434) target = $region52
        $region51: #{tpu_custom_call.1} parent=11 // pred_region
          _
        $region52: #{tpu_custom_call.1} parent=11 // pred_fallthru
          _
        // Predicated region
        $region53: #{tpu_custom_call.1} parent=11 // pred_check
          %p437 = pneg %p282
        $region54: #{tpu_custom_call.1} parent=11 // pred_check_branch
          %439 = sbr.rel (%p437) target = $region56
        $region55: #{tpu_custom_call.1} parent=11 // pred_region
          _
        $region56: #{tpu_custom_call.1} parent=11 // pred_fallthru
          _
        // Predicated region
        $region57: #{tpu_custom_call.1} parent=11 // pred_check
          %p440 = pneg %p303
        $region58: #{tpu_custom_call.1} parent=11 // pred_check_branch
          %442 = sbr.rel (%p440) target = $region60
        $region59: #{tpu_custom_call.1} parent=11 // pred_region
          _
        $region60: #{tpu_custom_call.1} parent=11 // pred_fallthru
          _
        // Predicated region
        $region61: #{tpu_custom_call.1} parent=11 // pred_check
          %p443 = pneg %p324
        $region62: #{tpu_custom_call.1} parent=11 // pred_check_branch
          %445 = sbr.rel (%p443) target = $region64
        $region63: #{tpu_custom_call.1} parent=11 // pred_region
          _
        $region64: #{tpu_custom_call.1} parent=11 // pred_fallthru
          _
        // Predicated region
        $region65: #{tpu_custom_call.1} parent=11 // pred_check
          %p446 = pneg %p345
        $region66: #{tpu_custom_call.1} parent=11 // pred_check_branch
          %448 = sbr.rel (%p446) target = $region68
        $region67: #{tpu_custom_call.1} parent=11 // pred_region
          _
        $region68: #{tpu_custom_call.1} parent=11 // pred_fallthru
          _
        // Predicated region
        $region69: #{tpu_custom_call.1} parent=11 // pred_check
          %p449 = pneg %p366
        $region70: #{tpu_custom_call.1} parent=11 // pred_check_branch
          %451 = sbr.rel (%p449) target = $region72
        $region71: #{tpu_custom_call.1} parent=11 // pred_region
          _
        $region72: #{tpu_custom_call.1} parent=11 // pred_fallthru
          _
      $region12: #{tpu_custom_call.1} parent=5 // pred_fallthru
        _
      %p452 = scmp.lt.s32.totalorder %s25, 2
      // Predicated region
      $region73: #{tpu_custom_call.1} parent=5 // pred_check
        %p453 = pneg %p452
      $region74: #{tpu_custom_call.1} parent=5 // pred_check_branch
        %455 = sbr.rel (%p453) target = $region76
      $region75: #{tpu_custom_call.1} parent=5 // pred_region
        // Predicated region
        $region77: #{tpu_custom_call.1} parent=75 // pred_check
          %p456 = pneg %p45
        $region78: #{tpu_custom_call.1} parent=75 // pred_check_branch
          %458 = sbr.rel (%p456) target = $region80
        $region79: #{tpu_custom_call.1} parent=75 // pred_region
          %s459 = smul.u32 4, %s25
          %p460 = scmp.lt.s32.totalorder %s459, 7
          %s461 = scalar_select %p460, %s459, 7
          %s462 = smul.addr %s461, 4
          %s463 = scalar_lea.vmem %s0, %s462
          %s464 = smul.u32 4, %s25
        $region80: #{tpu_custom_call.1} parent=75 // pred_fallthru
          _
      $region76: #{tpu_custom_call.1} parent=5 // pred_fallthru
        _
      %p465 = scmp.le.s32.totalorder 1, %s25
      %p466 = scmp.lt.s32.totalorder %s25, 3
      %p467 = pnand %p465, %p466
      %p468 = pneg %p467
      // Predicated region
      $region81: #{tpu_custom_call.1} parent=5 // pred_check
        _
      $region82: #{tpu_custom_call.1} parent=5 // pred_check_branch
        %470 = sbr.rel (%p467) target = $region84
      $region83: #{tpu_custom_call.1} parent=5 // pred_region
        %s471 = ssub.s32 %s25, 1
        %s472 = smul.u32 4, %s30
        %p473 = scmp.lt.s32.totalorder %s472, 7
        %s474 = scalar_select %p473, %s472, 7
        %s475 = smul.addr %s474, 4
        %s476 = scalar_lea.vmem %s0, %s475
        %p477 = pneg %p51
        %p478 = pneg %p48
        %p479 = pneg %p72
        %p480 = pneg %p69
        %p481 = pneg %p93
        %p482 = pneg %p90
        %p483 = pneg %p114
        %p484 = pneg %p111
        %p485 = pneg %p135
        %p486 = pneg %p132
        %p487 = pneg %p156
        %p488 = pneg %p153
        %p489 = pneg %p177
        %p490 = pneg %p174
        %p491 = pneg %p198
        %p492 = pneg %p195
        %p493 = pneg %p219
        %p494 = pneg %p216
        %p495 = pneg %p240
        %p496 = pneg %p237
        %p497 = pneg %p261
        %p498 = pneg %p258
        %p499 = pneg %p282
        %p500 = pneg %p279
        %p501 = pneg %p303
        %p502 = pneg %p300
        %p503 = pneg %p324
        %p504 = pneg %p321
        %p505 = pneg %p345
        %p506 = pneg %p342
        %p507 = pneg %p366
        %p508 = pneg %p363
        %p509 = pneg %p392
        %p510 = pneg %p389
        %s511 = sand.u32 %s379, 1
        %s512 = scalar_lea.sflag [#allocation5], %s511
        %s513 = sand.u32 %s379, 1
        %s514 = smul.addr %s513, 32
        %s515 = scalar_lea.vmem [#allocation4], %s514
        %s516 = smul.u32 4, %s30
        %p517 = scmp.lt.s32.totalorder %s516, 7
        %s518 = scalar_select %p517, %s516, 7
        %s519 = smul.addr %s518, 4
        %s520 = scalar_lea.vmem %s0, %s519
        %s521 = smul.u32 4, %s30
        %s522 = smul.u32 4, %s30
        %vm524 = vcmask 277504
        %525 = vst.msk [vmem:[#allocation2] sm:$0xff] %vm524, 0.0
        %vm526 = vcmask 556304
        %527 = vst.msk [vmem:[#allocation2 + $0x10] sm:$0xff] %vm526, 0.0
        %vm528 = vcmask 835104
        %529 = vst.msk [vmem:[#allocation2 + $0x10] sm:$0xff] %vm528, 0.0
        %vm530 = vcmask 1048368
        %531 = vst.msk [vmem:[#allocation2 + $0x20] sm:$0xff] %vm530, 0.0
        %vm532 = vcmask 64512
        %533 = vst.msk [vmem:[#allocation2 + $0x28] sm:$0xff] %vm532, 0.0
        %v534 = vld [vmem:[%s1] ss:$4 sm:$0x3]
        %v536 = vlaneseq
        %v537 = vshrl.u32 %v536, 7
        %v538 = vsub.s32 0, %v537
        %v539 = vrot.slane %v534, %v538
        %v540 = vlaneseq
        %v541 = vshrl.u32 %v540, 7
        %v542 = vsub.s32 1, %v541
        %v543 = vrot.slane %v534, %v542
        %s544 = scalar_lea.vmem %s1, 1
        %v545 = vld [vmem:[%s544] ss:$4 sm:$0x3]
        %v547 = vlaneseq
        %v548 = vshrl.u32 %v547, 7
        %v549 = vsub.s32 0, %v548
        %v550 = vrot.slane %v545, %v549
        %v551 = vlaneseq
        %v552 = vshrl.u32 %v551, 7
        %v553 = vsub.s32 1, %v552
        %v554 = vrot.slane %v545, %v553
        %s555 = scalar_lea.vmem %s1, 2
        %v556 = vld [vmem:[%s555] ss:$4 sm:$0x3]
        %v558 = vlaneseq
        %v559 = vshrl.u32 %v558, 7
        %v560 = vsub.s32 0, %v559
        %v561 = vrot.slane %v556, %v560
        %v562 = vlaneseq
        %v563 = vshrl.u32 %v562, 7
        %v564 = vsub.s32 1, %v563
        %v565 = vrot.slane %v556, %v564
        %s568 = scalar_lea.vmem %s1, 3
        %v569 = vld [vmem:[%s568] ss:$4 sm:$0x3]
        %v571 = vlaneseq
        %v572 = vshrl.u32 %v571, 7
        %v573 = vsub.s32 0, %v572
        %v574 = vrot.slane %v569, %v573
        %v575 = vlaneseq
        %v576 = vshrl.u32 %v575, 7
        %v577 = vsub.s32 1, %v576
        %v578 = vrot.slane %v569, %v577
        %v579 = vld [vmem:[%s520] sm:$0xff]
        %v580 = vld [vmem:[%s520 + $0x8] sm:$0xff]
        %v581 = vld [vmem:[%s2] sm:$0xf]
        %v582 = vld [vmem:[%s3] sm:$0xf]
        %584 = vset.pattern.permute.xlu0 0
        %585 = vperm.xlu0 %584, %v581
        %v586 = vpop.permute.xlu0 %585
        %v588 = vunpack.c.l.s4 839922192
        %v589 = vunpack.c.0.s8 %v588
        %v590 = vlaneseq
        %v591 = vshrl.u32 %v590, 7
        %v592 = vsub.s32 %v589, %v591
        %v593 = vrot.slane %v586, %v592
        %v595 = vmul.f32 %v579, %v593
        %v596 = vmul.f32 %v580, %v593
        %598 = vset.pattern.permute.xlu0 0
        %599 = vperm.xlu0 %598, %v582
        %v600 = vpop.permute.xlu0 %599
        %v602 = vunpack.c.l.s4 839922192
        %v603 = vunpack.c.0.s8 %v602
        %v604 = vlaneseq
        %v605 = vshrl.u32 %v604, 7
        %v606 = vsub.s32 %v603, %v605
        %v607 = vrot.slane %v600, %v606
        %v609 = vadd.f32 %v595, %v607
        %v610 = vadd.f32 %v596, %v607
        %v611 = vmax.f32 %v609, 0.0
        %v612 = vmax.f32 %v610, 0.0
        %v613 = vld [vmem:[%s4] sm:$0xf]
        %v616 = vcombine.high %v611, %v611
        %v617 = vcombine.high %v612, %v612
        %v620 = vpack.c.bf16 %v611, %v611
        %v621 = vpack.c.bf16 %v616, %v616
        %v622 = vpack.c.bf16 %v612, %v612
        %v623 = vpack.c.bf16 %v617, %v617
        %v624 = vld [vmem:[%s5] sm:$0xff]
        %626 = vset.pattern.permute.xlu0 0
        %627 = vperm.xlu0 %626, %v624
        %v628 = vpop.permute.xlu0 %627
        %vm630 = vcmask 31744
        %v632 = vsel %vm630, %v613, 0
        %vm634 = vcmask 1041408
        %v636 = vsel %vm634, %v620, 0
        %v639 = vsel %vm634, %v621, 0
        %v642 = vsel %vm634, %v622, 0
        %v645 = vsel %vm634, %v623, 0
        %647 = vmatprep.subr.bf16.mxu0 %v639
        %648 = vmatpush1.bf16.msra.mxu0 %v636
        %649 = vmatprep.subr.bf16.mxu0 0
        %650 = vmatpush1.bf16.msra.mxu0 0
        %651 = vmatprep.subr.bf16.mxu0 0
        %652 = vmatpush1.bf16.msra.mxu0 0
        %653 = vmatprep.subr.bf16.mxu0 0
        %654 = vmatpush1.bf16.msra.mxu0 0
        %655 = vmatprep.subr.bf16.mxu0 0
        %656 = vmatpush1.bf16.msra.mxu0 0
        %657 = vmatprep.subr.bf16.mxu0 0
        %658 = vmatpush1.bf16.msra.mxu0 0
        %659 = vmatprep.subr.bf16.mxu0 0
        %660 = vmatpush1.bf16.msra.mxu0 0
        %661 = vmatprep.subr.bf16.mxu0 0
        %662 = vmatpush1.bf16.msra.mxu0 0
        %663 = vmatprep.subr.bf16.mxu0 0
        %664 = vmatpush1.bf16.msra.mxu0 0
        %665 = vmatprep.subr.bf16.mxu0 0
        %666 = vmatpush1.bf16.msra.mxu0 0
        %667 = vmatprep.subr.bf16.mxu0 0
        %668 = vmatpush1.bf16.msra.mxu0 0
        %669 = vmatprep.subr.bf16.mxu0 0
        %670 = vmatpush1.bf16.msra.mxu0 0
        %671 = vmatprep.subr.bf16.mxu0 0
        %672 = vmatpush1.bf16.msra.mxu0 0
        %673 = vmatprep.subr.bf16.mxu0 0
        %674 = vmatpush1.bf16.msra.mxu0 0
        %675 = vmatprep.subr.bf16.mxu0 0
        %676 = vmatpush1.bf16.msra.mxu0 0
        %677 = vmatprep.subr.bf16.mxu0 0
        %678 = vmatpush1.bf16.msra.mxu0 0
        %679 = vmatprep.mubr.bf16.mxu0 0
        %680 = vmatmul.mubr.bf16.gmra.mrb[0].mxu0 %v632
        %v681 = vpop.f32.mrb[0].mxu0
        %v682 = vadd.f32 %v628, %v681
        %v683 = vpop.f32.mrb[0].mxu0
        %v684 = vadd.f32 %v628, %v683
        %v685 = vpop.f32.mrb[0].mxu0
        %v686 = vpop.f32.mrb[0].mxu0
        %687 = vdwg.mxu0
        %688 = vmatprep.subr.bf16.mxu0 %v645
        %689 = vmatpush1.bf16.msra.mxu0 %v642
        %690 = vmatprep.subr.bf16.mxu0 0
        %691 = vmatpush1.bf16.msra.mxu0 0
        %692 = vmatprep.subr.bf16.mxu0 0
        %693 = vmatpush1.bf16.msra.mxu0 0
        %694 = vmatprep.subr.bf16.mxu0 0
        %695 = vmatpush1.bf16.msra.mxu0 0
        %696 = vmatprep.subr.bf16.mxu0 0
        %697 = vmatpush1.bf16.msra.mxu0 0
        %698 = vmatprep.subr.bf16.mxu0 0
        %699 = vmatpush1.bf16.msra.mxu0 0
        %700 = vmatprep.subr.bf16.mxu0 0
        %701 = vmatpush1.bf16.msra.mxu0 0
        %702 = vmatprep.subr.bf16.mxu0 0
        %703 = vmatpush1.bf16.msra.mxu0 0
        %704 = vmatprep.subr.bf16.mxu0 0
        %705 = vmatpush1.bf16.msra.mxu0 0
        %706 = vmatprep.subr.bf16.mxu0 0
        %707 = vmatpush1.bf16.msra.mxu0 0
        %708 = vmatprep.subr.bf16.mxu0 0
        %709 = vmatpush1.bf16.msra.mxu0 0
        %710 = vmatprep.subr.bf16.mxu0 0
        %711 = vmatpush1.bf16.msra.mxu0 0
        %712 = vmatprep.subr.bf16.mxu0 0
        %713 = vmatpush1.bf16.msra.mxu0 0
        %714 = vmatprep.subr.bf16.mxu0 0
        %715 = vmatpush1.bf16.msra.mxu0 0
        %716 = vmatprep.subr.bf16.mxu0 0
        %717 = vmatpush1.bf16.msra.mxu0 0
        %718 = vmatprep.subr.bf16.mxu0 0
        %719 = vmatpush1.bf16.msra.mxu0 0
        %720 = vmatprep.mubr.bf16.mxu0 0
        %721 = vmatmul.mubr.bf16.gmra.mrb[0].mxu0 %v632
        %v722 = vpop.f32.mrb[0].mxu0
        %v723 = vadd.f32 %v628, %v722
        %v724 = vpop.f32.mrb[0].mxu0
        %v725 = vadd.f32 %v628, %v724
        %v726 = vpop.f32.mrb[0].mxu0
        %v727 = vpop.f32.mrb[0].mxu0
        %728 = vdwg.mxu0
        %v729 = vmax.f32 %v682, 0.0
        %v730 = vmax.f32 %v684, 0.0
        %v731 = vmax.f32 %v723, 0.0
        %v732 = vmax.f32 %v725, 0.0
        %735 = vrot.lane.b32.xlu0 %v729, 34
        %v736 = vpop.permute.xlu0 %735
        %737 = vrot.lane.b32.xlu0 %v730, 34
        %v738 = vpop.permute.xlu0 %737
        %v739 = vsel %vm524, %v736, %v738
        %vm743 = vcmask 1047824
        %744 = vst.msk [vmem:[#allocation2] sm:$0xff] %vm743, %v736
        %745 = vst [vmem:[#allocation2 + $0x8] sm:$0xff] %v739
        %746 = vst.msk [vmem:[#allocation2 + $0x10] sm:$0xff] %vm524, %v738
        %749 = vrot.lane.b32.xlu0 %v731, 102
        %v750 = vpop.permute.xlu0 %749
        %751 = vrot.lane.b32.xlu0 %v732, 102
        %v752 = vpop.permute.xlu0 %751
        %vm753 = vcmask 834560
        %v754 = vsel %vm753, %v750, %v752
        %758 = vst.msk [vmem:[#allocation2 + $0x10] sm:$0xff] %vm530, %v750
        %759 = vst [vmem:[#allocation2 + $0x18] sm:$0xff] %v754
        %760 = vst.msk [vmem:[#allocation2 + $0x20] sm:$0xff] %vm753, %v752
        %v761 = vld [vmem:[#allocation2] sm:$0xff]
        %v762 = vld [vmem:[#allocation2 + $0x8] sm:$0xff]
        %v763 = vld [vmem:[#allocation2 + $0x10] sm:$0xff]
        %764 = vrot.lane.b32.xlu0 %v539, 17
        %v765 = vpop.permute.xlu0 %764
        %766 = vrot.lane.b32.xlu0 %v543, 17
        %v767 = vpop.permute.xlu0 %766
        %vm768 = vcmask 138240
        %v769 = vsel %vm768, %v765, %v767
        %v773 = vmul.f32 %v761, %v765
        %v774 = vmul.f32 %v762, %v769
        %v775 = vmul.f32 %v763, %v767
        %v776 = vpack.c.bf16 %v773, %v773
        %v777 = vpack.c.bf16 %v774, %v774
        %v778 = vpack.c.bf16 %v775, %v775
        %v782 = vunpack.c.l.b16 %v776
        %v783 = vunpack.c.l.b16 %v777
        %v784 = vunpack.c.l.b16 %v778
        %v785 = vpack.c.b16 %v783, %v782
        %v786 = vpack.c.b16 %v784, %v784
        %787 = vrot.lane.b32.xlu0 %v785, 111
        %v788 = vpop.permute.xlu0 %787
        %789 = vrot.lane.b32.xlu0 %v786, 111
        %v790 = vpop.permute.xlu0 %789
        %v791 = vrot.slane %v788, 4
        %v792 = vrot.slane %v790, 4
        %vm793 = vcmask 1043456
        %v794 = vsel %vm793, %v791, %v792
        %vm795 = vcmask 908288
        %v796 = vsel %vm795, %v788, %v794
        %798 = vst [vmem:[#allocation3] sm:$0xff] %v796
        %v799 = vld [vmem:[#allocation2 + $0x10] sm:$0xff]
        %v800 = vld [vmem:[#allocation2 + $0x18] sm:$0xff]
        %v801 = vld [vmem:[#allocation2 + $0x20] sm:$0xff]
        %802 = vrot.lane.b32.xlu0 %v539, 85
        %v803 = vpop.permute.xlu0 %802
        %804 = vrot.lane.b32.xlu0 %v543, 85
        %v805 = vpop.permute.xlu0 %804
        %vm806 = vcmask 695296
        %v807 = vsel %vm806, %v803, %v805
        %v811 = vmul.f32 %v799, %v803
        %v812 = vmul.f32 %v800, %v807
        %v813 = vmul.f32 %v801, %v805
        %v814 = vpack.c.bf16 %v811, %v811
        %v815 = vpack.c.bf16 %v812, %v812
        %v816 = vpack.c.bf16 %v813, %v813
        %v820 = vunpack.c.l.b16 %v814
        %v821 = vunpack.c.l.b16 %v815
        %v822 = vunpack.c.l.b16 %v816
        %v823 = vpack.c.b16 %v821, %v820
        %v824 = vpack.c.b16 %v822, %v822
        %825 = vrot.lane.b32.xlu0 %v823, 43
        %v826 = vpop.permute.xlu0 %825
        %827 = vrot.lane.b32.xlu0 %v824, 43
        %v828 = vpop.permute.xlu0 %827
        %v829 = vrot.slane %v826, 4
        %v830 = vrot.slane %v828, 4
        %v831 = vsel %vm793, %v829, %v830
        %vm832 = vcmask 351232
        %v833 = vsel %vm832, %v826, %v831
        %835 = vst [vmem:[#allocation3 + $0x8] sm:$0xff] %v833
        %v836 = vld [vmem:[#allocation2] sm:$0xff]
        %v837 = vld [vmem:[#allocation2 + $0x8] sm:$0xff]
        %v838 = vld [vmem:[#allocation2 + $0x10] sm:$0xff]
        %v839 = vpack.c.bf16 %v836, %v836
        %v840 = vpack.c.bf16 %v837, %v837
        %v841 = vpack.c.bf16 %v838, %v838
        %v845 = vunpack.c.l.b16 %v839
        %v846 = vunpack.c.l.b16 %v840
        %v847 = vunpack.c.l.b16 %v841
        %v848 = vpack.c.b16 %v846, %v845
        %v849 = vpack.c.b16 %v847, %v847
        %850 = vrot.lane.b32.xlu0 %v848, 110
        %v851 = vpop.permute.xlu0 %850
        %852 = vrot.lane.b32.xlu0 %v849, 110
        %v853 = vpop.permute.xlu0 %852
        %v854 = vrot.slane %v851, 4
        %v855 = vrot.slane %v853, 4
        %v856 = vsel %vm793, %v854, %v855
        %vm857 = vcmask 900096
        %v858 = vsel %vm857, %v851, %v856
        %860 = vst [vmem:[#allocation3 + $0x10] sm:$0xff] %v858
        %v861 = vld [vmem:[#allocation2 + $0x10] sm:$0xff]
        %v862 = vld [vmem:[#allocation2 + $0x18] sm:$0xff]
        %v863 = vld [vmem:[#allocation2 + $0x20] sm:$0xff]
        %v864 = vpack.c.bf16 %v861, %v861
        %v865 = vpack.c.bf16 %v862, %v862
        %v866 = vpack.c.bf16 %v863, %v863
        %v870 = vunpack.c.l.b16 %v864
        %v871 = vunpack.c.l.b16 %v865
        %v872 = vunpack.c.l.b16 %v866
        %v873 = vpack.c.b16 %v871, %v870
        %v874 = vpack.c.b16 %v872, %v872
        %875 = vrot.lane.b32.xlu0 %v873, 42
        %v876 = vpop.permute.xlu0 %875
        %877 = vrot.lane.b32.xlu0 %v874, 42
        %v878 = vpop.permute.xlu0 %877
        %v879 = vrot.slane %v876, 4
        %v880 = vrot.slane %v878, 4
        %v881 = vsel %vm793, %v879, %v880
        %vm882 = vcmask 343040
        %v883 = vsel %vm882, %v876, %v881
        %885 = vst [vmem:[#allocation3 + $0x18] sm:$0xff] %v883
        %v886 = vld [vmem:[#allocation2] sm:$0xff]
        %v887 = vld [vmem:[#allocation2 + $0x8] sm:$0xff]
        %v888 = vld [vmem:[#allocation2 + $0x10] sm:$0xff]
        %889 = vrot.lane.b32.xlu0 %v550, 19
        %v890 = vpop.permute.xlu0 %889
        %891 = vrot.lane.b32.xlu0 %v554, 19
        %v892 = vpop.permute.xlu0 %891
        %vm893 = vcmask 154624
        %v894 = vsel %vm893, %v890, %v892
        %v898 = vmul.f32 %v886, %v890
        %v899 = vmul.f32 %v887, %v894
        %v900 = vmul.f32 %v888, %v892
        %v901 = vpack.c.bf16 %v898, %v898
        %v902 = vpack.c.bf16 %v899, %v899
        %v903 = vpack.c.bf16 %v900, %v900
        %v907 = vunpack.c.l.b16 %v901
        %v908 = vunpack.c.l.b16 %v902
        %v909 = vunpack.c.l.b16 %v903
        %v910 = vpack.c.b16 %v908, %v907
        %v911 = vpack.c.b16 %v909, %v909
        %912 = vrot.lane.b32.xlu0 %v910, 109
        %v913 = vpop.permute.xlu0 %912
        %914 = vrot.lane.b32.xlu0 %v911, 109
        %v915 = vpop.permute.xlu0 %914
        %v916 = vrot.slane %v913, 4
        %v917 = vrot.slane %v915, 4
        %v918 = vsel %vm793, %v916, %v917
        %vm919 = vcmask 891904
        %v920 = vsel %vm919, %v913, %v918
        %922 = vst [vmem:[#allocation3 + $0x20] sm:$0xff] %v920
        %v923 = vld [vmem:[#allocation2 + $0x10] sm:$0xff]
        %v924 = vld [vmem:[#allocation2 + $0x18] sm:$0xff]
        %v925 = vld [vmem:[#allocation2 + $0x20] sm:$0xff]
        %926 = vrot.lane.b32.xlu0 %v550, 87
        %v927 = vpop.permute.xlu0 %926
        %928 = vrot.lane.b32.xlu0 %v554, 87
        %v929 = vpop.permute.xlu0 %928
        %vm930 = vcmask 711680
        %v931 = vsel %vm930, %v927, %v929
        %v935 = vmul.f32 %v923, %v927
        %v936 = vmul.f32 %v924, %v931
        %v937 = vmul.f32 %v925, %v929
        %v938 = vpack.c.bf16 %v935, %v935
        %v939 = vpack.c.bf16 %v936, %v936
        %v940 = vpack.c.bf16 %v937, %v937
        %v944 = vunpack.c.l.b16 %v938
        %v945 = vunpack.c.l.b16 %v939
        %v946 = vunpack.c.l.b16 %v940
        %v947 = vpack.c.b16 %v945, %v944
        %v948 = vpack.c.b16 %v946, %v946
        %949 = vrot.lane.b32.xlu0 %v947, 41
        %v950 = vpop.permute.xlu0 %949
        %951 = vrot.lane.b32.xlu0 %v948, 41
        %v952 = vpop.permute.xlu0 %951
        %v953 = vrot.slane %v950, 4
        %v954 = vrot.slane %v952, 4
        %v955 = vsel %vm793, %v953, %v954
        %vm956 = vcmask 334848
        %v957 = vsel %vm956, %v950, %v955
        %959 = vst [vmem:[#allocation3 + $0x28] sm:$0xff] %v957
        %v960 = vld [vmem:[#allocation2] sm:$0xff]
        %v961 = vld [vmem:[#allocation2 + $0x8] sm:$0xff]
        %v962 = vld [vmem:[#allocation2 + $0x10] sm:$0xff]
        %963 = vrot.lane.b32.xlu0 %v539, 33
        %v964 = vpop.permute.xlu0 %963
        %965 = vrot.lane.b32.xlu0 %v543, 33
        %v966 = vpop.permute.xlu0 %965
        %vm967 = vcmask 269312
        %v968 = vsel %vm967, %v964, %v966
        %v972 = vmul.f32 %v960, %v964
        %v973 = vmul.f32 %v961, %v968
        %v974 = vmul.f32 %v962, %v966
        %v975 = vpack.c.bf16 %v972, %v972
        %v976 = vpack.c.bf16 %v973, %v973
        %v977 = vpack.c.bf16 %v974, %v974
        %v981 = vunpack.c.l.b16 %v975
        %v982 = vunpack.c.l.b16 %v976
        %v983 = vunpack.c.l.b16 %v977
        %v984 = vpack.c.b16 %v982, %v981
        %v985 = vpack.c.b16 %v983, %v983
        %986 = vrot.lane.b32.xlu0 %v984, 95
        %v987 = vpop.permute.xlu0 %986
        %988 = vrot.lane.b32.xlu0 %v985, 95
        %v989 = vpop.permute.xlu0 %988
        %v990 = vrot.slane %v987, 4
        %v991 = vrot.slane %v989, 4
        %v992 = vsel %vm793, %v990, %v991
        %vm993 = vcmask 777216
        %v994 = vsel %vm993, %v987, %v992
        %996 = vst [vmem:[#allocation3 + $0x30] sm:$0xff] %v994
        %v997 = vld [vmem:[#allocation2 + $0x10] sm:$0xff]
        %v998 = vld [vmem:[#allocation2 + $0x18] sm:$0xff]
        %v999 = vld [vmem:[#allocation2 + $0x20] sm:$0xff]
        %1000 = vrot.lane.b32.xlu0 %v539, 101
        %v1001 = vpop.permute.xlu0 %1000
        %1002 = vrot.lane.b32.xlu0 %v543, 101
        %v1003 = vpop.permute.xlu0 %1002
        %vm1004 = vcmask 826368
        %v1005 = vsel %vm1004, %v1001, %v1003
        %v1009 = vmul.f32 %v997, %v1001
        %v1010 = vmul.f32 %v998, %v1005
        %v1011 = vmul.f32 %v999, %v1003
        %v1012 = vpack.c.bf16 %v1009, %v1009
        %v1013 = vpack.c.bf16 %v1010, %v1010
        %v1014 = vpack.c.bf16 %v1011, %v1011
        %v1018 = vunpack.c.l.b16 %v1012
        %v1019 = vunpack.c.l.b16 %v1013
        %v1020 = vunpack.c.l.b16 %v1014
        %v1021 = vpack.c.b16 %v1019, %v1018
        %v1022 = vpack.c.b16 %v1020, %v1020
        %1023 = vrot.lane.b32.xlu0 %v1021, 27
        %v1024 = vpop.permute.xlu0 %1023
        %1025 = vrot.lane.b32.xlu0 %v1022, 27
        %v1026 = vpop.permute.xlu0 %1025
        %v1027 = vrot.slane %v1024, 4
        %v1028 = vrot.slane %v1026, 4
        %v1029 = vsel %vm793, %v1027, %v1028
        %vm1030 = vcmask 220160
        %v1031 = vsel %vm1030, %v1024, %v1029
        %1033 = vst [vmem:[#allocation3 + $0x38] sm:$0xff] %v1031
        %v1034 = vld [vmem:[#allocation2] sm:$0xff]
        %v1035 = vld [vmem:[#allocation2 + $0x8] sm:$0xff]
        %v1036 = vld [vmem:[#allocation2 + $0x10] sm:$0xff]
        %v1037 = vpack.c.bf16 %v1034, %v1034
        %v1038 = vpack.c.bf16 %v1035, %v1035
        %v1039 = vpack.c.bf16 %v1036, %v1036
        %v1043 = vunpack.c.l.b16 %v1037
        %v1044 = vunpack.c.l.b16 %v1038
        %v1045 = vunpack.c.l.b16 %v1039
        %v1046 = vpack.c.b16 %v1044, %v1043
        %v1047 = vpack.c.b16 %v1045, %v1045
        %1048 = vrot.lane.b32.xlu0 %v1046, 94
        %v1049 = vpop.permute.xlu0 %1048
        %1050 = vrot.lane.b32.xlu0 %v1047, 94
        %v1051 = vpop.permute.xlu0 %1050
        %v1052 = vrot.slane %v1049, 4
        %v1053 = vrot.slane %v1051, 4
        %v1054 = vsel %vm793, %v1052, %v1053
        %vm1055 = vcmask 769024
        %v1056 = vsel %vm1055, %v1049, %v1054
        %1058 = vst [vmem:[#allocation3 + $0x40] sm:$0xff] %v1056
        %v1059 = vld [vmem:[#allocation2 + $0x10] sm:$0xff]
        %v1060 = vld [vmem:[#allocation2 + $0x18] sm:$0xff]
        %v1061 = vld [vmem:[#allocation2 + $0x20] sm:$0xff]
        %v1062 = vpack.c.bf16 %v1059, %v1059
        %v1063 = vpack.c.bf16 %v1060, %v1060
        %v1064 = vpack.c.bf16 %v1061, %v1061
        %v1068 = vunpack.c.l.b16 %v1062
        %v1069 = vunpack.c.l.b16 %v1063
        %v1070 = vunpack.c.l.b16 %v1064
        %v1071 = vpack.c.b16 %v1069, %v1068
        %v1072 = vpack.c.b16 %v1070, %v1070
        %1073 = vrot.lane.b32.xlu0 %v1071, 26
        %v1074 = vpop.permute.xlu0 %1073
        %1075 = vrot.lane.b32.xlu0 %v1072, 26
        %v1076 = vpop.permute.xlu0 %1075
        %v1077 = vrot.slane %v1074, 4
        %v1078 = vrot.slane %v1076, 4
        %v1079 = vsel %vm793, %v1077, %v1078
        %vm1080 = vcmask 211968
        %v1081 = vsel %vm1080, %v1074, %v1079
        %1083 = vst [vmem:[#allocation3 + $0x48] sm:$0xff] %v1081
        %v1084 = vld [vmem:[#allocation2] sm:$0xff]
        %v1085 = vld [vmem:[#allocation2 + $0x8] sm:$0xff]
        %v1086 = vld [vmem:[#allocation2 + $0x10] sm:$0xff]
        %1087 = vrot.lane.b32.xlu0 %v550, 35
        %v1088 = vpop.permute.xlu0 %1087
        %1089 = vrot.lane.b32.xlu0 %v554, 35
        %v1090 = vpop.permute.xlu0 %1089
        %vm1091 = vcmask 285696
        %v1092 = vsel %vm1091, %v1088, %v1090
        %v1096 = vmul.f32 %v1084, %v1088
        %v1097 = vmul.f32 %v1085, %v1092
        %v1098 = vmul.f32 %v1086, %v1090
        %v1099 = vpack.c.bf16 %v1096, %v1096
        %v1100 = vpack.c.bf16 %v1097, %v1097
        %v1101 = vpack.c.bf16 %v1098, %v1098
        %v1105 = vunpack.c.l.b16 %v1099
        %v1106 = vunpack.c.l.b16 %v1100
        %v1107 = vunpack.c.l.b16 %v1101
        %v1108 = vpack.c.b16 %v1106, %v1105
        %v1109 = vpack.c.b16 %v1107, %v1107
        %1110 = vrot.lane.b32.xlu0 %v1108, 93
        %v1111 = vpop.permute.xlu0 %1110
        %1112 = vrot.lane.b32.xlu0 %v1109, 93
        %v1113 = vpop.permute.xlu0 %1112
        %v1114 = vrot.slane %v1111, 4
        %v1115 = vrot.slane %v1113, 4
        %v1116 = vsel %vm793, %v1114, %v1115
        %vm1117 = vcmask 760832
        %v1118 = vsel %vm1117, %v1111, %v1116
        %1120 = vst [vmem:[#allocation3 + $0x50] sm:$0xff] %v1118
        %v1121 = vld [vmem:[#allocation2 + $0x10] sm:$0xff]
        %v1122 = vld [vmem:[#allocation2 + $0x18] sm:$0xff]
        %v1123 = vld [vmem:[#allocation2 + $0x20] sm:$0xff]
        %1124 = vrot.lane.b32.xlu0 %v550, 103
        %v1125 = vpop.permute.xlu0 %1124
        %1126 = vrot.lane.b32.xlu0 %v554, 103
        %v1127 = vpop.permute.xlu0 %1126
        %vm1128 = vcmask 842752
        %v1129 = vsel %vm1128, %v1125, %v1127
        %v1133 = vmul.f32 %v1121, %v1125
        %v1134 = vmul.f32 %v1122, %v1129
        %v1135 = vmul.f32 %v1123, %v1127
        %v1136 = vpack.c.bf16 %v1133, %v1133
        %v1137 = vpack.c.bf16 %v1134, %v1134
        %v1138 = vpack.c.bf16 %v1135, %v1135
        %v1142 = vunpack.c.l.b16 %v1136
        %v1143 = vunpack.c.l.b16 %v1137
        %v1144 = vunpack.c.l.b16 %v1138
        %v1145 = vpack.c.b16 %v1143, %v1142
        %v1146 = vpack.c.b16 %v1144, %v1144
        %1147 = vrot.lane.b32.xlu0 %v1145, 25
        %v1148 = vpop.permute.xlu0 %1147
        %1149 = vrot.lane.b32.xlu0 %v1146, 25
        %v1150 = vpop.permute.xlu0 %1149
        %v1151 = vrot.slane %v1148, 4
        %v1152 = vrot.slane %v1150, 4
        %v1153 = vsel %vm793, %v1151, %v1152
        %vm1154 = vcmask 203776
        %v1155 = vsel %vm1154, %v1148, %v1153
        %1157 = vst [vmem:[#allocation3 + $0x58] sm:$0xff] %v1155
        %v1158 = vld [vmem:[#allocation2] sm:$0xff]
        %v1159 = vld [vmem:[#allocation2 + $0x8] sm:$0xff]
        %v1160 = vld [vmem:[#allocation2 + $0x10] sm:$0xff]
        %1161 = vrot.lane.b32.xlu0 %v539, 49
        %v1162 = vpop.permute.xlu0 %1161
        %1163 = vrot.lane.b32.xlu0 %v543, 49
        %v1164 = vpop.permute.xlu0 %1163
        %vm1165 = vcmask 400384
        %v1166 = vsel %vm1165, %v1162, %v1164
        %v1170 = vmul.f32 %v1158, %v1162
        %v1171 = vmul.f32 %v1159, %v1166
        %v1172 = vmul.f32 %v1160, %v1164
        %v1173 = vpack.c.bf16 %v1170, %v1170
        %v1174 = vpack.c.bf16 %v1171, %v1171
        %v1175 = vpack.c.bf16 %v1172, %v1172
        %v1179 = vunpack.c.l.b16 %v1173
        %v1180 = vunpack.c.l.b16 %v1174
        %v1181 = vunpack.c.l.b16 %v1175
        %v1182 = vpack.c.b16 %v1180, %v1179
        %v1183 = vpack.c.b16 %v1181, %v1181
        %1184 = vrot.lane.b32.xlu0 %v1182, 79
        %v1185 = vpop.permute.xlu0 %1184
        %1186 = vrot.lane.b32.xlu0 %v1183, 79
        %v1187 = vpop.permute.xlu0 %1186
        %v1188 = vrot.slane %v1185, 4
        %v1189 = vrot.slane %v1187, 4
        %v1190 = vsel %vm793, %v1188, %v1189
        %vm1191 = vcmask 646144
        %v1192 = vsel %vm1191, %v1185, %v1190
        %1194 = vst [vmem:[#allocation3 + $0x60] sm:$0xff] %v1192
        %v1195 = vld [vmem:[#allocation2 + $0x10] sm:$0xff]
        %v1196 = vld [vmem:[#allocation2 + $0x18] sm:$0xff]
        %v1197 = vld [vmem:[#allocation2 + $0x20] sm:$0xff]
        %1198 = vrot.lane.b32.xlu0 %v539, 117
        %v1199 = vpop.permute.xlu0 %1198
        %1200 = vrot.lane.b32.xlu0 %v543, 117
        %v1201 = vpop.permute.xlu0 %1200
        %vm1202 = vcmask 957440
        %v1203 = vsel %vm1202, %v1199, %v1201
        %v1207 = vmul.f32 %v1195, %v1199
        %v1208 = vmul.f32 %v1196, %v1203
        %v1209 = vmul.f32 %v1197, %v1201
        %v1210 = vpack.c.bf16 %v1207, %v1207
        %v1211 = vpack.c.bf16 %v1208, %v1208
        %v1212 = vpack.c.bf16 %v1209, %v1209
        %v1216 = vunpack.c.l.b16 %v1210
        %v1217 = vunpack.c.l.b16 %v1211
        %v1218 = vunpack.c.l.b16 %v1212
        %v1219 = vpack.c.b16 %v1217, %v1216
        %v1220 = vpack.c.b16 %v1218, %v1218
        %1221 = vrot.lane.b32.xlu0 %v1219, 11
        %v1222 = vpop.permute.xlu0 %1221
        %1223 = vrot.lane.b32.xlu0 %v1220, 11
        %v1224 = vpop.permute.xlu0 %1223
        %v1225 = vrot.slane %v1222, 4
        %v1226 = vrot.slane %v1224, 4
        %v1227 = vsel %vm793, %v1225, %v1226
        %vm1228 = vcmask 89088
        %v1229 = vsel %vm1228, %v1222, %v1227
        %1231 = vst [vmem:[#allocation3 + $0x68] sm:$0xff] %v1229
        %v1232 = vld [vmem:[#allocation2] sm:$0xff]
        %v1233 = vld [vmem:[#allocation2 + $0x8] sm:$0xff]
        %v1234 = vld [vmem:[#allocation2 + $0x10] sm:$0xff]
        %v1235 = vpack.c.bf16 %v1232, %v1232
        %v1236 = vpack.c.bf16 %v1233, %v1233
        %v1237 = vpack.c.bf16 %v1234, %v1234
        %v1241 = vunpack.c.l.b16 %v1235
        %v1242 = vunpack.c.l.b16 %v1236
        %v1243 = vunpack.c.l.b16 %v1237
        %v1244 = vpack.c.b16 %v1242, %v1241
        %v1245 = vpack.c.b16 %v1243, %v1243
        %1246 = vrot.lane.b32.xlu0 %v1244, 78
        %v1247 = vpop.permute.xlu0 %1246
        %1248 = vrot.lane.b32.xlu0 %v1245, 78
        %v1249 = vpop.permute.xlu0 %1248
        %v1250 = vrot.slane %v1247, 4
        %v1251 = vrot.slane %v1249, 4
        %v1252 = vsel %vm793, %v1250, %v1251
        %vm1253 = vcmask 637952
        %v1254 = vsel %vm1253, %v1247, %v1252
        %1256 = vst [vmem:[#allocation3 + $0x70] sm:$0xff] %v1254
        %v1257 = vld [vmem:[#allocation2 + $0x10] sm:$0xff]
        %v1258 = vld [vmem:[#allocation2 + $0x18] sm:$0xff]
        %v1259 = vld [vmem:[#allocation2 + $0x20] sm:$0xff]
        %v1260 = vpack.c.bf16 %v1257, %v1257
        %v1261 = vpack.c.bf16 %v1258, %v1258
        %v1262 = vpack.c.bf16 %v1259, %v1259
        %v1266 = vunpack.c.l.b16 %v1260
        %v1267 = vunpack.c.l.b16 %v1261
        %v1268 = vunpack.c.l.b16 %v1262
        %v1269 = vpack.c.b16 %v1267, %v1266
        %v1270 = vpack.c.b16 %v1268, %v1268
        %1271 = vrot.lane.b32.xlu0 %v1269, 10
        %v1272 = vpop.permute.xlu0 %1271
        %1273 = vrot.lane.b32.xlu0 %v1270, 10
        %v1274 = vpop.permute.xlu0 %1273
        %v1275 = vrot.slane %v1272, 4
        %v1276 = vrot.slane %v1274, 4
        %v1277 = vsel %vm793, %v1275, %v1276
        %vm1278 = vcmask 80896
        %v1279 = vsel %vm1278, %v1272, %v1277
        %1281 = vst [vmem:[#allocation3 + $0x78] sm:$0xff] %v1279
        %v1282 = vld [vmem:[#allocation2] sm:$0xff]
        %v1283 = vld [vmem:[#allocation2 + $0x8] sm:$0xff]
        %v1284 = vld [vmem:[#allocation2 + $0x10] sm:$0xff]
        %1285 = vrot.lane.b32.xlu0 %v550, 51
        %v1286 = vpop.permute.xlu0 %1285
        %1287 = vrot.lane.b32.xlu0 %v554, 51
        %v1288 = vpop.permute.xlu0 %1287
        %vm1289 = vcmask 416768
        %v1290 = vsel %vm1289, %v1286, %v1288
        %v1294 = vmul.f32 %v1282, %v1286
        %v1295 = vmul.f32 %v1283, %v1290
        %v1296 = vmul.f32 %v1284, %v1288
        %v1297 = vpack.c.bf16 %v1294, %v1294
        %v1298 = vpack.c.bf16 %v1295, %v1295
        %v1299 = vpack.c.bf16 %v1296, %v1296
        %v1303 = vunpack.c.l.b16 %v1297
        %v1304 = vunpack.c.l.b16 %v1298
        %v1305 = vunpack.c.l.b16 %v1299
        %v1306 = vpack.c.b16 %v1304, %v1303
        %v1307 = vpack.c.b16 %v1305, %v1305
        %1308 = vrot.lane.b32.xlu0 %v1306, 77
        %v1309 = vpop.permute.xlu0 %1308
        %1310 = vrot.lane.b32.xlu0 %v1307, 77
        %v1311 = vpop.permute.xlu0 %1310
        %v1312 = vrot.slane %v1309, 4
        %v1313 = vrot.slane %v1311, 4
        %v1314 = vsel %vm793, %v1312, %v1313
        %vm1315 = vcmask 629760
        %v1316 = vsel %vm1315, %v1309, %v1314
        %1318 = vst [vmem:[#allocation3 + $0x80] sm:$0xff] %v1316
        %v1319 = vld [vmem:[#allocation2 + $0x10] sm:$0xff]
        %v1320 = vld [vmem:[#allocation2 + $0x18] sm:$0xff]
        %v1321 = vld [vmem:[#allocation2 + $0x20] sm:$0xff]
        %1322 = vrot.lane.b32.xlu0 %v550, 119
        %v1323 = vpop.permute.xlu0 %1322
        %1324 = vrot.lane.b32.xlu0 %v554, 119
        %v1325 = vpop.permute.xlu0 %1324
        %vm1326 = vcmask 973824
        %v1327 = vsel %vm1326, %v1323, %v1325
        %v1331 = vmul.f32 %v1319, %v1323
        %v1332 = vmul.f32 %v1320, %v1327
        %v1333 = vmul.f32 %v1321, %v1325
        %v1334 = vpack.c.bf16 %v1331, %v1331
        %v1335 = vpack.c.bf16 %v1332, %v1332
        %v1336 = vpack.c.bf16 %v1333, %v1333
        %v1340 = vunpack.c.l.b16 %v1334
        %v1341 = vunpack.c.l.b16 %v1335
        %v1342 = vunpack.c.l.b16 %v1336
        %v1343 = vpack.c.b16 %v1341, %v1340
        %v1344 = vpack.c.b16 %v1342, %v1342
        %1345 = vrot.lane.b32.xlu0 %v1343, 9
        %v1346 = vpop.permute.xlu0 %1345
        %1347 = vrot.lane.b32.xlu0 %v1344, 9
        %v1348 = vpop.permute.xlu0 %1347
        %v1349 = vrot.slane %v1346, 4
        %v1350 = vrot.slane %v1348, 4
        %v1351 = vsel %vm793, %v1349, %v1350
        %vm1352 = vcmask 72704
        %v1353 = vsel %vm1352, %v1346, %v1351
        %1355 = vst [vmem:[#allocation3 + $0x88] sm:$0xff] %v1353
        %v1356 = vld [vmem:[#allocation3] sm:$0xff]
        %v1357 = vld [vmem:[#allocation3 + $0x8] sm:$0xff]
        %v1358 = vld [vmem:[#allocation3 + $0x10] sm:$0xff]
        %v1359 = vld [vmem:[#allocation3 + $0x18] sm:$0xff]
        %v1360 = vld [vmem:[#allocation3 + $0x20] sm:$0xff]
        %v1361 = vld [vmem:[#allocation3 + $0x28] sm:$0xff]
        %v1362 = vld [vmem:[#allocation3 + $0x30] sm:$0xff]
        %v1363 = vld [vmem:[#allocation3 + $0x38] sm:$0xff]
        %v1364 = vld [vmem:[#allocation3 + $0x40] sm:$0xff]
        %v1365 = vld [vmem:[#allocation3 + $0x48] sm:$0xff]
        %v1366 = vld [vmem:[#allocation3 + $0x50] sm:$0xff]
        %v1367 = vld [vmem:[#allocation3 + $0x58] sm:$0xff]
        %v1368 = vld [vmem:[#allocation3 + $0x60] sm:$0xff]
        %v1369 = vld [vmem:[#allocation3 + $0x68] sm:$0xff]
        %v1370 = vld [vmem:[#allocation3 + $0x70] sm:$0xff]
        %v1371 = vld [vmem:[#allocation3 + $0x78] sm:$0xff]
        %v1372 = vld [vmem:[#allocation3 + $0x80] sm:$0xff]
        %v1373 = vld [vmem:[#allocation3 + $0x88] sm:$0xff]
        %v1374 = vld [vmem:[%s6] sm:$0xf]
        %v1375 = vld [vmem:[%s7] sm:$0xff]
        %1377 = vset.pattern.permute.xlu0 0
        %1378 = vperm.xlu0 %1377, %v1375
        %v1379 = vpop.permute.xlu0 %1378
        %v1399 = vunpack.c.l.b16 %v1356
        %v1400 = vunpack.c.h.b16 %v1356
        %v1401 = vunpack.c.l.b16 %v1357
        %v1402 = vunpack.c.h.b16 %v1357
        %v1403 = vunpack.c.l.b16 %v1358
        %v1404 = vunpack.c.h.b16 %v1358
        %v1405 = vunpack.c.l.b16 %v1359
        %v1406 = vunpack.c.h.b16 %v1359
        %v1407 = vunpack.c.l.b16 %v1360
        %v1408 = vunpack.c.h.b16 %v1360
        %v1409 = vunpack.c.l.b16 %v1361
        %v1410 = vunpack.c.h.b16 %v1361
        %v1411 = vunpack.c.l.b16 %v1362
        %v1412 = vunpack.c.h.b16 %v1362
        %v1413 = vunpack.c.l.b16 %v1363
        %v1414 = vunpack.c.h.b16 %v1363
        %v1415 = vunpack.c.l.b16 %v1364
        %v1416 = vunpack.c.h.b16 %v1364
        %v1417 = vunpack.c.l.b16 %v1365
        %v1418 = vunpack.c.h.b16 %v1365
        %v1419 = vunpack.c.l.b16 %v1366
        %v1420 = vunpack.c.h.b16 %v1366
        %v1421 = vunpack.c.l.b16 %v1367
        %v1422 = vunpack.c.h.b16 %v1367
        %v1423 = vunpack.c.l.b16 %v1368
        %v1424 = vunpack.c.h.b16 %v1368
        %v1425 = vunpack.c.l.b16 %v1369
        %v1426 = vunpack.c.h.b16 %v1369
        %v1427 = vunpack.c.l.b16 %v1370
        %v1428 = vunpack.c.h.b16 %v1370
        %v1429 = vunpack.c.l.b16 %v1371
        %v1430 = vunpack.c.h.b16 %v1371
        %v1431 = vunpack.c.l.b16 %v1372
        %v1432 = vunpack.c.h.b16 %v1372
        %v1433 = vunpack.c.l.b16 %v1373
        %v1434 = vunpack.c.h.b16 %v1373
        %v1435 = vpack.c.b16 %v1403, %v1399
        %v1436 = vpack.c.b16 %v1404, %v1400
        %v1437 = vpack.c.b16 %v1405, %v1401
        %v1438 = vpack.c.b16 %v1406, %v1402
        %v1439 = vpack.c.b16 %v1411, %v1407
        %v1440 = vpack.c.b16 %v1412, %v1408
        %v1441 = vpack.c.b16 %v1413, %v1409
        %v1442 = vpack.c.b16 %v1414, %v1410
        %v1443 = vpack.c.b16 %v1419, %v1415
        %v1444 = vpack.c.b16 %v1420, %v1416
        %v1445 = vpack.c.b16 %v1421, %v1417
        %v1446 = vpack.c.b16 %v1422, %v1418
        %v1447 = vpack.c.b16 %v1427, %v1423
        %v1448 = vpack.c.b16 %v1428, %v1424
        %v1449 = vpack.c.b16 %v1429, %v1425
        %v1450 = vpack.c.b16 %v1430, %v1426
        %v1451 = vpack.c.b16 %v1431, %v1431
        %v1452 = vpack.c.b16 %v1432, %v1432
        %v1453 = vpack.c.b16 %v1433, %v1433
        %v1454 = vpack.c.b16 %v1434, %v1434
        %vm1471 = vcmask 588800
        %v1473 = vsel %vm1471, %v1374, 0
        %vm1475 = vcmask 1043456
        %v1477 = vsel %vm1475, %v1451, 0
        %v1480 = vsel %vm1475, %v1452, 0
        %v1483 = vsel %vm1475, %v1453, 0
        %v1486 = vsel %vm1475, %v1454, 0
        %1488 = vmatprep.subr.bf16.mxu0 %v1436
        %1489 = vmatpush1.bf16.msra.mxu0 %v1435
        %1490 = vmatprep.subr.bf16.mxu0 %v1440
        %1491 = vmatpush1.bf16.msra.mxu0 %v1439
        %1492 = vmatprep.subr.bf16.mxu0 %v1444
        %1493 = vmatpush1.bf16.msra.mxu0 %v1443
        %1494 = vmatprep.subr.bf16.mxu0 %v1448
        %1495 = vmatpush1.bf16.msra.mxu0 %v1447
        %1496 = vmatprep.subr.bf16.mxu0 %v1480
        %1497 = vmatpush1.bf16.msra.mxu0 %v1477
        %1498 = vmatprep.subr.bf16.mxu0 0
        %1499 = vmatpush1.bf16.msra.mxu0 0
        %1500 = vmatprep.subr.bf16.mxu0 0
        %1501 = vmatpush1.bf16.msra.mxu0 0
        %1502 = vmatprep.subr.bf16.mxu0 0
        %1503 = vmatpush1.bf16.msra.mxu0 0
        %1504 = vmatprep.subr.bf16.mxu0 0
        %1505 = vmatpush1.bf16.msra.mxu0 0
        %1506 = vmatprep.subr.bf16.mxu0 0
        %1507 = vmatpush1.bf16.msra.mxu0 0
        %1508 = vmatprep.subr.bf16.mxu0 0
        %1509 = vmatpush1.bf16.msra.mxu0 0
        %1510 = vmatprep.subr.bf16.mxu0 0
        %1511 = vmatpush1.bf16.msra.mxu0 0
        %1512 = vmatprep.subr.bf16.mxu0 0
        %1513 = vmatpush1.bf16.msra.mxu0 0
        %1514 = vmatprep.subr.bf16.mxu0 0
        %1515 = vmatpush1.bf16.msra.mxu0 0
        %1516 = vmatprep.subr.bf16.mxu0 0
        %1517 = vmatpush1.bf16.msra.mxu0 0
        %1518 = vmatprep.subr.bf16.mxu0 0
        %1519 = vmatpush1.bf16.msra.mxu0 0
        %1520 = vmatprep.mubr.bf16.mxu0 0
        %1521 = vmatmul.mubr.bf16.gmra.mrb[0].mxu0 %v1473
        %v1522 = vpop.f32.mrb[0].mxu0
        %v1523 = vadd.f32 %v1379, %v1522
        %v1524 = vpop.f32.mrb[0].mxu0
        %v1525 = vadd.f32 %v1379, %v1524
        %v1526 = vpop.f32.mrb[0].mxu0
        %v1527 = vpop.f32.mrb[0].mxu0
        %1528 = vdwg.mxu0
        %1529 = vmatprep.subr.bf16.mxu0 %v1438
        %1530 = vmatpush1.bf16.msra.mxu0 %v1437
        %1531 = vmatprep.subr.bf16.mxu0 %v1442
        %1532 = vmatpush1.bf16.msra.mxu0 %v1441
        %1533 = vmatprep.subr.bf16.mxu0 %v1446
        %1534 = vmatpush1.bf16.msra.mxu0 %v1445
        %1535 = vmatprep.subr.bf16.mxu0 %v1450
        %1536 = vmatpush1.bf16.msra.mxu0 %v1449
        %1537 = vmatprep.subr.bf16.mxu0 %v1486
        %1538 = vmatpush1.bf16.msra.mxu0 %v1483
        %1539 = vmatprep.subr.bf16.mxu0 0
        %1540 = vmatpush1.bf16.msra.mxu0 0
        %1541 = vmatprep.subr.bf16.mxu0 0
        %1542 = vmatpush1.bf16.msra.mxu0 0
        %1543 = vmatprep.subr.bf16.mxu0 0
        %1544 = vmatpush1.bf16.msra.mxu0 0
        %1545 = vmatprep.subr.bf16.mxu0 0
        %1546 = vmatpush1.bf16.msra.mxu0 0
        %1547 = vmatprep.subr.bf16.mxu0 0
        %1548 = vmatpush1.bf16.msra.mxu0 0
        %1549 = vmatprep.subr.bf16.mxu0 0
        %1550 = vmatpush1.bf16.msra.mxu0 0
        %1551 = vmatprep.subr.bf16.mxu0 0
        %1552 = vmatpush1.bf16.msra.mxu0 0
        %1553 = vmatprep.subr.bf16.mxu0 0
        %1554 = vmatpush1.bf16.msra.mxu0 0
        %1555 = vmatprep.subr.bf16.mxu0 0
        %1556 = vmatpush1.bf16.msra.mxu0 0
        %1557 = vmatprep.subr.bf16.mxu0 0
        %1558 = vmatpush1.bf16.msra.mxu0 0
        %1559 = vmatprep.subr.bf16.mxu0 0
        %1560 = vmatpush1.bf16.msra.mxu0 0
        %1561 = vmatprep.mubr.bf16.mxu0 0
        %1562 = vmatmul.mubr.bf16.gmra.mrb[0].mxu0 %v1473
        %v1563 = vpop.f32.mrb[0].mxu0
        %v1564 = vadd.f32 %v1379, %v1563
        %v1565 = vpop.f32.mrb[0].mxu0
        %v1566 = vadd.f32 %v1379, %v1565
        %v1567 = vpop.f32.mrb[0].mxu0
        %v1568 = vpop.f32.mrb[0].mxu0
        %1569 = vdwg.mxu0
        %v1570 = vmax.f32 %v1523, 0.0
        %v1571 = vmax.f32 %v1525, 0.0
        %v1572 = vmax.f32 %v1564, 0.0
        %v1573 = vmax.f32 %v1566, 0.0
        %1576 = vrot.lane.b32.xlu0 %v1570, 34
        %v1577 = vpop.permute.xlu0 %1576
        %1578 = vrot.lane.b32.xlu0 %v1571, 34
        %v1579 = vpop.permute.xlu0 %1578
        %v1580 = vsel %vm524, %v1577, %v1579
        %1584 = vst.msk [vmem:[#allocation2] sm:$0xff] %vm743, %v1577
        %1585 = vst [vmem:[#allocation2 + $0x8] sm:$0xff] %v1580
        %1586 = vst.msk [vmem:[#allocation2 + $0x10] sm:$0xff] %vm524, %v1579
        %1589 = vrot.lane.b32.xlu0 %v1572, 102
        %v1590 = vpop.permute.xlu0 %1589
        %1591 = vrot.lane.b32.xlu0 %v1573, 102
        %v1592 = vpop.permute.xlu0 %1591
        %v1593 = vsel %vm753, %v1590, %v1592
        %1597 = vst.msk [vmem:[#allocation2 + $0x10] sm:$0xff] %vm530, %v1590
        %1598 = vst [vmem:[#allocation2 + $0x18] sm:$0xff] %v1593
        %1599 = vst.msk [vmem:[#allocation2 + $0x20] sm:$0xff] %vm753, %v1592
        %v1600 = vld [vmem:[#allocation2] sm:$0xff]
        %v1601 = vld [vmem:[#allocation2 + $0x8] sm:$0xff]
        %v1602 = vld [vmem:[#allocation2 + $0x10] sm:$0xff]
        %v1603 = vmul.f32 %v1600, %v765
        %v1604 = vmul.f32 %v1601, %v769
        %v1605 = vmul.f32 %v1602, %v767
        %v1606 = vpack.c.bf16 %v1603, %v1603
        %v1607 = vpack.c.bf16 %v1604, %v1604
        %v1608 = vpack.c.bf16 %v1605, %v1605
        %v1612 = vunpack.c.l.b16 %v1606
        %v1613 = vunpack.c.l.b16 %v1607
        %v1614 = vunpack.c.l.b16 %v1608
        %v1615 = vpack.c.b16 %v1613, %v1612
        %v1616 = vpack.c.b16 %v1614, %v1614
        %1617 = vrot.lane.b32.xlu0 %v1615, 111
        %v1618 = vpop.permute.xlu0 %1617
        %1619 = vrot.lane.b32.xlu0 %v1616, 111
        %v1620 = vpop.permute.xlu0 %1619
        %v1621 = vrot.slane %v1618, 4
        %v1622 = vrot.slane %v1620, 4
        %v1623 = vsel %vm793, %v1621, %v1622
        %v1624 = vsel %vm795, %v1618, %v1623
        %1626 = vst [vmem:[#allocation3] sm:$0xff] %v1624
        %v1627 = vld [vmem:[#allocation2 + $0x10] sm:$0xff]
        %v1628 = vld [vmem:[#allocation2 + $0x18] sm:$0xff]
        %v1629 = vld [vmem:[#allocation2 + $0x20] sm:$0xff]
        %v1630 = vmul.f32 %v1627, %v803
        %v1631 = vmul.f32 %v1628, %v807
        %v1632 = vmul.f32 %v1629, %v805
        %v1633 = vpack.c.bf16 %v1630, %v1630
        %v1634 = vpack.c.bf16 %v1631, %v1631
        %v1635 = vpack.c.bf16 %v1632, %v1632
        %v1639 = vunpack.c.l.b16 %v1633
        %v1640 = vunpack.c.l.b16 %v1634
        %v1641 = vunpack.c.l.b16 %v1635
        %v1642 = vpack.c.b16 %v1640, %v1639
        %v1643 = vpack.c.b16 %v1641, %v1641
        %1644 = vrot.lane.b32.xlu0 %v1642, 43
        %v1645 = vpop.permute.xlu0 %1644
        %1646 = vrot.lane.b32.xlu0 %v1643, 43
        %v1647 = vpop.permute.xlu0 %1646
        %v1648 = vrot.slane %v1645, 4
        %v1649 = vrot.slane %v1647, 4
        %v1650 = vsel %vm793, %v1648, %v1649
        %v1651 = vsel %vm832, %v1645, %v1650
        %1653 = vst [vmem:[#allocation3 + $0x8] sm:$0xff] %v1651
        %v1654 = vld [vmem:[#allocation2] sm:$0xff]
        %v1655 = vld [vmem:[#allocation2 + $0x8] sm:$0xff]
        %v1656 = vld [vmem:[#allocation2 + $0x10] sm:$0xff]
        %v1657 = vpack.c.bf16 %v1654, %v1654
        %v1658 = vpack.c.bf16 %v1655, %v1655
        %v1659 = vpack.c.bf16 %v1656, %v1656
        %v1663 = vunpack.c.l.b16 %v1657
        %v1664 = vunpack.c.l.b16 %v1658
        %v1665 = vunpack.c.l.b16 %v1659
        %v1666 = vpack.c.b16 %v1664, %v1663
        %v1667 = vpack.c.b16 %v1665, %v1665
        %1668 = vrot.lane.b32.xlu0 %v1666, 110
        %v1669 = vpop.permute.xlu0 %1668
        %1670 = vrot.lane.b32.xlu0 %v1667, 110
        %v1671 = vpop.permute.xlu0 %1670
        %v1672 = vrot.slane %v1669, 4
        %v1673 = vrot.slane %v1671, 4
        %v1674 = vsel %vm793, %v1672, %v1673
        %v1675 = vsel %vm857, %v1669, %v1674
        %1677 = vst [vmem:[#allocation3 + $0x10] sm:$0xff] %v1675
        %v1678 = vld [vmem:[#allocation2 + $0x10] sm:$0xff]
        %v1679 = vld [vmem:[#allocation2 + $0x18] sm:$0xff]
        %v1680 = vld [vmem:[#allocation2 + $0x20] sm:$0xff]
        %v1681 = vpack.c.bf16 %v1678, %v1678
        %v1682 = vpack.c.bf16 %v1679, %v1679
        %v1683 = vpack.c.bf16 %v1680, %v1680
        %v1687 = vunpack.c.l.b16 %v1681
        %v1688 = vunpack.c.l.b16 %v1682
        %v1689 = vunpack.c.l.b16 %v1683
        %v1690 = vpack.c.b16 %v1688, %v1687
        %v1691 = vpack.c.b16 %v1689, %v1689
        %1692 = vrot.lane.b32.xlu0 %v1690, 42
        %v1693 = vpop.permute.xlu0 %1692
        %1694 = vrot.lane.b32.xlu0 %v1691, 42
        %v1695 = vpop.permute.xlu0 %1694
        %v1696 = vrot.slane %v1693, 4
        %v1697 = vrot.slane %v1695, 4
        %v1698 = vsel %vm793, %v1696, %v1697
        %v1699 = vsel %vm882, %v1693, %v1698
        %1701 = vst [vmem:[#allocation3 + $0x18] sm:$0xff] %v1699
        %v1702 = vld [vmem:[#allocation2] sm:$0xff]
        %v1703 = vld [vmem:[#allocation2 + $0x8] sm:$0xff]
        %v1704 = vld [vmem:[#allocation2 + $0x10] sm:$0xff]
        %v1705 = vmul.f32 %v1702, %v890
        %v1706 = vmul.f32 %v1703, %v894
        %v1707 = vmul.f32 %v1704, %v892
        %v1708 = vpack.c.bf16 %v1705, %v1705
        %v1709 = vpack.c.bf16 %v1706, %v1706
        %v1710 = vpack.c.bf16 %v1707, %v1707
        %v1714 = vunpack.c.l.b16 %v1708
        %v1715 = vunpack.c.l.b16 %v1709
        %v1716 = vunpack.c.l.b16 %v1710
        %v1717 = vpack.c.b16 %v1715, %v1714
        %v1718 = vpack.c.b16 %v1716, %v1716
        %1719 = vrot.lane.b32.xlu0 %v1717, 109
        %v1720 = vpop.permute.xlu0 %1719
        %1721 = vrot.lane.b32.xlu0 %v1718, 109
        %v1722 = vpop.permute.xlu0 %1721
        %v1723 = vrot.slane %v1720, 4
        %v1724 = vrot.slane %v1722, 4
        %v1725 = vsel %vm793, %v1723, %v1724
        %v1726 = vsel %vm919, %v1720, %v1725
        %1728 = vst [vmem:[#allocation3 + $0x20] sm:$0xff] %v1726
        %v1729 = vld [vmem:[#allocation2 + $0x10] sm:$0xff]
        %v1730 = vld [vmem:[#allocation2 + $0x18] sm:$0xff]
        %v1731 = vld [vmem:[#allocation2 + $0x20] sm:$0xff]
        %v1732 = vmul.f32 %v1729, %v927
        %v1733 = vmul.f32 %v1730, %v931
        %v1734 = vmul.f32 %v1731, %v929
        %v1735 = vpack.c.bf16 %v1732, %v1732
        %v1736 = vpack.c.bf16 %v1733, %v1733
        %v1737 = vpack.c.bf16 %v1734, %v1734
        %v1741 = vunpack.c.l.b16 %v1735
        %v1742 = vunpack.c.l.b16 %v1736
        %v1743 = vunpack.c.l.b16 %v1737
        %v1744 = vpack.c.b16 %v1742, %v1741
        %v1745 = vpack.c.b16 %v1743, %v1743
        %1746 = vrot.lane.b32.xlu0 %v1744, 41
        %v1747 = vpop.permute.xlu0 %1746
        %1748 = vrot.lane.b32.xlu0 %v1745, 41
        %v1749 = vpop.permute.xlu0 %1748
        %v1750 = vrot.slane %v1747, 4
        %v1751 = vrot.slane %v1749, 4
        %v1752 = vsel %vm793, %v1750, %v1751
        %v1753 = vsel %vm956, %v1747, %v1752
        %1755 = vst [vmem:[#allocation3 + $0x28] sm:$0xff] %v1753
        %v1756 = vld [vmem:[#allocation2] sm:$0xff]
        %v1757 = vld [vmem:[#allocation2 + $0x8] sm:$0xff]
        %v1758 = vld [vmem:[#allocation2 + $0x10] sm:$0xff]
        %v1759 = vmul.f32 %v1756, %v964
        %v1760 = vmul.f32 %v1757, %v968
        %v1761 = vmul.f32 %v1758, %v966
        %v1762 = vpack.c.bf16 %v1759, %v1759
        %v1763 = vpack.c.bf16 %v1760, %v1760
        %v1764 = vpack.c.bf16 %v1761, %v1761
        %v1768 = vunpack.c.l.b16 %v1762
        %v1769 = vunpack.c.l.b16 %v1763
        %v1770 = vunpack.c.l.b16 %v1764
        %v1771 = vpack.c.b16 %v1769, %v1768
        %v1772 = vpack.c.b16 %v1770, %v1770
        %1773 = vrot.lane.b32.xlu0 %v1771, 95
        %v1774 = vpop.permute.xlu0 %1773
        %1775 = vrot.lane.b32.xlu0 %v1772, 95
        %v1776 = vpop.permute.xlu0 %1775
        %v1777 = vrot.slane %v1774, 4
        %v1778 = vrot.slane %v1776, 4
        %v1779 = vsel %vm793, %v1777, %v1778
        %v1780 = vsel %vm993, %v1774, %v1779
        %1782 = vst [vmem:[#allocation3 + $0x30] sm:$0xff] %v1780
        %v1783 = vld [vmem:[#allocation2 + $0x10] sm:$0xff]
        %v1784 = vld [vmem:[#allocation2 + $0x18] sm:$0xff]
        %v1785 = vld [vmem:[#allocation2 + $0x20] sm:$0xff]
        %v1786 = vmul.f32 %v1783, %v1001
        %v1787 = vmul.f32 %v1784, %v1005
        %v1788 = vmul.f32 %v1785, %v1003
        %v1789 = vpack.c.bf16 %v1786, %v1786
        %v1790 = vpack.c.bf16 %v1787, %v1787
        %v1791 = vpack.c.bf16 %v1788, %v1788
        %v1795 = vunpack.c.l.b16 %v1789
        %v1796 = vunpack.c.l.b16 %v1790
        %v1797 = vunpack.c.l.b16 %v1791
        %v1798 = vpack.c.b16 %v1796, %v1795
        %v1799 = vpack.c.b16 %v1797, %v1797
        %1800 = vrot.lane.b32.xlu0 %v1798, 27
        %v1801 = vpop.permute.xlu0 %1800
        %1802 = vrot.lane.b32.xlu0 %v1799, 27
        %v1803 = vpop.permute.xlu0 %1802
        %v1804 = vrot.slane %v1801, 4
        %v1805 = vrot.slane %v1803, 4
        %v1806 = vsel %vm793, %v1804, %v1805
        %v1807 = vsel %vm1030, %v1801, %v1806
        %1809 = vst [vmem:[#allocation3 + $0x38] sm:$0xff] %v1807
        %v1810 = vld [vmem:[#allocation2] sm:$0xff]
        %v1811 = vld [vmem:[#allocation2 + $0x8] sm:$0xff]
        %v1812 = vld [vmem:[#allocation2 + $0x10] sm:$0xff]
        %v1813 = vpack.c.bf16 %v1810, %v1810
        %v1814 = vpack.c.bf16 %v1811, %v1811
        %v1815 = vpack.c.bf16 %v1812, %v1812
        %v1819 = vunpack.c.l.b16 %v1813
        %v1820 = vunpack.c.l.b16 %v1814
        %v1821 = vunpack.c.l.b16 %v1815
        %v1822 = vpack.c.b16 %v1820, %v1819
        %v1823 = vpack.c.b16 %v1821, %v1821
        %1824 = vrot.lane.b32.xlu0 %v1822, 94
        %v1825 = vpop.permute.xlu0 %1824
        %1826 = vrot.lane.b32.xlu0 %v1823, 94
        %v1827 = vpop.permute.xlu0 %1826
        %v1828 = vrot.slane %v1825, 4
        %v1829 = vrot.slane %v1827, 4
        %v1830 = vsel %vm793, %v1828, %v1829
        %v1831 = vsel %vm1055, %v1825, %v1830
        %1833 = vst [vmem:[#allocation3 + $0x40] sm:$0xff] %v1831
        %v1834 = vld [vmem:[#allocation2 + $0x10] sm:$0xff]
        %v1835 = vld [vmem:[#allocation2 + $0x18] sm:$0xff]
        %v1836 = vld [vmem:[#allocation2 + $0x20] sm:$0xff]
        %v1837 = vpack.c.bf16 %v1834, %v1834
        %v1838 = vpack.c.bf16 %v1835, %v1835
        %v1839 = vpack.c.bf16 %v1836, %v1836
        %v1843 = vunpack.c.l.b16 %v1837
        %v1844 = vunpack.c.l.b16 %v1838
        %v1845 = vunpack.c.l.b16 %v1839
        %v1846 = vpack.c.b16 %v1844, %v1843
        %v1847 = vpack.c.b16 %v1845, %v1845
        %1848 = vrot.lane.b32.xlu0 %v1846, 26
        %v1849 = vpop.permute.xlu0 %1848
        %1850 = vrot.lane.b32.xlu0 %v1847, 26
        %v1851 = vpop.permute.xlu0 %1850
        %v1852 = vrot.slane %v1849, 4
        %v1853 = vrot.slane %v1851, 4
        %v1854 = vsel %vm793, %v1852, %v1853
        %v1855 = vsel %vm1080, %v1849, %v1854
        %1857 = vst [vmem:[#allocation3 + $0x48] sm:$0xff] %v1855
        %v1858 = vld [vmem:[#allocation2] sm:$0xff]
        %v1859 = vld [vmem:[#allocation2 + $0x8] sm:$0xff]
        %v1860 = vld [vmem:[#allocation2 + $0x10] sm:$0xff]
        %v1861 = vmul.f32 %v1858, %v1088
        %v1862 = vmul.f32 %v1859, %v1092
        %v1863 = vmul.f32 %v1860, %v1090
        %v1864 = vpack.c.bf16 %v1861, %v1861
        %v1865 = vpack.c.bf16 %v1862, %v1862
        %v1866 = vpack.c.bf16 %v1863, %v1863
        %v1870 = vunpack.c.l.b16 %v1864
        %v1871 = vunpack.c.l.b16 %v1865
        %v1872 = vunpack.c.l.b16 %v1866
        %v1873 = vpack.c.b16 %v1871, %v1870
        %v1874 = vpack.c.b16 %v1872, %v1872
        %1875 = vrot.lane.b32.xlu0 %v1873, 93
        %v1876 = vpop.permute.xlu0 %1875
        %1877 = vrot.lane.b32.xlu0 %v1874, 93
        %v1878 = vpop.permute.xlu0 %1877
        %v1879 = vrot.slane %v1876, 4
        %v1880 = vrot.slane %v1878, 4
        %v1881 = vsel %vm793, %v1879, %v1880
        %v1882 = vsel %vm1117, %v1876, %v1881
        %1884 = vst [vmem:[#allocation3 + $0x50] sm:$0xff] %v1882
        %v1885 = vld [vmem:[#allocation2 + $0x10] sm:$0xff]
        %v1886 = vld [vmem:[#allocation2 + $0x18] sm:$0xff]
        %v1887 = vld [vmem:[#allocation2 + $0x20] sm:$0xff]
        %v1888 = vmul.f32 %v1885, %v1125
        %v1889 = vmul.f32 %v1886, %v1129
        %v1890 = vmul.f32 %v1887, %v1127
        %v1891 = vpack.c.bf16 %v1888, %v1888
        %v1892 = vpack.c.bf16 %v1889, %v1889
        %v1893 = vpack.c.bf16 %v1890, %v1890
        %v1897 = vunpack.c.l.b16 %v1891
        %v1898 = vunpack.c.l.b16 %v1892
        %v1899 = vunpack.c.l.b16 %v1893
        %v1900 = vpack.c.b16 %v1898, %v1897
        %v1901 = vpack.c.b16 %v1899, %v1899
        %1902 = vrot.lane.b32.xlu0 %v1900, 25
        %v1903 = vpop.permute.xlu0 %1902
        %1904 = vrot.lane.b32.xlu0 %v1901, 25
        %v1905 = vpop.permute.xlu0 %1904
        %v1906 = vrot.slane %v1903, 4
        %v1907 = vrot.slane %v1905, 4
        %v1908 = vsel %vm793, %v1906, %v1907
        %v1909 = vsel %vm1154, %v1903, %v1908
        %1911 = vst [vmem:[#allocation3 + $0x58] sm:$0xff] %v1909
        %v1912 = vld [vmem:[#allocation2] sm:$0xff]
        %v1913 = vld [vmem:[#allocation2 + $0x8] sm:$0xff]
        %v1914 = vld [vmem:[#allocation2 + $0x10] sm:$0xff]
        %v1915 = vmul.f32 %v1912, %v1162
        %v1916 = vmul.f32 %v1913, %v1166
        %v1917 = vmul.f32 %v1914, %v1164
        %v1918 = vpack.c.bf16 %v1915, %v1915
        %v1919 = vpack.c.bf16 %v1916, %v1916
        %v1920 = vpack.c.bf16 %v1917, %v1917
        %v1924 = vunpack.c.l.b16 %v1918
        %v1925 = vunpack.c.l.b16 %v1919
        %v1926 = vunpack.c.l.b16 %v1920
        %v1927 = vpack.c.b16 %v1925, %v1924
        %v1928 = vpack.c.b16 %v1926, %v1926
        %1929 = vrot.lane.b32.xlu0 %v1927, 79
        %v1930 = vpop.permute.xlu0 %1929
        %1931 = vrot.lane.b32.xlu0 %v1928, 79
        %v1932 = vpop.permute.xlu0 %1931
        %v1933 = vrot.slane %v1930, 4
        %v1934 = vrot.slane %v1932, 4
        %v1935 = vsel %vm793, %v1933, %v1934
        %v1936 = vsel %vm1191, %v1930, %v1935
        %1938 = vst [vmem:[#allocation3 + $0x60] sm:$0xff] %v1936
        %v1939 = vld [vmem:[#allocation2 + $0x10] sm:$0xff]
        %v1940 = vld [vmem:[#allocation2 + $0x18] sm:$0xff]
        %v1941 = vld [vmem:[#allocation2 + $0x20] sm:$0xff]
        %v1942 = vmul.f32 %v1939, %v1199
        %v1943 = vmul.f32 %v1940, %v1203
        %v1944 = vmul.f32 %v1941, %v1201
        %v1945 = vpack.c.bf16 %v1942, %v1942
        %v1946 = vpack.c.bf16 %v1943, %v1943
        %v1947 = vpack.c.bf16 %v1944, %v1944
        %v1951 = vunpack.c.l.b16 %v1945
        %v1952 = vunpack.c.l.b16 %v1946
        %v1953 = vunpack.c.l.b16 %v1947
        %v1954 = vpack.c.b16 %v1952, %v1951
        %v1955 = vpack.c.b16 %v1953, %v1953
        %1956 = vrot.lane.b32.xlu0 %v1954, 11
        %v1957 = vpop.permute.xlu0 %1956
        %1958 = vrot.lane.b32.xlu0 %v1955, 11
        %v1959 = vpop.permute.xlu0 %1958
        %v1960 = vrot.slane %v1957, 4
        %v1961 = vrot.slane %v1959, 4
        %v1962 = vsel %vm793, %v1960, %v1961
        %v1963 = vsel %vm1228, %v1957, %v1962
        %1965 = vst [vmem:[#allocation3 + $0x68] sm:$0xff] %v1963
        %v1966 = vld [vmem:[#allocation2] sm:$0xff]
        %v1967 = vld [vmem:[#allocation2 + $0x8] sm:$0xff]
        %v1968 = vld [vmem:[#allocation2 + $0x10] sm:$0xff]
        %v1969 = vpack.c.bf16 %v1966, %v1966
        %v1970 = vpack.c.bf16 %v1967, %v1967
        %v1971 = vpack.c.bf16 %v1968, %v1968
        %v1975 = vunpack.c.l.b16 %v1969
        %v1976 = vunpack.c.l.b16 %v1970
        %v1977 = vunpack.c.l.b16 %v1971
        %v1978 = vpack.c.b16 %v1976, %v1975
        %v1979 = vpack.c.b16 %v1977, %v1977
        %1980 = vrot.lane.b32.xlu0 %v1978, 78
        %v1981 = vpop.permute.xlu0 %1980
        %1982 = vrot.lane.b32.xlu0 %v1979, 78
        %v1983 = vpop.permute.xlu0 %1982
        %v1984 = vrot.slane %v1981, 4
        %v1985 = vrot.slane %v1983, 4
        %v1986 = vsel %vm793, %v1984, %v1985
        %v1987 = vsel %vm1253, %v1981, %v1986
        %1989 = vst [vmem:[#allocation3 + $0x70] sm:$0xff] %v1987
        %v1990 = vld [vmem:[#allocation2 + $0x10] sm:$0xff]
        %v1991 = vld [vmem:[#allocation2 + $0x18] sm:$0xff]
        %v1992 = vld [vmem:[#allocation2 + $0x20] sm:$0xff]
        %v1993 = vpack.c.bf16 %v1990, %v1990
        %v1994 = vpack.c.bf16 %v1991, %v1991
        %v1995 = vpack.c.bf16 %v1992, %v1992
        %v1999 = vunpack.c.l.b16 %v1993
        %v2000 = vunpack.c.l.b16 %v1994
        %v2001 = vunpack.c.l.b16 %v1995
        %v2002 = vpack.c.b16 %v2000, %v1999
        %v2003 = vpack.c.b16 %v2001, %v2001
        %2004 = vrot.lane.b32.xlu0 %v2002, 10
        %v2005 = vpop.permute.xlu0 %2004
        %2006 = vrot.lane.b32.xlu0 %v2003, 10
        %v2007 = vpop.permute.xlu0 %2006
        %v2008 = vrot.slane %v2005, 4
        %v2009 = vrot.slane %v2007, 4
        %v2010 = vsel %vm793, %v2008, %v2009
        %v2011 = vsel %vm1278, %v2005, %v2010
        %2013 = vst [vmem:[#allocation3 + $0x78] sm:$0xff] %v2011
        %v2014 = vld [vmem:[#allocation2] sm:$0xff]
        %v2015 = vld [vmem:[#allocation2 + $0x8] sm:$0xff]
        %v2016 = vld [vmem:[#allocation2 + $0x10] sm:$0xff]
        %v2017 = vmul.f32 %v2014, %v1286
        %v2018 = vmul.f32 %v2015, %v1290
        %v2019 = vmul.f32 %v2016, %v1288
        %v2020 = vpack.c.bf16 %v2017, %v2017
        %v2021 = vpack.c.bf16 %v2018, %v2018
        %v2022 = vpack.c.bf16 %v2019, %v2019
        %v2026 = vunpack.c.l.b16 %v2020
        %v2027 = vunpack.c.l.b16 %v2021
        %v2028 = vunpack.c.l.b16 %v2022
        %v2029 = vpack.c.b16 %v2027, %v2026
        %v2030 = vpack.c.b16 %v2028, %v2028
        %2031 = vrot.lane.b32.xlu0 %v2029, 77
        %v2032 = vpop.permute.xlu0 %2031
        %2033 = vrot.lane.b32.xlu0 %v2030, 77
        %v2034 = vpop.permute.xlu0 %2033
        %v2035 = vrot.slane %v2032, 4
        %v2036 = vrot.slane %v2034, 4
        %v2037 = vsel %vm793, %v2035, %v2036
        %v2038 = vsel %vm1315, %v2032, %v2037
        %2040 = vst [vmem:[#allocation3 + $0x80] sm:$0xff] %v2038
        %v2041 = vld [vmem:[#allocation2 + $0x10] sm:$0xff]
        %v2042 = vld [vmem:[#allocation2 + $0x18] sm:$0xff]
        %v2043 = vld [vmem:[#allocation2 + $0x20] sm:$0xff]
        %v2044 = vmul.f32 %v2041, %v1323
        %v2045 = vmul.f32 %v2042, %v1327
        %v2046 = vmul.f32 %v2043, %v1325
        %v2047 = vpack.c.bf16 %v2044, %v2044
        %v2048 = vpack.c.bf16 %v2045, %v2045
        %v2049 = vpack.c.bf16 %v2046, %v2046
        %v2053 = vunpack.c.l.b16 %v2047
        %v2054 = vunpack.c.l.b16 %v2048
        %v2055 = vunpack.c.l.b16 %v2049
        %v2056 = vpack.c.b16 %v2054, %v2053
        %v2057 = vpack.c.b16 %v2055, %v2055
        %2058 = vrot.lane.b32.xlu0 %v2056, 9
        %v2059 = vpop.permute.xlu0 %2058
        %2060 = vrot.lane.b32.xlu0 %v2057, 9
        %v2061 = vpop.permute.xlu0 %2060
        %v2062 = vrot.slane %v2059, 4
        %v2063 = vrot.slane %v2061, 4
        %v2064 = vsel %vm793, %v2062, %v2063
        %v2065 = vsel %vm1352, %v2059, %v2064
        %2067 = vst [vmem:[#allocation3 + $0x88] sm:$0xff] %v2065
        %v2068 = vld [vmem:[#allocation3] sm:$0xff]
        %v2069 = vld [vmem:[#allocation3 + $0x8] sm:$0xff]
        %v2070 = vld [vmem:[#allocation3 + $0x10] sm:$0xff]
        %v2071 = vld [vmem:[#allocation3 + $0x18] sm:$0xff]
        %v2072 = vld [vmem:[#allocation3 + $0x20] sm:$0xff]
        %v2073 = vld [vmem:[#allocation3 + $0x28] sm:$0xff]
        %v2074 = vld [vmem:[#allocation3 + $0x30] sm:$0xff]
        %v2075 = vld [vmem:[#allocation3 + $0x38] sm:$0xff]
        %v2076 = vld [vmem:[#allocation3 + $0x40] sm:$0xff]
        %v2077 = vld [vmem:[#allocation3 + $0x48] sm:$0xff]
        %v2078 = vld [vmem:[#allocation3 + $0x50] sm:$0xff]
        %v2079 = vld [vmem:[#allocation3 + $0x58] sm:$0xff]
        %v2080 = vld [vmem:[#allocation3 + $0x60] sm:$0xff]
        %v2081 = vld [vmem:[#allocation3 + $0x68] sm:$0xff]
        %v2082 = vld [vmem:[#allocation3 + $0x70] sm:$0xff]
        %v2083 = vld [vmem:[#allocation3 + $0x78] sm:$0xff]
        %v2084 = vld [vmem:[#allocation3 + $0x80] sm:$0xff]
        %v2085 = vld [vmem:[#allocation3 + $0x88] sm:$0xff]
        %v2086 = vld [vmem:[%s8] sm:$0xf]
        %v2087 = vld [vmem:[%s9] sm:$0xff]
        %2089 = vset.pattern.permute.xlu0 0
        %2090 = vperm.xlu0 %2089, %v2087
        %v2091 = vpop.permute.xlu0 %2090
        %v2111 = vunpack.c.l.b16 %v2068
        %v2112 = vunpack.c.h.b16 %v2068
        %v2113 = vunpack.c.l.b16 %v2069
        %v2114 = vunpack.c.h.b16 %v2069
        %v2115 = vunpack.c.l.b16 %v2070
        %v2116 = vunpack.c.h.b16 %v2070
        %v2117 = vunpack.c.l.b16 %v2071
        %v2118 = vunpack.c.h.b16 %v2071
        %v2119 = vunpack.c.l.b16 %v2072
        %v2120 = vunpack.c.h.b16 %v2072
        %v2121 = vunpack.c.l.b16 %v2073
        %v2122 = vunpack.c.h.b16 %v2073
        %v2123 = vunpack.c.l.b16 %v2074
        %v2124 = vunpack.c.h.b16 %v2074
        %v2125 = vunpack.c.l.b16 %v2075
        %v2126 = vunpack.c.h.b16 %v2075
        %v2127 = vunpack.c.l.b16 %v2076
        %v2128 = vunpack.c.h.b16 %v2076
        %v2129 = vunpack.c.l.b16 %v2077
        %v2130 = vunpack.c.h.b16 %v2077
        %v2131 = vunpack.c.l.b16 %v2078
        %v2132 = vunpack.c.h.b16 %v2078
        %v2133 = vunpack.c.l.b16 %v2079
        %v2134 = vunpack.c.h.b16 %v2079
        %v2135 = vunpack.c.l.b16 %v2080
        %v2136 = vunpack.c.h.b16 %v2080
        %v2137 = vunpack.c.l.b16 %v2081
        %v2138 = vunpack.c.h.b16 %v2081
        %v2139 = vunpack.c.l.b16 %v2082
        %v2140 = vunpack.c.h.b16 %v2082
        %v2141 = vunpack.c.l.b16 %v2083
        %v2142 = vunpack.c.h.b16 %v2083
        %v2143 = vunpack.c.l.b16 %v2084
        %v2144 = vunpack.c.h.b16 %v2084
        %v2145 = vunpack.c.l.b16 %v2085
        %v2146 = vunpack.c.h.b16 %v2085
        %v2147 = vpack.c.b16 %v2115, %v2111
        %v2148 = vpack.c.b16 %v2116, %v2112
        %v2149 = vpack.c.b16 %v2117, %v2113
        %v2150 = vpack.c.b16 %v2118, %v2114
        %v2151 = vpack.c.b16 %v2123, %v2119
        %v2152 = vpack.c.b16 %v2124, %v2120
        %v2153 = vpack.c.b16 %v2125, %v2121
        %v2154 = vpack.c.b16 %v2126, %v2122
        %v2155 = vpack.c.b16 %v2131, %v2127
        %v2156 = vpack.c.b16 %v2132, %v2128
        %v2157 = vpack.c.b16 %v2133, %v2129
        %v2158 = vpack.c.b16 %v2134, %v2130
        %v2159 = vpack.c.b16 %v2139, %v2135
        %v2160 = vpack.c.b16 %v2140, %v2136
        %v2161 = vpack.c.b16 %v2141, %v2137
        %v2162 = vpack.c.b16 %v2142, %v2138
        %v2163 = vpack.c.b16 %v2143, %v2143
        %v2164 = vpack.c.b16 %v2144, %v2144
        %v2165 = vpack.c.b16 %v2145, %v2145
        %v2166 = vpack.c.b16 %v2146, %v2146
        %v2184 = vsel %vm1471, %v2086, 0
        %v2187 = vsel %vm1475, %v2163, 0
        %v2190 = vsel %vm1475, %v2164, 0
        %v2193 = vsel %vm1475, %v2165, 0
        %v2196 = vsel %vm1475, %v2166, 0
        %2198 = vmatprep.subr.bf16.mxu0 %v2148
        %2199 = vmatpush1.bf16.msra.mxu0 %v2147
        %2200 = vmatprep.subr.bf16.mxu0 %v2152
        %2201 = vmatpush1.bf16.msra.mxu0 %v2151
        %2202 = vmatprep.subr.bf16.mxu0 %v2156
        %2203 = vmatpush1.bf16.msra.mxu0 %v2155
        %2204 = vmatprep.subr.bf16.mxu0 %v2160
        %2205 = vmatpush1.bf16.msra.mxu0 %v2159
        %2206 = vmatprep.subr.bf16.mxu0 %v2190
        %2207 = vmatpush1.bf16.msra.mxu0 %v2187
        %2208 = vmatprep.subr.bf16.mxu0 0
        %2209 = vmatpush1.bf16.msra.mxu0 0
        %2210 = vmatprep.subr.bf16.mxu0 0
        %2211 = vmatpush1.bf16.msra.mxu0 0
        %2212 = vmatprep.subr.bf16.mxu0 0
        %2213 = vmatpush1.bf16.msra.mxu0 0
        %2214 = vmatprep.subr.bf16.mxu0 0
        %2215 = vmatpush1.bf16.msra.mxu0 0
        %2216 = vmatprep.subr.bf16.mxu0 0
        %2217 = vmatpush1.bf16.msra.mxu0 0
        %2218 = vmatprep.subr.bf16.mxu0 0
        %2219 = vmatpush1.bf16.msra.mxu0 0
        %2220 = vmatprep.subr.bf16.mxu0 0
        %2221 = vmatpush1.bf16.msra.mxu0 0
        %2222 = vmatprep.subr.bf16.mxu0 0
        %2223 = vmatpush1.bf16.msra.mxu0 0
        %2224 = vmatprep.subr.bf16.mxu0 0
        %2225 = vmatpush1.bf16.msra.mxu0 0
        %2226 = vmatprep.subr.bf16.mxu0 0
        %2227 = vmatpush1.bf16.msra.mxu0 0
        %2228 = vmatprep.subr.bf16.mxu0 0
        %2229 = vmatpush1.bf16.msra.mxu0 0
        %2230 = vmatprep.mubr.bf16.mxu0 0
        %2231 = vmatmul.mubr.bf16.gmra.mrb[0].mxu0 %v2184
        %v2232 = vpop.f32.mrb[0].mxu0
        %v2233 = vadd.f32 %v2091, %v2232
        %v2234 = vpop.f32.mrb[0].mxu0
        %v2235 = vadd.f32 %v2091, %v2234
        %v2236 = vpop.f32.mrb[0].mxu0
        %v2237 = vpop.f32.mrb[0].mxu0
        %2238 = vdwg.mxu0
        %2239 = vmatprep.subr.bf16.mxu0 %v2150
        %2240 = vmatpush1.bf16.msra.mxu0 %v2149
        %2241 = vmatprep.subr.bf16.mxu0 %v2154
        %2242 = vmatpush1.bf16.msra.mxu0 %v2153
        %2243 = vmatprep.subr.bf16.mxu0 %v2158
        %2244 = vmatpush1.bf16.msra.mxu0 %v2157
        %2245 = vmatprep.subr.bf16.mxu0 %v2162
        %2246 = vmatpush1.bf16.msra.mxu0 %v2161
        %2247 = vmatprep.subr.bf16.mxu0 %v2196
        %2248 = vmatpush1.bf16.msra.mxu0 %v2193
        %2249 = vmatprep.subr.bf16.mxu0 0
        %2250 = vmatpush1.bf16.msra.mxu0 0
        %2251 = vmatprep.subr.bf16.mxu0 0
        %2252 = vmatpush1.bf16.msra.mxu0 0
        %2253 = vmatprep.subr.bf16.mxu0 0
        %2254 = vmatpush1.bf16.msra.mxu0 0
        %2255 = vmatprep.subr.bf16.mxu0 0
        %2256 = vmatpush1.bf16.msra.mxu0 0
        %2257 = vmatprep.subr.bf16.mxu0 0
        %2258 = vmatpush1.bf16.msra.mxu0 0
        %2259 = vmatprep.subr.bf16.mxu0 0
        %2260 = vmatpush1.bf16.msra.mxu0 0
        %2261 = vmatprep.subr.bf16.mxu0 0
        %2262 = vmatpush1.bf16.msra.mxu0 0
        %2263 = vmatprep.subr.bf16.mxu0 0
        %2264 = vmatpush1.bf16.msra.mxu0 0
        %2265 = vmatprep.subr.bf16.mxu0 0
        %2266 = vmatpush1.bf16.msra.mxu0 0
        %2267 = vmatprep.subr.bf16.mxu0 0
        %2268 = vmatpush1.bf16.msra.mxu0 0
        %2269 = vmatprep.subr.bf16.mxu0 0
        %2270 = vmatpush1.bf16.msra.mxu0 0
        %2271 = vmatprep.mubr.bf16.mxu0 0
        %2272 = vmatmul.mubr.bf16.gmra.mrb[0].mxu0 %v2184
        %v2273 = vpop.f32.mrb[0].mxu0
        %v2274 = vadd.f32 %v2091, %v2273
        %v2275 = vpop.f32.mrb[0].mxu0
        %v2276 = vadd.f32 %v2091, %v2275
        %v2277 = vpop.f32.mrb[0].mxu0
        %v2278 = vpop.f32.mrb[0].mxu0
        %2279 = vdwg.mxu0
        %v2280 = vmax.f32 %v2233, 0.0
        %v2281 = vmax.f32 %v2235, 0.0
        %v2282 = vmax.f32 %v2274, 0.0
        %v2283 = vmax.f32 %v2276, 0.0
        %2286 = vrot.lane.b32.xlu0 %v2280, 34
        %v2287 = vpop.permute.xlu0 %2286
        %2288 = vrot.lane.b32.xlu0 %v2281, 34
        %v2289 = vpop.permute.xlu0 %2288
        %v2290 = vsel %vm524, %v2287, %v2289
        %2294 = vst.msk [vmem:[#allocation2] sm:$0xff] %vm743, %v2287
        %2295 = vst [vmem:[#allocation2 + $0x8] sm:$0xff] %v2290
        %2296 = vst.msk [vmem:[#allocation2 + $0x10] sm:$0xff] %vm524, %v2289
        %2299 = vrot.lane.b32.xlu0 %v2282, 102
        %v2300 = vpop.permute.xlu0 %2299
        %2301 = vrot.lane.b32.xlu0 %v2283, 102
        %v2302 = vpop.permute.xlu0 %2301
        %v2303 = vsel %vm753, %v2300, %v2302
        %2307 = vst.msk [vmem:[#allocation2 + $0x10] sm:$0xff] %vm530, %v2300
        %2308 = vst [vmem:[#allocation2 + $0x18] sm:$0xff] %v2303
        %2309 = vst.msk [vmem:[#allocation2 + $0x20] sm:$0xff] %vm753, %v2302
        %v2310 = vld [vmem:[#allocation2] sm:$0xff]
        %v2311 = vld [vmem:[#allocation2 + $0x8] sm:$0xff]
        %v2312 = vld [vmem:[#allocation2 + $0x10] sm:$0xff]
        %v2313 = vmul.f32 %v2310, %v765
        %v2314 = vmul.f32 %v2311, %v769
        %v2315 = vmul.f32 %v2312, %v767
        %v2316 = vpack.c.bf16 %v2313, %v2313
        %v2317 = vpack.c.bf16 %v2314, %v2314
        %v2318 = vpack.c.bf16 %v2315, %v2315
        %v2322 = vunpack.c.l.b16 %v2316
        %v2323 = vunpack.c.l.b16 %v2317
        %v2324 = vunpack.c.l.b16 %v2318
        %v2325 = vpack.c.b16 %v2323, %v2322
        %v2326 = vpack.c.b16 %v2324, %v2324
        %2327 = vrot.lane.b32.xlu0 %v2325, 111
        %v2328 = vpop.permute.xlu0 %2327
        %2329 = vrot.lane.b32.xlu0 %v2326, 111
        %v2330 = vpop.permute.xlu0 %2329
        %v2331 = vrot.slane %v2328, 4
        %v2332 = vrot.slane %v2330, 4
        %v2333 = vsel %vm793, %v2331, %v2332
        %v2334 = vsel %vm795, %v2328, %v2333
        %2336 = vst [vmem:[#allocation3] sm:$0xff] %v2334
        %v2337 = vld [vmem:[#allocation2 + $0x10] sm:$0xff]
        %v2338 = vld [vmem:[#allocation2 + $0x18] sm:$0xff]
        %v2339 = vld [vmem:[#allocation2 + $0x20] sm:$0xff]
        %v2340 = vmul.f32 %v2337, %v803
        %v2341 = vmul.f32 %v2338, %v807
        %v2342 = vmul.f32 %v2339, %v805
        %v2343 = vpack.c.bf16 %v2340, %v2340
        %v2344 = vpack.c.bf16 %v2341, %v2341
        %v2345 = vpack.c.bf16 %v2342, %v2342
        %v2349 = vunpack.c.l.b16 %v2343
        %v2350 = vunpack.c.l.b16 %v2344
        %v2351 = vunpack.c.l.b16 %v2345
        %v2352 = vpack.c.b16 %v2350, %v2349
        %v2353 = vpack.c.b16 %v2351, %v2351
        %2354 = vrot.lane.b32.xlu0 %v2352, 43
        %v2355 = vpop.permute.xlu0 %2354
        %2356 = vrot.lane.b32.xlu0 %v2353, 43
        %v2357 = vpop.permute.xlu0 %2356
        %v2358 = vrot.slane %v2355, 4
        %v2359 = vrot.slane %v2357, 4
        %v2360 = vsel %vm793, %v2358, %v2359
        %v2361 = vsel %vm832, %v2355, %v2360
        %2363 = vst [vmem:[#allocation3 + $0x8] sm:$0xff] %v2361
        %v2364 = vld [vmem:[#allocation2] sm:$0xff]
        %v2365 = vld [vmem:[#allocation2 + $0x8] sm:$0xff]
        %v2366 = vld [vmem:[#allocation2 + $0x10] sm:$0xff]
        %v2367 = vpack.c.bf16 %v2364, %v2364
        %v2368 = vpack.c.bf16 %v2365, %v2365
        %v2369 = vpack.c.bf16 %v2366, %v2366
        %v2373 = vunpack.c.l.b16 %v2367
        %v2374 = vunpack.c.l.b16 %v2368
        %v2375 = vunpack.c.l.b16 %v2369
        %v2376 = vpack.c.b16 %v2374, %v2373
        %v2377 = vpack.c.b16 %v2375, %v2375
        %2378 = vrot.lane.b32.xlu0 %v2376, 110
        %v2379 = vpop.permute.xlu0 %2378
        %2380 = vrot.lane.b32.xlu0 %v2377, 110
        %v2381 = vpop.permute.xlu0 %2380
        %v2382 = vrot.slane %v2379, 4
        %v2383 = vrot.slane %v2381, 4
        %v2384 = vsel %vm793, %v2382, %v2383
        %v2385 = vsel %vm857, %v2379, %v2384
        %2387 = vst [vmem:[#allocation3 + $0x10] sm:$0xff] %v2385
        %v2388 = vld [vmem:[#allocation2 + $0x10] sm:$0xff]
        %v2389 = vld [vmem:[#allocation2 + $0x18] sm:$0xff]
        %v2390 = vld [vmem:[#allocation2 + $0x20] sm:$0xff]
        %v2391 = vpack.c.bf16 %v2388, %v2388
        %v2392 = vpack.c.bf16 %v2389, %v2389
        %v2393 = vpack.c.bf16 %v2390, %v2390
        %v2397 = vunpack.c.l.b16 %v2391
        %v2398 = vunpack.c.l.b16 %v2392
        %v2399 = vunpack.c.l.b16 %v2393
        %v2400 = vpack.c.b16 %v2398, %v2397
        %v2401 = vpack.c.b16 %v2399, %v2399
        %2402 = vrot.lane.b32.xlu0 %v2400, 42
        %v2403 = vpop.permute.xlu0 %2402
        %2404 = vrot.lane.b32.xlu0 %v2401, 42
        %v2405 = vpop.permute.xlu0 %2404
        %v2406 = vrot.slane %v2403, 4
        %v2407 = vrot.slane %v2405, 4
        %v2408 = vsel %vm793, %v2406, %v2407
        %v2409 = vsel %vm882, %v2403, %v2408
        %2411 = vst [vmem:[#allocation3 + $0x18] sm:$0xff] %v2409
        %v2412 = vld [vmem:[#allocation2] sm:$0xff]
        %v2413 = vld [vmem:[#allocation2 + $0x8] sm:$0xff]
        %v2414 = vld [vmem:[#allocation2 + $0x10] sm:$0xff]
        %v2415 = vmul.f32 %v2412, %v890
        %v2416 = vmul.f32 %v2413, %v894
        %v2417 = vmul.f32 %v2414, %v892
        %v2418 = vpack.c.bf16 %v2415, %v2415
        %v2419 = vpack.c.bf16 %v2416, %v2416
        %v2420 = vpack.c.bf16 %v2417, %v2417
        %v2424 = vunpack.c.l.b16 %v2418
        %v2425 = vunpack.c.l.b16 %v2419
        %v2426 = vunpack.c.l.b16 %v2420
        %v2427 = vpack.c.b16 %v2425, %v2424
        %v2428 = vpack.c.b16 %v2426, %v2426
        %2429 = vrot.lane.b32.xlu0 %v2427, 109
        %v2430 = vpop.permute.xlu0 %2429
        %2431 = vrot.lane.b32.xlu0 %v2428, 109
        %v2432 = vpop.permute.xlu0 %2431
        %v2433 = vrot.slane %v2430, 4
        %v2434 = vrot.slane %v2432, 4
        %v2435 = vsel %vm793, %v2433, %v2434
        %v2436 = vsel %vm919, %v2430, %v2435
        %2438 = vst [vmem:[#allocation3 + $0x20] sm:$0xff] %v2436
        %v2439 = vld [vmem:[#allocation2 + $0x10] sm:$0xff]
        %v2440 = vld [vmem:[#allocation2 + $0x18] sm:$0xff]
        %v2441 = vld [vmem:[#allocation2 + $0x20] sm:$0xff]
        %v2442 = vmul.f32 %v2439, %v927
        %v2443 = vmul.f32 %v2440, %v931
        %v2444 = vmul.f32 %v2441, %v929
        %v2445 = vpack.c.bf16 %v2442, %v2442
        %v2446 = vpack.c.bf16 %v2443, %v2443
        %v2447 = vpack.c.bf16 %v2444, %v2444
        %v2451 = vunpack.c.l.b16 %v2445
        %v2452 = vunpack.c.l.b16 %v2446
        %v2453 = vunpack.c.l.b16 %v2447
        %v2454 = vpack.c.b16 %v2452, %v2451
        %v2455 = vpack.c.b16 %v2453, %v2453
        %2456 = vrot.lane.b32.xlu0 %v2454, 41
        %v2457 = vpop.permute.xlu0 %2456
        %2458 = vrot.lane.b32.xlu0 %v2455, 41
        %v2459 = vpop.permute.xlu0 %2458
        %v2460 = vrot.slane %v2457, 4
        %v2461 = vrot.slane %v2459, 4
        %v2462 = vsel %vm793, %v2460, %v2461
        %v2463 = vsel %vm956, %v2457, %v2462
        %2465 = vst [vmem:[#allocation3 + $0x28] sm:$0xff] %v2463
        %v2466 = vld [vmem:[#allocation2] sm:$0xff]
        %v2467 = vld [vmem:[#allocation2 + $0x8] sm:$0xff]
        %v2468 = vld [vmem:[#allocation2 + $0x10] sm:$0xff]
        %v2469 = vmul.f32 %v2466, %v964
        %v2470 = vmul.f32 %v2467, %v968
        %v2471 = vmul.f32 %v2468, %v966
        %v2472 = vpack.c.bf16 %v2469, %v2469
        %v2473 = vpack.c.bf16 %v2470, %v2470
        %v2474 = vpack.c.bf16 %v2471, %v2471
        %v2478 = vunpack.c.l.b16 %v2472
        %v2479 = vunpack.c.l.b16 %v2473
        %v2480 = vunpack.c.l.b16 %v2474
        %v2481 = vpack.c.b16 %v2479, %v2478
        %v2482 = vpack.c.b16 %v2480, %v2480
        %2483 = vrot.lane.b32.xlu0 %v2481, 95
        %v2484 = vpop.permute.xlu0 %2483
        %2485 = vrot.lane.b32.xlu0 %v2482, 95
        %v2486 = vpop.permute.xlu0 %2485
        %v2487 = vrot.slane %v2484, 4
        %v2488 = vrot.slane %v2486, 4
        %v2489 = vsel %vm793, %v2487, %v2488
        %v2490 = vsel %vm993, %v2484, %v2489
        %2492 = vst [vmem:[#allocation3 + $0x30] sm:$0xff] %v2490
        %v2493 = vld [vmem:[#allocation2 + $0x10] sm:$0xff]
        %v2494 = vld [vmem:[#allocation2 + $0x18] sm:$0xff]
        %v2495 = vld [vmem:[#allocation2 + $0x20] sm:$0xff]
        %v2496 = vmul.f32 %v2493, %v1001
        %v2497 = vmul.f32 %v2494, %v1005
        %v2498 = vmul.f32 %v2495, %v1003
        %v2499 = vpack.c.bf16 %v2496, %v2496
        %v2500 = vpack.c.bf16 %v2497, %v2497
        %v2501 = vpack.c.bf16 %v2498, %v2498
        %v2505 = vunpack.c.l.b16 %v2499
        %v2506 = vunpack.c.l.b16 %v2500
        %v2507 = vunpack.c.l.b16 %v2501
        %v2508 = vpack.c.b16 %v2506, %v2505
        %v2509 = vpack.c.b16 %v2507, %v2507
        %2510 = vrot.lane.b32.xlu0 %v2508, 27
        %v2511 = vpop.permute.xlu0 %2510
        %2512 = vrot.lane.b32.xlu0 %v2509, 27
        %v2513 = vpop.permute.xlu0 %2512
        %v2514 = vrot.slane %v2511, 4
        %v2515 = vrot.slane %v2513, 4
        %v2516 = vsel %vm793, %v2514, %v2515
        %v2517 = vsel %vm1030, %v2511, %v2516
        %2519 = vst [vmem:[#allocation3 + $0x38] sm:$0xff] %v2517
        %v2520 = vld [vmem:[#allocation2] sm:$0xff]
        %v2521 = vld [vmem:[#allocation2 + $0x8] sm:$0xff]
        %v2522 = vld [vmem:[#allocation2 + $0x10] sm:$0xff]
        %v2523 = vpack.c.bf16 %v2520, %v2520
        %v2524 = vpack.c.bf16 %v2521, %v2521
        %v2525 = vpack.c.bf16 %v2522, %v2522
        %v2529 = vunpack.c.l.b16 %v2523
        %v2530 = vunpack.c.l.b16 %v2524
        %v2531 = vunpack.c.l.b16 %v2525
        %v2532 = vpack.c.b16 %v2530, %v2529
        %v2533 = vpack.c.b16 %v2531, %v2531
        %2534 = vrot.lane.b32.xlu0 %v2532, 94
        %v2535 = vpop.permute.xlu0 %2534
        %2536 = vrot.lane.b32.xlu0 %v2533, 94
        %v2537 = vpop.permute.xlu0 %2536
        %v2538 = vrot.slane %v2535, 4
        %v2539 = vrot.slane %v2537, 4
        %v2540 = vsel %vm793, %v2538, %v2539
        %v2541 = vsel %vm1055, %v2535, %v2540
        %2543 = vst [vmem:[#allocation3 + $0x40] sm:$0xff] %v2541
        %v2544 = vld [vmem:[#allocation2 + $0x10] sm:$0xff]
        %v2545 = vld [vmem:[#allocation2 + $0x18] sm:$0xff]
        %v2546 = vld [vmem:[#allocation2 + $0x20] sm:$0xff]
        %v2547 = vpack.c.bf16 %v2544, %v2544
        %v2548 = vpack.c.bf16 %v2545, %v2545
        %v2549 = vpack.c.bf16 %v2546, %v2546
        %v2553 = vunpack.c.l.b16 %v2547
        %v2554 = vunpack.c.l.b16 %v2548
        %v2555 = vunpack.c.l.b16 %v2549
        %v2556 = vpack.c.b16 %v2554, %v2553
        %v2557 = vpack.c.b16 %v2555, %v2555
        %2558 = vrot.lane.b32.xlu0 %v2556, 26
        %v2559 = vpop.permute.xlu0 %2558
        %2560 = vrot.lane.b32.xlu0 %v2557, 26
        %v2561 = vpop.permute.xlu0 %2560
        %v2562 = vrot.slane %v2559, 4
        %v2563 = vrot.slane %v2561, 4
        %v2564 = vsel %vm793, %v2562, %v2563
        %v2565 = vsel %vm1080, %v2559, %v2564
        %2567 = vst [vmem:[#allocation3 + $0x48] sm:$0xff] %v2565
        %v2568 = vld [vmem:[#allocation2] sm:$0xff]
        %v2569 = vld [vmem:[#allocation2 + $0x8] sm:$0xff]
        %v2570 = vld [vmem:[#allocation2 + $0x10] sm:$0xff]
        %v2571 = vmul.f32 %v2568, %v1088
        %v2572 = vmul.f32 %v2569, %v1092
        %v2573 = vmul.f32 %v2570, %v1090
        %v2574 = vpack.c.bf16 %v2571, %v2571
        %v2575 = vpack.c.bf16 %v2572, %v2572
        %v2576 = vpack.c.bf16 %v2573, %v2573
        %v2580 = vunpack.c.l.b16 %v2574
        %v2581 = vunpack.c.l.b16 %v2575
        %v2582 = vunpack.c.l.b16 %v2576
        %v2583 = vpack.c.b16 %v2581, %v2580
        %v2584 = vpack.c.b16 %v2582, %v2582
        %2585 = vrot.lane.b32.xlu0 %v2583, 93
        %v2586 = vpop.permute.xlu0 %2585
        %2587 = vrot.lane.b32.xlu0 %v2584, 93
        %v2588 = vpop.permute.xlu0 %2587
        %v2589 = vrot.slane %v2586, 4
        %v2590 = vrot.slane %v2588, 4
        %v2591 = vsel %vm793, %v2589, %v2590
        %v2592 = vsel %vm1117, %v2586, %v2591
        %2594 = vst [vmem:[#allocation3 + $0x50] sm:$0xff] %v2592
        %v2595 = vld [vmem:[#allocation2 + $0x10] sm:$0xff]
        %v2596 = vld [vmem:[#allocation2 + $0x18] sm:$0xff]
        %v2597 = vld [vmem:[#allocation2 + $0x20] sm:$0xff]
        %v2598 = vmul.f32 %v2595, %v1125
        %v2599 = vmul.f32 %v2596, %v1129
        %v2600 = vmul.f32 %v2597, %v1127
        %v2601 = vpack.c.bf16 %v2598, %v2598
        %v2602 = vpack.c.bf16 %v2599, %v2599
        %v2603 = vpack.c.bf16 %v2600, %v2600
        %v2607 = vunpack.c.l.b16 %v2601
        %v2608 = vunpack.c.l.b16 %v2602
        %v2609 = vunpack.c.l.b16 %v2603
        %v2610 = vpack.c.b16 %v2608, %v2607
        %v2611 = vpack.c.b16 %v2609, %v2609
        %2612 = vrot.lane.b32.xlu0 %v2610, 25
        %v2613 = vpop.permute.xlu0 %2612
        %2614 = vrot.lane.b32.xlu0 %v2611, 25
        %v2615 = vpop.permute.xlu0 %2614
        %v2616 = vrot.slane %v2613, 4
        %v2617 = vrot.slane %v2615, 4
        %v2618 = vsel %vm793, %v2616, %v2617
        %v2619 = vsel %vm1154, %v2613, %v2618
        %2621 = vst [vmem:[#allocation3 + $0x58] sm:$0xff] %v2619
        %v2622 = vld [vmem:[#allocation2] sm:$0xff]
        %v2623 = vld [vmem:[#allocation2 + $0x8] sm:$0xff]
        %v2624 = vld [vmem:[#allocation2 + $0x10] sm:$0xff]
        %v2625 = vmul.f32 %v2622, %v1162
        %v2626 = vmul.f32 %v2623, %v1166
        %v2627 = vmul.f32 %v2624, %v1164
        %v2628 = vpack.c.bf16 %v2625, %v2625
        %v2629 = vpack.c.bf16 %v2626, %v2626
        %v2630 = vpack.c.bf16 %v2627, %v2627
        %v2634 = vunpack.c.l.b16 %v2628
        %v2635 = vunpack.c.l.b16 %v2629
        %v2636 = vunpack.c.l.b16 %v2630
        %v2637 = vpack.c.b16 %v2635, %v2634
        %v2638 = vpack.c.b16 %v2636, %v2636
        %2639 = vrot.lane.b32.xlu0 %v2637, 79
        %v2640 = vpop.permute.xlu0 %2639
        %2641 = vrot.lane.b32.xlu0 %v2638, 79
        %v2642 = vpop.permute.xlu0 %2641
        %v2643 = vrot.slane %v2640, 4
        %v2644 = vrot.slane %v2642, 4
        %v2645 = vsel %vm793, %v2643, %v2644
        %v2646 = vsel %vm1191, %v2640, %v2645
        %2648 = vst [vmem:[#allocation3 + $0x60] sm:$0xff] %v2646
        %v2649 = vld [vmem:[#allocation2 + $0x10] sm:$0xff]
        %v2650 = vld [vmem:[#allocation2 + $0x18] sm:$0xff]
        %v2651 = vld [vmem:[#allocation2 + $0x20] sm:$0xff]
        %v2652 = vmul.f32 %v2649, %v1199
        %v2653 = vmul.f32 %v2650, %v1203
        %v2654 = vmul.f32 %v2651, %v1201
        %v2655 = vpack.c.bf16 %v2652, %v2652
        %v2656 = vpack.c.bf16 %v2653, %v2653
        %v2657 = vpack.c.bf16 %v2654, %v2654
        %v2661 = vunpack.c.l.b16 %v2655
        %v2662 = vunpack.c.l.b16 %v2656
        %v2663 = vunpack.c.l.b16 %v2657
        %v2664 = vpack.c.b16 %v2662, %v2661
        %v2665 = vpack.c.b16 %v2663, %v2663
        %2666 = vrot.lane.b32.xlu0 %v2664, 11
        %v2667 = vpop.permute.xlu0 %2666
        %2668 = vrot.lane.b32.xlu0 %v2665, 11
        %v2669 = vpop.permute.xlu0 %2668
        %v2670 = vrot.slane %v2667, 4
        %v2671 = vrot.slane %v2669, 4
        %v2672 = vsel %vm793, %v2670, %v2671
        %v2673 = vsel %vm1228, %v2667, %v2672
        %2675 = vst [vmem:[#allocation3 + $0x68] sm:$0xff] %v2673
        %v2676 = vld [vmem:[#allocation2] sm:$0xff]
        %v2677 = vld [vmem:[#allocation2 + $0x8] sm:$0xff]
        %v2678 = vld [vmem:[#allocation2 + $0x10] sm:$0xff]
        %v2679 = vpack.c.bf16 %v2676, %v2676
        %v2680 = vpack.c.bf16 %v2677, %v2677
        %v2681 = vpack.c.bf16 %v2678, %v2678
        %v2685 = vunpack.c.l.b16 %v2679
        %v2686 = vunpack.c.l.b16 %v2680
        %v2687 = vunpack.c.l.b16 %v2681
        %v2688 = vpack.c.b16 %v2686, %v2685
        %v2689 = vpack.c.b16 %v2687, %v2687
        %2690 = vrot.lane.b32.xlu0 %v2688, 78
        %v2691 = vpop.permute.xlu0 %2690
        %2692 = vrot.lane.b32.xlu0 %v2689, 78
        %v2693 = vpop.permute.xlu0 %2692
        %v2694 = vrot.slane %v2691, 4
        %v2695 = vrot.slane %v2693, 4
        %v2696 = vsel %vm793, %v2694, %v2695
        %v2697 = vsel %vm1253, %v2691, %v2696
        %2699 = vst [vmem:[#allocation3 + $0x70] sm:$0xff] %v2697
        %v2700 = vld [vmem:[#allocation2 + $0x10] sm:$0xff]
        %v2701 = vld [vmem:[#allocation2 + $0x18] sm:$0xff]
        %v2702 = vld [vmem:[#allocation2 + $0x20] sm:$0xff]
        %v2703 = vpack.c.bf16 %v2700, %v2700
        %v2704 = vpack.c.bf16 %v2701, %v2701
        %v2705 = vpack.c.bf16 %v2702, %v2702
        %v2709 = vunpack.c.l.b16 %v2703
        %v2710 = vunpack.c.l.b16 %v2704
        %v2711 = vunpack.c.l.b16 %v2705
        %v2712 = vpack.c.b16 %v2710, %v2709
        %v2713 = vpack.c.b16 %v2711, %v2711
        %2714 = vrot.lane.b32.xlu0 %v2712, 10
        %v2715 = vpop.permute.xlu0 %2714
        %2716 = vrot.lane.b32.xlu0 %v2713, 10
        %v2717 = vpop.permute.xlu0 %2716
        %v2718 = vrot.slane %v2715, 4
        %v2719 = vrot.slane %v2717, 4
        %v2720 = vsel %vm793, %v2718, %v2719
        %v2721 = vsel %vm1278, %v2715, %v2720
        %2723 = vst [vmem:[#allocation3 + $0x78] sm:$0xff] %v2721
        %v2724 = vld [vmem:[#allocation2] sm:$0xff]
        %v2725 = vld [vmem:[#allocation2 + $0x8] sm:$0xff]
        %v2726 = vld [vmem:[#allocation2 + $0x10] sm:$0xff]
        %v2727 = vmul.f32 %v2724, %v1286
        %v2728 = vmul.f32 %v2725, %v1290
        %v2729 = vmul.f32 %v2726, %v1288
        %v2730 = vpack.c.bf16 %v2727, %v2727
        %v2731 = vpack.c.bf16 %v2728, %v2728
        %v2732 = vpack.c.bf16 %v2729, %v2729
        %v2736 = vunpack.c.l.b16 %v2730
        %v2737 = vunpack.c.l.b16 %v2731
        %v2738 = vunpack.c.l.b16 %v2732
        %v2739 = vpack.c.b16 %v2737, %v2736
        %v2740 = vpack.c.b16 %v2738, %v2738
        %2741 = vrot.lane.b32.xlu0 %v2739, 77
        %v2742 = vpop.permute.xlu0 %2741
        %2743 = vrot.lane.b32.xlu0 %v2740, 77
        %v2744 = vpop.permute.xlu0 %2743
        %v2745 = vrot.slane %v2742, 4
        %v2746 = vrot.slane %v2744, 4
        %v2747 = vsel %vm793, %v2745, %v2746
        %v2748 = vsel %vm1315, %v2742, %v2747
        %2750 = vst [vmem:[#allocation3 + $0x80] sm:$0xff] %v2748
        %v2751 = vld [vmem:[#allocation2 + $0x10] sm:$0xff]
        %v2752 = vld [vmem:[#allocation2 + $0x18] sm:$0xff]
        %v2753 = vld [vmem:[#allocation2 + $0x20] sm:$0xff]
        %v2754 = vmul.f32 %v2751, %v1323
        %v2755 = vmul.f32 %v2752, %v1327
        %v2756 = vmul.f32 %v2753, %v1325
        %v2757 = vpack.c.bf16 %v2754, %v2754
        %v2758 = vpack.c.bf16 %v2755, %v2755
        %v2759 = vpack.c.bf16 %v2756, %v2756
        %v2763 = vunpack.c.l.b16 %v2757
        %v2764 = vunpack.c.l.b16 %v2758
        %v2765 = vunpack.c.l.b16 %v2759
        %v2766 = vpack.c.b16 %v2764, %v2763
        %v2767 = vpack.c.b16 %v2765, %v2765
        %2768 = vrot.lane.b32.xlu0 %v2766, 9
        %v2769 = vpop.permute.xlu0 %2768
        %2770 = vrot.lane.b32.xlu0 %v2767, 9
        %v2771 = vpop.permute.xlu0 %2770
        %v2772 = vrot.slane %v2769, 4
        %v2773 = vrot.slane %v2771, 4
        %v2774 = vsel %vm793, %v2772, %v2773
        %v2775 = vsel %vm1352, %v2769, %v2774
        %2777 = vst [vmem:[#allocation3 + $0x88] sm:$0xff] %v2775
        %v2778 = vld [vmem:[#allocation3] sm:$0xff]
        %v2779 = vld [vmem:[#allocation3 + $0x8] sm:$0xff]
        %v2780 = vld [vmem:[#allocation3 + $0x10] sm:$0xff]
        %v2781 = vld [vmem:[#allocation3 + $0x18] sm:$0xff]
        %v2782 = vld [vmem:[#allocation3 + $0x20] sm:$0xff]
        %v2783 = vld [vmem:[#allocation3 + $0x28] sm:$0xff]
        %v2784 = vld [vmem:[#allocation3 + $0x30] sm:$0xff]
        %v2785 = vld [vmem:[#allocation3 + $0x38] sm:$0xff]
        %v2786 = vld [vmem:[#allocation3 + $0x40] sm:$0xff]
        %v2787 = vld [vmem:[#allocation3 + $0x48] sm:$0xff]
        %v2788 = vld [vmem:[#allocation3 + $0x50] sm:$0xff]
        %v2789 = vld [vmem:[#allocation3 + $0x58] sm:$0xff]
        %v2790 = vld [vmem:[#allocation3 + $0x60] sm:$0xff]
        %v2791 = vld [vmem:[#allocation3 + $0x68] sm:$0xff]
        %v2792 = vld [vmem:[#allocation3 + $0x70] sm:$0xff]
        %v2793 = vld [vmem:[#allocation3 + $0x78] sm:$0xff]
        %v2794 = vld [vmem:[#allocation3 + $0x80] sm:$0xff]
        %v2795 = vld [vmem:[#allocation3 + $0x88] sm:$0xff]
        %v2796 = vld [vmem:[%s10] sm:$0xf]
        %v2797 = vld [vmem:[%s11] sm:$0xff]
        %2799 = vset.pattern.permute.xlu0 0
        %2800 = vperm.xlu0 %2799, %v2797
        %v2801 = vpop.permute.xlu0 %2800
        %v2821 = vunpack.c.l.b16 %v2778
        %v2822 = vunpack.c.h.b16 %v2778
        %v2823 = vunpack.c.l.b16 %v2779
        %v2824 = vunpack.c.h.b16 %v2779
        %v2825 = vunpack.c.l.b16 %v2780
        %v2826 = vunpack.c.h.b16 %v2780
        %v2827 = vunpack.c.l.b16 %v2781
        %v2828 = vunpack.c.h.b16 %v2781
        %v2829 = vunpack.c.l.b16 %v2782
        %v2830 = vunpack.c.h.b16 %v2782
        %v2831 = vunpack.c.l.b16 %v2783
        %v2832 = vunpack.c.h.b16 %v2783
        %v2833 = vunpack.c.l.b16 %v2784
        %v2834 = vunpack.c.h.b16 %v2784
        %v2835 = vunpack.c.l.b16 %v2785
        %v2836 = vunpack.c.h.b16 %v2785
        %v2837 = vunpack.c.l.b16 %v2786
        %v2838 = vunpack.c.h.b16 %v2786
        %v2839 = vunpack.c.l.b16 %v2787
        %v2840 = vunpack.c.h.b16 %v2787
        %v2841 = vunpack.c.l.b16 %v2788
        %v2842 = vunpack.c.h.b16 %v2788
        %v2843 = vunpack.c.l.b16 %v2789
        %v2844 = vunpack.c.h.b16 %v2789
        %v2845 = vunpack.c.l.b16 %v2790
        %v2846 = vunpack.c.h.b16 %v2790
        %v2847 = vunpack.c.l.b16 %v2791
        %v2848 = vunpack.c.h.b16 %v2791
        %v2849 = vunpack.c.l.b16 %v2792
        %v2850 = vunpack.c.h.b16 %v2792
        %v2851 = vunpack.c.l.b16 %v2793
        %v2852 = vunpack.c.h.b16 %v2793
        %v2853 = vunpack.c.l.b16 %v2794
        %v2854 = vunpack.c.h.b16 %v2794
        %v2855 = vunpack.c.l.b16 %v2795
        %v2856 = vunpack.c.h.b16 %v2795
        %v2857 = vpack.c.b16 %v2825, %v2821
        %v2858 = vpack.c.b16 %v2826, %v2822
        %v2859 = vpack.c.b16 %v2827, %v2823
        %v2860 = vpack.c.b16 %v2828, %v2824
        %v2861 = vpack.c.b16 %v2833, %v2829
        %v2862 = vpack.c.b16 %v2834, %v2830
        %v2863 = vpack.c.b16 %v2835, %v2831
        %v2864 = vpack.c.b16 %v2836, %v2832
        %v2865 = vpack.c.b16 %v2841, %v2837
        %v2866 = vpack.c.b16 %v2842, %v2838
        %v2867 = vpack.c.b16 %v2843, %v2839
        %v2868 = vpack.c.b16 %v2844, %v2840
        %v2869 = vpack.c.b16 %v2849, %v2845
        %v2870 = vpack.c.b16 %v2850, %v2846
        %v2871 = vpack.c.b16 %v2851, %v2847
        %v2872 = vpack.c.b16 %v2852, %v2848
        %v2873 = vpack.c.b16 %v2853, %v2853
        %v2874 = vpack.c.b16 %v2854, %v2854
        %v2875 = vpack.c.b16 %v2855, %v2855
        %v2876 = vpack.c.b16 %v2856, %v2856
        %v2894 = vsel %vm1471, %v2796, 0
        %v2897 = vsel %vm1475, %v2873, 0
        %v2900 = vsel %vm1475, %v2874, 0
        %v2903 = vsel %vm1475, %v2875, 0
        %v2906 = vsel %vm1475, %v2876, 0
        %2908 = vmatprep.subr.bf16.mxu0 %v2858
        %2909 = vmatpush1.bf16.msra.mxu0 %v2857
        %2910 = vmatprep.subr.bf16.mxu0 %v2862
        %2911 = vmatpush1.bf16.msra.mxu0 %v2861
        %2912 = vmatprep.subr.bf16.mxu0 %v2866
        %2913 = vmatpush1.bf16.msra.mxu0 %v2865
        %2914 = vmatprep.subr.bf16.mxu0 %v2870
        %2915 = vmatpush1.bf16.msra.mxu0 %v2869
        %2916 = vmatprep.subr.bf16.mxu0 %v2900
        %2917 = vmatpush1.bf16.msra.mxu0 %v2897
        %2918 = vmatprep.subr.bf16.mxu0 0
        %2919 = vmatpush1.bf16.msra.mxu0 0
        %2920 = vmatprep.subr.bf16.mxu0 0
        %2921 = vmatpush1.bf16.msra.mxu0 0
        %2922 = vmatprep.subr.bf16.mxu0 0
        %2923 = vmatpush1.bf16.msra.mxu0 0
        %2924 = vmatprep.subr.bf16.mxu0 0
        %2925 = vmatpush1.bf16.msra.mxu0 0
        %2926 = vmatprep.subr.bf16.mxu0 0
        %2927 = vmatpush1.bf16.msra.mxu0 0
        %2928 = vmatprep.subr.bf16.mxu0 0
        %2929 = vmatpush1.bf16.msra.mxu0 0
        %2930 = vmatprep.subr.bf16.mxu0 0
        %2931 = vmatpush1.bf16.msra.mxu0 0
        %2932 = vmatprep.subr.bf16.mxu0 0
        %2933 = vmatpush1.bf16.msra.mxu0 0
        %2934 = vmatprep.subr.bf16.mxu0 0
        %2935 = vmatpush1.bf16.msra.mxu0 0
        %2936 = vmatprep.subr.bf16.mxu0 0
        %2937 = vmatpush1.bf16.msra.mxu0 0
        %2938 = vmatprep.subr.bf16.mxu0 0
        %2939 = vmatpush1.bf16.msra.mxu0 0
        %2940 = vmatprep.mubr.bf16.mxu0 0
        %2941 = vmatmul.mubr.bf16.gmra.mrb[0].mxu0 %v2894
        %v2942 = vpop.f32.mrb[0].mxu0
        %v2943 = vadd.f32 %v2801, %v2942
        %v2944 = vpop.f32.mrb[0].mxu0
        %v2945 = vadd.f32 %v2801, %v2944
        %v2946 = vpop.f32.mrb[0].mxu0
        %v2947 = vpop.f32.mrb[0].mxu0
        %2948 = vdwg.mxu0
        %2949 = vmatprep.subr.bf16.mxu0 %v2860
        %2950 = vmatpush1.bf16.msra.mxu0 %v2859
        %2951 = vmatprep.subr.bf16.mxu0 %v2864
        %2952 = vmatpush1.bf16.msra.mxu0 %v2863
        %2953 = vmatprep.subr.bf16.mxu0 %v2868
        %2954 = vmatpush1.bf16.msra.mxu0 %v2867
        %2955 = vmatprep.subr.bf16.mxu0 %v2872
        %2956 = vmatpush1.bf16.msra.mxu0 %v2871
        %2957 = vmatprep.subr.bf16.mxu0 %v2906
        %2958 = vmatpush1.bf16.msra.mxu0 %v2903
        %2959 = vmatprep.subr.bf16.mxu0 0
        %2960 = vmatpush1.bf16.msra.mxu0 0
        %2961 = vmatprep.subr.bf16.mxu0 0
        %2962 = vmatpush1.bf16.msra.mxu0 0
        %2963 = vmatprep.subr.bf16.mxu0 0
        %2964 = vmatpush1.bf16.msra.mxu0 0
        %2965 = vmatprep.subr.bf16.mxu0 0
        %2966 = vmatpush1.bf16.msra.mxu0 0
        %2967 = vmatprep.subr.bf16.mxu0 0
        %2968 = vmatpush1.bf16.msra.mxu0 0
        %2969 = vmatprep.subr.bf16.mxu0 0
        %2970 = vmatpush1.bf16.msra.mxu0 0
        %2971 = vmatprep.subr.bf16.mxu0 0
        %2972 = vmatpush1.bf16.msra.mxu0 0
        %2973 = vmatprep.subr.bf16.mxu0 0
        %2974 = vmatpush1.bf16.msra.mxu0 0
        %2975 = vmatprep.subr.bf16.mxu0 0
        %2976 = vmatpush1.bf16.msra.mxu0 0
        %2977 = vmatprep.subr.bf16.mxu0 0
        %2978 = vmatpush1.bf16.msra.mxu0 0
        %2979 = vmatprep.subr.bf16.mxu0 0
        %2980 = vmatpush1.bf16.msra.mxu0 0
        %2981 = vmatprep.mubr.bf16.mxu0 0
        %2982 = vmatmul.mubr.bf16.gmra.mrb[0].mxu0 %v2894
        %v2983 = vpop.f32.mrb[0].mxu0
        %v2984 = vadd.f32 %v2801, %v2983
        %v2985 = vpop.f32.mrb[0].mxu0
        %v2986 = vadd.f32 %v2801, %v2985
        %v2987 = vpop.f32.mrb[0].mxu0
        %v2988 = vpop.f32.mrb[0].mxu0
        %2989 = vdwg.mxu0
        %v2990 = vmax.f32 %v2943, 0.0
        %v2991 = vmax.f32 %v2945, 0.0
        %v2992 = vmax.f32 %v2984, 0.0
        %v2993 = vmax.f32 %v2986, 0.0
        %2996 = vrot.lane.b32.xlu0 %v2990, 34
        %v2997 = vpop.permute.xlu0 %2996
        %2998 = vrot.lane.b32.xlu0 %v2991, 34
        %v2999 = vpop.permute.xlu0 %2998
        %v3000 = vsel %vm524, %v2997, %v2999
        %3004 = vst.msk [vmem:[#allocation2] sm:$0xff] %vm743, %v2997
        %3005 = vst [vmem:[#allocation2 + $0x8] sm:$0xff] %v3000
        %3006 = vst.msk [vmem:[#allocation2 + $0x10] sm:$0xff] %vm524, %v2999
        %3009 = vrot.lane.b32.xlu0 %v2992, 102
        %v3010 = vpop.permute.xlu0 %3009
        %3011 = vrot.lane.b32.xlu0 %v2993, 102
        %v3012 = vpop.permute.xlu0 %3011
        %v3013 = vsel %vm753, %v3010, %v3012
        %3017 = vst.msk [vmem:[#allocation2 + $0x10] sm:$0xff] %vm530, %v3010
        %3018 = vst [vmem:[#allocation2 + $0x18] sm:$0xff] %v3013
        %3019 = vst.msk [vmem:[#allocation2 + $0x20] sm:$0xff] %vm753, %v3012
        %v3020 = vld [vmem:[#allocation2] sm:$0xff]
        %v3021 = vld [vmem:[#allocation2 + $0x8] sm:$0xff]
        %v3022 = vmul.f32 %v3020, %v561
        %v3023 = vmul.f32 %v3021, %v565
        %v3024 = vpack.c.bf16 %v3022, %v3022
        %v3025 = vpack.c.bf16 %v3023, %v3023
        %v3028 = vunpack.c.l.b16 %v3024
        %v3029 = vunpack.c.l.b16 %v3025
        %v3030 = vpack.c.b16 %v3029, %v3028
        %3032 = vst [vmem:[#allocation3] sm:$0xff] %v3030
        %v3033 = vld [vmem:[#allocation2 + $0x10] sm:$0xff]
        %v3034 = vld [vmem:[#allocation2 + $0x18] sm:$0xff]
        %v3035 = vld [vmem:[#allocation2 + $0x20] sm:$0xff]
        %3036 = vrot.lane.b32.xlu0 %v561, 68
        %v3037 = vpop.permute.xlu0 %3036
        %3038 = vrot.lane.b32.xlu0 %v565, 68
        %v3039 = vpop.permute.xlu0 %3038
        %vm3040 = vcmask 556032
        %v3041 = vsel %vm3040, %v3037, %v3039
        %v3045 = vmul.f32 %v3033, %v3037
        %v3046 = vmul.f32 %v3034, %v3041
        %v3047 = vmul.f32 %v3035, %v3039
        %v3048 = vpack.c.bf16 %v3045, %v3045
        %v3049 = vpack.c.bf16 %v3046, %v3046
        %v3050 = vpack.c.bf16 %v3047, %v3047
        %v3054 = vunpack.c.l.b16 %v3048
        %v3055 = vunpack.c.l.b16 %v3049
        %v3056 = vunpack.c.l.b16 %v3050
        %v3057 = vpack.c.b16 %v3055, %v3054
        %v3058 = vpack.c.b16 %v3056, %v3056
        %3059 = vrot.lane.b32.xlu0 %v3057, 60
        %v3060 = vpop.permute.xlu0 %3059
        %3061 = vrot.lane.b32.xlu0 %v3058, 60
        %v3062 = vpop.permute.xlu0 %3061
        %v3063 = vrot.slane %v3060, 4
        %v3064 = vrot.slane %v3062, 4
        %v3065 = vsel %vm793, %v3063, %v3064
        %vm3066 = vcmask 490496
        %v3067 = vsel %vm3066, %v3060, %v3065
        %3069 = vst [vmem:[#allocation3 + $0x8] sm:$0xff] %v3067
        %v3070 = vld [vmem:[#allocation2] sm:$0xff]
        %v3071 = vld [vmem:[#allocation2 + $0x8] sm:$0xff]
        %v3072 = vld [vmem:[#allocation2 + $0x10] sm:$0xff]
        %v3073 = vpack.c.bf16 %v3070, %v3070
        %v3074 = vpack.c.bf16 %v3071, %v3071
        %v3075 = vpack.c.bf16 %v3072, %v3072
        %v3079 = vunpack.c.l.b16 %v3073
        %v3080 = vunpack.c.l.b16 %v3074
        %v3081 = vunpack.c.l.b16 %v3075
        %v3082 = vpack.c.b16 %v3080, %v3079
        %v3083 = vpack.c.b16 %v3081, %v3081
        %3084 = vrot.lane.b32.xlu0 %v3082, 126
        %v3085 = vpop.permute.xlu0 %3084
        %3086 = vrot.lane.b32.xlu0 %v3083, 126
        %v3087 = vpop.permute.xlu0 %3086
        %v3088 = vrot.slane %v3085, 4
        %v3089 = vrot.slane %v3087, 4
        %v3090 = vsel %vm793, %v3088, %v3089
        %vm3091 = vcmask 1031168
        %v3092 = vsel %vm3091, %v3085, %v3090
        %3094 = vst [vmem:[#allocation3 + $0x10] sm:$0xff] %v3092
        %v3095 = vld [vmem:[#allocation2 + $0x10] sm:$0xff]
        %v3096 = vld [vmem:[#allocation2 + $0x18] sm:$0xff]
        %v3097 = vld [vmem:[#allocation2 + $0x20] sm:$0xff]
        %v3098 = vpack.c.bf16 %v3095, %v3095
        %v3099 = vpack.c.bf16 %v3096, %v3096
        %v3100 = vpack.c.bf16 %v3097, %v3097
        %v3104 = vunpack.c.l.b16 %v3098
        %v3105 = vunpack.c.l.b16 %v3099
        %v3106 = vunpack.c.l.b16 %v3100
        %v3107 = vpack.c.b16 %v3105, %v3104
        %v3108 = vpack.c.b16 %v3106, %v3106
        %3109 = vrot.lane.b32.xlu0 %v3107, 58
        %v3110 = vpop.permute.xlu0 %3109
        %3111 = vrot.lane.b32.xlu0 %v3108, 58
        %v3112 = vpop.permute.xlu0 %3111
        %v3113 = vrot.slane %v3110, 4
        %v3114 = vrot.slane %v3112, 4
        %v3115 = vsel %vm793, %v3113, %v3114
        %vm3116 = vcmask 474112
        %v3117 = vsel %vm3116, %v3110, %v3115
        %3119 = vst [vmem:[#allocation3 + $0x18] sm:$0xff] %v3117
        %v3120 = vld [vmem:[#allocation2] sm:$0xff]
        %v3121 = vld [vmem:[#allocation2 + $0x8] sm:$0xff]
        %v3122 = vld [vmem:[#allocation2 + $0x10] sm:$0xff]
        %3123 = vrot.lane.b32.xlu0 %v574, 4
        %v3124 = vpop.permute.xlu0 %3123
        %3125 = vrot.lane.b32.xlu0 %v578, 4
        %v3126 = vpop.permute.xlu0 %3125
        %v3127 = vsel %vm630, %v3124, %v3126
        %v3131 = vmul.f32 %v3120, %v3124
        %v3132 = vmul.f32 %v3121, %v3127
        %v3133 = vmul.f32 %v3122, %v3126
        %v3134 = vpack.c.bf16 %v3131, %v3131
        %v3135 = vpack.c.bf16 %v3132, %v3132
        %v3136 = vpack.c.bf16 %v3133, %v3133
        %v3140 = vunpack.c.l.b16 %v3134
        %v3141 = vunpack.c.l.b16 %v3135
        %v3142 = vunpack.c.l.b16 %v3136
        %v3143 = vpack.c.b16 %v3141, %v3140
        %v3144 = vpack.c.b16 %v3142, %v3142
        %3145 = vrot.lane.b32.xlu0 %v3143, 124
        %v3146 = vpop.permute.xlu0 %3145
        %3147 = vrot.lane.b32.xlu0 %v3144, 124
        %v3148 = vpop.permute.xlu0 %3147
        %v3149 = vrot.slane %v3146, 4
        %v3150 = vrot.slane %v3148, 4
        %v3151 = vsel %vm793, %v3149, %v3150
        %vm3152 = vcmask 1014784
        %v3153 = vsel %vm3152, %v3146, %v3151
        %3155 = vst [vmem:[#allocation3 + $0x20] sm:$0xff] %v3153
        %v3156 = vld [vmem:[#allocation2 + $0x10] sm:$0xff]
        %v3157 = vld [vmem:[#allocation2 + $0x18] sm:$0xff]
        %v3158 = vld [vmem:[#allocation2 + $0x20] sm:$0xff]
        %3159 = vrot.lane.b32.xlu0 %v574, 72
        %v3160 = vpop.permute.xlu0 %3159
        %3161 = vrot.lane.b32.xlu0 %v578, 72
        %v3162 = vpop.permute.xlu0 %3161
        %v3163 = vsel %vm1471, %v3160, %v3162
        %v3167 = vmul.f32 %v3156, %v3160
        %v3168 = vmul.f32 %v3157, %v3163
        %v3169 = vmul.f32 %v3158, %v3162
        %v3170 = vpack.c.bf16 %v3167, %v3167
        %v3171 = vpack.c.bf16 %v3168, %v3168
        %v3172 = vpack.c.bf16 %v3169, %v3169
        %v3176 = vunpack.c.l.b16 %v3170
        %v3177 = vunpack.c.l.b16 %v3171
        %v3178 = vunpack.c.l.b16 %v3172
        %v3179 = vpack.c.b16 %v3177, %v3176
        %v3180 = vpack.c.b16 %v3178, %v3178
        %3181 = vrot.lane.b32.xlu0 %v3179, 56
        %v3182 = vpop.permute.xlu0 %3181
        %3183 = vrot.lane.b32.xlu0 %v3180, 56
        %v3184 = vpop.permute.xlu0 %3183
        %v3185 = vrot.slane %v3182, 4
        %v3186 = vrot.slane %v3184, 4
        %v3187 = vsel %vm793, %v3185, %v3186
        %vm3188 = vcmask 457728
        %v3189 = vsel %vm3188, %v3182, %v3187
        %3191 = vst [vmem:[#allocation3 + $0x28] sm:$0xff] %v3189
        %v3192 = vld [vmem:[#allocation2] sm:$0xff]
        %v3193 = vld [vmem:[#allocation2 + $0x8] sm:$0xff]
        %v3194 = vld [vmem:[#allocation2 + $0x10] sm:$0xff]
        %3195 = vrot.lane.b32.xlu0 %v561, 32
        %v3196 = vpop.permute.xlu0 %3195
        %3197 = vrot.lane.b32.xlu0 %v565, 32
        %v3198 = vpop.permute.xlu0 %3197
        %vm3199 = vcmask 261120
        %v3200 = vsel %vm3199, %v3196, %v3198
        %v3204 = vmul.f32 %v3192, %v3196
        %v3205 = vmul.f32 %v3193, %v3200
        %v3206 = vmul.f32 %v3194, %v3198
        %v3207 = vpack.c.bf16 %v3204, %v3204
        %v3208 = vpack.c.bf16 %v3205, %v3205
        %v3209 = vpack.c.bf16 %v3206, %v3206
        %v3213 = vunpack.c.l.b16 %v3207
        %v3214 = vunpack.c.l.b16 %v3208
        %v3215 = vunpack.c.l.b16 %v3209
        %v3216 = vpack.c.b16 %v3214, %v3213
        %v3217 = vpack.c.b16 %v3215, %v3215
        %3218 = vrot.lane.b32.xlu0 %v3216, 96
        %v3219 = vpop.permute.xlu0 %3218
        %3220 = vrot.lane.b32.xlu0 %v3217, 96
        %v3221 = vpop.permute.xlu0 %3220
        %v3222 = vrot.slane %v3219, 4
        %v3223 = vrot.slane %v3221, 4
        %v3224 = vsel %vm793, %v3222, %v3223
        %vm3225 = vcmask 785408
        %v3226 = vsel %vm3225, %v3219, %v3224
        %3228 = vst [vmem:[#allocation3 + $0x30] sm:$0xff] %v3226
        %v3229 = vld [vmem:[#allocation2 + $0x10] sm:$0xff]
        %v3230 = vld [vmem:[#allocation2 + $0x18] sm:$0xff]
        %v3231 = vld [vmem:[#allocation2 + $0x20] sm:$0xff]
        %3232 = vrot.lane.b32.xlu0 %v561, 100
        %v3233 = vpop.permute.xlu0 %3232
        %3234 = vrot.lane.b32.xlu0 %v565, 100
        %v3235 = vpop.permute.xlu0 %3234
        %vm3236 = vcmask 818176
        %v3237 = vsel %vm3236, %v3233, %v3235
        %v3241 = vmul.f32 %v3229, %v3233
        %v3242 = vmul.f32 %v3230, %v3237
        %v3243 = vmul.f32 %v3231, %v3235
        %v3244 = vpack.c.bf16 %v3241, %v3241
        %v3245 = vpack.c.bf16 %v3242, %v3242
        %v3246 = vpack.c.bf16 %v3243, %v3243
        %v3250 = vunpack.c.l.b16 %v3244
        %v3251 = vunpack.c.l.b16 %v3245
        %v3252 = vunpack.c.l.b16 %v3246
        %v3253 = vpack.c.b16 %v3251, %v3250
        %v3254 = vpack.c.b16 %v3252, %v3252
        %3255 = vrot.lane.b32.xlu0 %v3253, 28
        %v3256 = vpop.permute.xlu0 %3255
        %3257 = vrot.lane.b32.xlu0 %v3254, 28
        %v3258 = vpop.permute.xlu0 %3257
        %v3259 = vrot.slane %v3256, 4
        %v3260 = vrot.slane %v3258, 4
        %v3261 = vsel %vm793, %v3259, %v3260
        %vm3262 = vcmask 228352
        %v3263 = vsel %vm3262, %v3256, %v3261
        %3265 = vst [vmem:[#allocation3 + $0x38] sm:$0xff] %v3263
        %v3266 = vld [vmem:[#allocation2] sm:$0xff]
        %v3267 = vld [vmem:[#allocation2 + $0x8] sm:$0xff]
        %v3268 = vld [vmem:[#allocation2 + $0x10] sm:$0xff]
        %v3269 = vpack.c.bf16 %v3266, %v3266
        %v3270 = vpack.c.bf16 %v3267, %v3267
        %v3271 = vpack.c.bf16 %v3268, %v3268
        %v3275 = vunpack.c.l.b16 %v3269
        %v3276 = vunpack.c.l.b16 %v3270
        %v3277 = vunpack.c.l.b16 %v3271
        %v3278 = vpack.c.b16 %v3276, %v3275
        %v3279 = vpack.c.b16 %v3277, %v3277
        %3280 = vrot.lane.b32.xlu0 %v3278, 94
        %v3281 = vpop.permute.xlu0 %3280
        %3282 = vrot.lane.b32.xlu0 %v3279, 94
        %v3283 = vpop.permute.xlu0 %3282
        %v3284 = vrot.slane %v3281, 4
        %v3285 = vrot.slane %v3283, 4
        %v3286 = vsel %vm793, %v3284, %v3285
        %v3287 = vsel %vm1055, %v3281, %v3286
        %3289 = vst [vmem:[#allocation3 + $0x40] sm:$0xff] %v3287
        %v3290 = vld [vmem:[#allocation2 + $0x10] sm:$0xff]
        %v3291 = vld [vmem:[#allocation2 + $0x18] sm:$0xff]
        %v3292 = vld [vmem:[#allocation2 + $0x20] sm:$0xff]
        %v3293 = vpack.c.bf16 %v3290, %v3290
        %v3294 = vpack.c.bf16 %v3291, %v3291
        %v3295 = vpack.c.bf16 %v3292, %v3292
        %v3299 = vunpack.c.l.b16 %v3293
        %v3300 = vunpack.c.l.b16 %v3294
        %v3301 = vunpack.c.l.b16 %v3295
        %v3302 = vpack.c.b16 %v3300, %v3299
        %v3303 = vpack.c.b16 %v3301, %v3301
        %3304 = vrot.lane.b32.xlu0 %v3302, 26
        %v3305 = vpop.permute.xlu0 %3304
        %3306 = vrot.lane.b32.xlu0 %v3303, 26
        %v3307 = vpop.permute.xlu0 %3306
        %v3308 = vrot.slane %v3305, 4
        %v3309 = vrot.slane %v3307, 4
        %v3310 = vsel %vm793, %v3308, %v3309
        %v3311 = vsel %vm1080, %v3305, %v3310
        %3313 = vst [vmem:[#allocation3 + $0x48] sm:$0xff] %v3311
        %v3314 = vld [vmem:[#allocation2] sm:$0xff]
        %v3315 = vld [vmem:[#allocation2 + $0x8] sm:$0xff]
        %v3316 = vld [vmem:[#allocation2 + $0x10] sm:$0xff]
        %3317 = vrot.lane.b32.xlu0 %v574, 36
        %v3318 = vpop.permute.xlu0 %3317
        %3319 = vrot.lane.b32.xlu0 %v578, 36
        %v3320 = vpop.permute.xlu0 %3319
        %vm3321 = vcmask 293888
        %v3322 = vsel %vm3321, %v3318, %v3320
        %v3326 = vmul.f32 %v3314, %v3318
        %v3327 = vmul.f32 %v3315, %v3322
        %v3328 = vmul.f32 %v3316, %v3320
        %v3329 = vpack.c.bf16 %v3326, %v3326
        %v3330 = vpack.c.bf16 %v3327, %v3327
        %v3331 = vpack.c.bf16 %v3328, %v3328
        %v3335 = vunpack.c.l.b16 %v3329
        %v3336 = vunpack.c.l.b16 %v3330
        %v3337 = vunpack.c.l.b16 %v3331
        %v3338 = vpack.c.b16 %v3336, %v3335
        %v3339 = vpack.c.b16 %v3337, %v3337
        %3340 = vrot.lane.b32.xlu0 %v3338, 92
        %v3341 = vpop.permute.xlu0 %3340
        %3342 = vrot.lane.b32.xlu0 %v3339, 92
        %v3343 = vpop.permute.xlu0 %3342
        %v3344 = vrot.slane %v3341, 4
        %v3345 = vrot.slane %v3343, 4
        %v3346 = vsel %vm793, %v3344, %v3345
        %vm3347 = vcmask 752640
        %v3348 = vsel %vm3347, %v3341, %v3346
        %3350 = vst [vmem:[#allocation3 + $0x50] sm:$0xff] %v3348
        %v3351 = vld [vmem:[#allocation2 + $0x10] sm:$0xff]
        %v3352 = vld [vmem:[#allocation2 + $0x18] sm:$0xff]
        %v3353 = vld [vmem:[#allocation2 + $0x20] sm:$0xff]
        %3354 = vrot.lane.b32.xlu0 %v574, 104
        %v3355 = vpop.permute.xlu0 %3354
        %3356 = vrot.lane.b32.xlu0 %v578, 104
        %v3357 = vpop.permute.xlu0 %3356
        %vm3358 = vcmask 850944
        %v3359 = vsel %vm3358, %v3355, %v3357
        %v3363 = vmul.f32 %v3351, %v3355
        %v3364 = vmul.f32 %v3352, %v3359
        %v3365 = vmul.f32 %v3353, %v3357
        %v3366 = vpack.c.bf16 %v3363, %v3363
        %v3367 = vpack.c.bf16 %v3364, %v3364
        %v3368 = vpack.c.bf16 %v3365, %v3365
        %v3372 = vunpack.c.l.b16 %v3366
        %v3373 = vunpack.c.l.b16 %v3367
        %v3374 = vunpack.c.l.b16 %v3368
        %v3375 = vpack.c.b16 %v3373, %v3372
        %v3376 = vpack.c.b16 %v3374, %v3374
        %3377 = vrot.lane.b32.xlu0 %v3375, 24
        %v3378 = vpop.permute.xlu0 %3377
        %3379 = vrot.lane.b32.xlu0 %v3376, 24
        %v3380 = vpop.permute.xlu0 %3379
        %v3381 = vrot.slane %v3378, 4
        %v3382 = vrot.slane %v3380, 4
        %v3383 = vsel %vm793, %v3381, %v3382
        %vm3384 = vcmask 195584
        %v3385 = vsel %vm3384, %v3378, %v3383
        %3387 = vst [vmem:[#allocation3 + $0x58] sm:$0xff] %v3385
        %v3388 = vld [vmem:[#allocation2] sm:$0xff]
        %v3389 = vld [vmem:[#allocation2 + $0x8] sm:$0xff]
        %v3390 = vld [vmem:[#allocation2 + $0x10] sm:$0xff]
        %3391 = vrot.lane.b32.xlu0 %v561, 64
        %v3392 = vpop.permute.xlu0 %3391
        %3393 = vrot.lane.b32.xlu0 %v565, 64
        %v3394 = vpop.permute.xlu0 %3393
        %vm3395 = vcmask 523264
        %v3396 = vsel %vm3395, %v3392, %v3394
        %v3400 = vmul.f32 %v3388, %v3392
        %v3401 = vmul.f32 %v3389, %v3396
        %v3402 = vmul.f32 %v3390, %v3394
        %v3403 = vpack.c.bf16 %v3400, %v3400
        %v3404 = vpack.c.bf16 %v3401, %v3401
        %v3405 = vpack.c.bf16 %v3402, %v3402
        %v3409 = vunpack.c.l.b16 %v3403
        %v3410 = vunpack.c.l.b16 %v3404
        %v3411 = vunpack.c.l.b16 %v3405
        %v3412 = vpack.c.b16 %v3410, %v3409
        %v3413 = vpack.c.b16 %v3411, %v3411
        %3414 = vrot.lane.b32.xlu0 %v3412, 64
        %v3415 = vpop.permute.xlu0 %3414
        %3416 = vrot.lane.b32.xlu0 %v3413, 64
        %v3417 = vpop.permute.xlu0 %3416
        %v3418 = vrot.slane %v3415, 4
        %v3419 = vrot.slane %v3417, 4
        %v3420 = vsel %vm793, %v3418, %v3419
        %vm3421 = vcmask 523264
        %v3422 = vsel %vm3421, %v3415, %v3420
        %3424 = vst [vmem:[#allocation3 + $0x60] sm:$0xff] %v3422
        %v3425 = vld [vmem:[#allocation2 + $0x18] sm:$0xff]
        %v3426 = vld [vmem:[#allocation2 + $0x20] sm:$0xff]
        %v3427 = vld [vmem:[#allocation2 + $0x28] sm:$0xff]
        %3428 = vrot.lane.b32.xlu0 %v561, 4
        %v3429 = vpop.permute.xlu0 %3428
        %3430 = vrot.lane.b32.xlu0 %v565, 4
        %v3431 = vpop.permute.xlu0 %3430
        %v3432 = vsel %vm630, %v3429, %v3431
        %v3436 = vmul.f32 %v3425, %v3429
        %v3437 = vmul.f32 %v3426, %v3432
        %v3438 = vmul.f32 %v3427, %v3431
        %v3439 = vpack.c.bf16 %v3436, %v3436
        %v3440 = vpack.c.bf16 %v3437, %v3437
        %v3441 = vpack.c.bf16 %v3438, %v3438
        %v3445 = vunpack.c.l.b16 %v3439
        %v3446 = vunpack.c.l.b16 %v3440
        %v3447 = vunpack.c.l.b16 %v3441
        %v3448 = vpack.c.b16 %v3446, %v3445
        %v3449 = vpack.c.b16 %v3447, %v3447
        %3450 = vrot.lane.b32.xlu0 %v3448, 124
        %v3451 = vpop.permute.xlu0 %3450
        %3452 = vrot.lane.b32.xlu0 %v3449, 124
        %v3453 = vpop.permute.xlu0 %3452
        %v3454 = vrot.slane %v3451, 4
        %v3455 = vrot.slane %v3453, 4
        %v3456 = vsel %vm793, %v3454, %v3455
        %v3457 = vsel %vm3152, %v3451, %v3456
        %3459 = vst [vmem:[#allocation3 + $0x68] sm:$0xff] %v3457
        %v3460 = vld [vmem:[#allocation2] sm:$0xff]
        %v3461 = vld [vmem:[#allocation2 + $0x8] sm:$0xff]
        %v3462 = vld [vmem:[#allocation2 + $0x10] sm:$0xff]
        %v3463 = vpack.c.bf16 %v3460, %v3460
        %v3464 = vpack.c.bf16 %v3461, %v3461
        %v3465 = vpack.c.bf16 %v3462, %v3462
        %v3469 = vunpack.c.l.b16 %v3463
        %v3470 = vunpack.c.l.b16 %v3464
        %v3471 = vunpack.c.l.b16 %v3465
        %v3472 = vpack.c.b16 %v3470, %v3469
        %v3473 = vpack.c.b16 %v3471, %v3471
        %3474 = vrot.lane.b32.xlu0 %v3472, 62
        %v3475 = vpop.permute.xlu0 %3474
        %3476 = vrot.lane.b32.xlu0 %v3473, 62
        %v3477 = vpop.permute.xlu0 %3476
        %v3478 = vrot.slane %v3475, 4
        %v3479 = vrot.slane %v3477, 4
        %v3480 = vsel %vm793, %v3478, %v3479
        %vm3481 = vcmask 506880
        %v3482 = vsel %vm3481, %v3475, %v3480
        %3484 = vst [vmem:[#allocation3 + $0x70] sm:$0xff] %v3482
        %v3485 = vld [vmem:[#allocation2 + $0x18] sm:$0xff]
        %v3486 = vld [vmem:[#allocation2 + $0x20] sm:$0xff]
        %v3487 = vld [vmem:[#allocation2 + $0x28] sm:$0xff]
        %v3488 = vpack.c.bf16 %v3485, %v3485
        %v3489 = vpack.c.bf16 %v3486, %v3486
        %v3490 = vpack.c.bf16 %v3487, %v3487
        %v3494 = vunpack.c.l.b16 %v3488
        %v3495 = vunpack.c.l.b16 %v3489
        %v3496 = vunpack.c.l.b16 %v3490
        %v3497 = vpack.c.b16 %v3495, %v3494
        %v3498 = vpack.c.b16 %v3496, %v3496
        %3499 = vrot.lane.b32.xlu0 %v3497, 122
        %v3500 = vpop.permute.xlu0 %3499
        %3501 = vrot.lane.b32.xlu0 %v3498, 122
        %v3502 = vpop.permute.xlu0 %3501
        %v3503 = vrot.slane %v3500, 4
        %v3504 = vrot.slane %v3502, 4
        %v3505 = vsel %vm793, %v3503, %v3504
        %vm3506 = vcmask 998400
        %v3507 = vsel %vm3506, %v3500, %v3505
        %3509 = vst [vmem:[#allocation3 + $0x78] sm:$0xff] %v3507
        %v3510 = vld [vmem:[#allocation2] sm:$0xff]
        %v3511 = vld [vmem:[#allocation2 + $0x8] sm:$0xff]
        %v3512 = vld [vmem:[#allocation2 + $0x10] sm:$0xff]
        %3513 = vrot.lane.b32.xlu0 %v574, 68
        %v3514 = vpop.permute.xlu0 %3513
        %3515 = vrot.lane.b32.xlu0 %v578, 68
        %v3516 = vpop.permute.xlu0 %3515
        %v3517 = vsel %vm3040, %v3514, %v3516
        %v3521 = vmul.f32 %v3510, %v3514
        %v3522 = vmul.f32 %v3511, %v3517
        %v3523 = vmul.f32 %v3512, %v3516
        %v3524 = vpack.c.bf16 %v3521, %v3521
        %v3525 = vpack.c.bf16 %v3522, %v3522
        %v3526 = vpack.c.bf16 %v3523, %v3523
        %v3530 = vunpack.c.l.b16 %v3524
        %v3531 = vunpack.c.l.b16 %v3525
        %v3532 = vunpack.c.l.b16 %v3526
        %v3533 = vpack.c.b16 %v3531, %v3530
        %v3534 = vpack.c.b16 %v3532, %v3532
        %3535 = vrot.lane.b32.xlu0 %v3533, 60
        %v3536 = vpop.permute.xlu0 %3535
        %3537 = vrot.lane.b32.xlu0 %v3534, 60
        %v3538 = vpop.permute.xlu0 %3537
        %v3539 = vrot.slane %v3536, 4
        %v3540 = vrot.slane %v3538, 4
        %v3541 = vsel %vm793, %v3539, %v3540
        %v3542 = vsel %vm3066, %v3536, %v3541
        %3544 = vst [vmem:[#allocation3 + $0x80] sm:$0xff] %v3542
        %v3545 = vld [vmem:[#allocation2 + $0x18] sm:$0xff]
        %v3546 = vld [vmem:[#allocation2 + $0x20] sm:$0xff]
        %v3547 = vld [vmem:[#allocation2 + $0x28] sm:$0xff]
        %3548 = vrot.lane.b32.xlu0 %v574, 8
        %v3549 = vpop.permute.xlu0 %3548
        %3550 = vrot.lane.b32.xlu0 %v578, 8
        %v3551 = vpop.permute.xlu0 %3550
        %v3552 = vsel %vm532, %v3549, %v3551
        %v3556 = vmul.f32 %v3545, %v3549
        %v3557 = vmul.f32 %v3546, %v3552
        %v3558 = vmul.f32 %v3547, %v3551
        %v3559 = vpack.c.bf16 %v3556, %v3556
        %v3560 = vpack.c.bf16 %v3557, %v3557
        %v3561 = vpack.c.bf16 %v3558, %v3558
        %v3565 = vunpack.c.l.b16 %v3559
        %v3566 = vunpack.c.l.b16 %v3560
        %v3567 = vunpack.c.l.b16 %v3561
        %v3568 = vpack.c.b16 %v3566, %v3565
        %v3569 = vpack.c.b16 %v3567, %v3567
        %3570 = vrot.lane.b32.xlu0 %v3568, 120
        %v3571 = vpop.permute.xlu0 %3570
        %3572 = vrot.lane.b32.xlu0 %v3569, 120
        %v3573 = vpop.permute.xlu0 %3572
        %v3574 = vrot.slane %v3571, 4
        %v3575 = vrot.slane %v3573, 4
        %v3576 = vsel %vm793, %v3574, %v3575
        %vm3577 = vcmask 982016
        %v3578 = vsel %vm3577, %v3571, %v3576
        %3580 = vst [vmem:[#allocation3 + $0x88] sm:$0xff] %v3578
        %v3581 = vld [vmem:[#allocation3] sm:$0xff]
        %v3582 = vld [vmem:[#allocation3 + $0x8] sm:$0xff]
        %v3583 = vld [vmem:[#allocation3 + $0x10] sm:$0xff]
        %v3584 = vld [vmem:[#allocation3 + $0x18] sm:$0xff]
        %v3585 = vld [vmem:[#allocation3 + $0x20] sm:$0xff]
        %v3586 = vld [vmem:[#allocation3 + $0x28] sm:$0xff]
        %v3587 = vld [vmem:[#allocation3 + $0x30] sm:$0xff]
        %v3588 = vld [vmem:[#allocation3 + $0x38] sm:$0xff]
        %v3589 = vld [vmem:[#allocation3 + $0x40] sm:$0xff]
        %v3590 = vld [vmem:[#allocation3 + $0x48] sm:$0xff]
        %v3591 = vld [vmem:[#allocation3 + $0x50] sm:$0xff]
        %v3592 = vld [vmem:[#allocation3 + $0x58] sm:$0xff]
        %v3593 = vld [vmem:[#allocation3 + $0x60] sm:$0xff]
        %v3594 = vld [vmem:[#allocation3 + $0x68] sm:$0xff]
        %v3595 = vld [vmem:[#allocation3 + $0x70] sm:$0xff]
        %v3596 = vld [vmem:[#allocation3 + $0x78] sm:$0xff]
        %v3597 = vld [vmem:[#allocation3 + $0x80] sm:$0xff]
        %v3598 = vld [vmem:[#allocation3 + $0x88] sm:$0xff]
        %v3599 = vld [vmem:[%s12] sm:$0xf]
        %v3600 = vld [vmem:[%s13] sm:$0xff]
        %3602 = vset.pattern.permute.xlu0 0
        %3603 = vperm.xlu0 %3602, %v3600
        %v3604 = vpop.permute.xlu0 %3603
        %v3624 = vunpack.c.l.b16 %v3581
        %v3625 = vunpack.c.h.b16 %v3581
        %v3626 = vunpack.c.l.b16 %v3582
        %v3627 = vunpack.c.h.b16 %v3582
        %v3628 = vunpack.c.l.b16 %v3583
        %v3629 = vunpack.c.h.b16 %v3583
        %v3630 = vunpack.c.l.b16 %v3584
        %v3631 = vunpack.c.h.b16 %v3584
        %v3632 = vunpack.c.l.b16 %v3585
        %v3633 = vunpack.c.h.b16 %v3585
        %v3634 = vunpack.c.l.b16 %v3586
        %v3635 = vunpack.c.h.b16 %v3586
        %v3636 = vunpack.c.l.b16 %v3587
        %v3637 = vunpack.c.h.b16 %v3587
        %v3638 = vunpack.c.l.b16 %v3588
        %v3639 = vunpack.c.h.b16 %v3588
        %v3640 = vunpack.c.l.b16 %v3589
        %v3641 = vunpack.c.h.b16 %v3589
        %v3642 = vunpack.c.l.b16 %v3590
        %v3643 = vunpack.c.h.b16 %v3590
        %v3644 = vunpack.c.l.b16 %v3591
        %v3645 = vunpack.c.h.b16 %v3591
        %v3646 = vunpack.c.l.b16 %v3592
        %v3647 = vunpack.c.h.b16 %v3592
        %v3648 = vunpack.c.l.b16 %v3593
        %v3649 = vunpack.c.h.b16 %v3593
        %v3650 = vunpack.c.l.b16 %v3594
        %v3651 = vunpack.c.h.b16 %v3594
        %v3652 = vunpack.c.l.b16 %v3595
        %v3653 = vunpack.c.h.b16 %v3595
        %v3654 = vunpack.c.l.b16 %v3596
        %v3655 = vunpack.c.h.b16 %v3596
        %v3656 = vunpack.c.l.b16 %v3597
        %v3657 = vunpack.c.h.b16 %v3597
        %v3658 = vunpack.c.l.b16 %v3598
        %v3659 = vunpack.c.h.b16 %v3598
        %v3660 = vpack.c.b16 %v3628, %v3624
        %v3661 = vpack.c.b16 %v3629, %v3625
        %v3662 = vpack.c.b16 %v3630, %v3626
        %v3663 = vpack.c.b16 %v3631, %v3627
        %v3664 = vpack.c.b16 %v3636, %v3632
        %v3665 = vpack.c.b16 %v3637, %v3633
        %v3666 = vpack.c.b16 %v3638, %v3634
        %v3667 = vpack.c.b16 %v3639, %v3635
        %v3668 = vpack.c.b16 %v3644, %v3640
        %v3669 = vpack.c.b16 %v3645, %v3641
        %v3670 = vpack.c.b16 %v3646, %v3642
        %v3671 = vpack.c.b16 %v3647, %v3643
        %v3672 = vpack.c.b16 %v3652, %v3648
        %v3673 = vpack.c.b16 %v3653, %v3649
        %v3674 = vpack.c.b16 %v3654, %v3650
        %v3675 = vpack.c.b16 %v3655, %v3651
        %v3676 = vpack.c.b16 %v3656, %v3656
        %v3677 = vpack.c.b16 %v3657, %v3657
        %v3678 = vpack.c.b16 %v3658, %v3658
        %v3679 = vpack.c.b16 %v3659, %v3659
        %v3697 = vsel %vm1471, %v3599, 0
        %v3700 = vsel %vm1475, %v3676, 0
        %v3703 = vsel %vm1475, %v3677, 0
        %v3706 = vsel %vm1475, %v3678, 0
        %v3709 = vsel %vm1475, %v3679, 0
        %3711 = vmatprep.subr.bf16.mxu0 %v3661
        %3712 = vmatpush1.bf16.msra.mxu0 %v3660
        %3713 = vmatprep.subr.bf16.mxu0 %v3665
        %3714 = vmatpush1.bf16.msra.mxu0 %v3664
        %3715 = vmatprep.subr.bf16.mxu0 %v3669
        %3716 = vmatpush1.bf16.msra.mxu0 %v3668
        %3717 = vmatprep.subr.bf16.mxu0 %v3673
        %3718 = vmatpush1.bf16.msra.mxu0 %v3672
        %3719 = vmatprep.subr.bf16.mxu0 %v3703
        %3720 = vmatpush1.bf16.msra.mxu0 %v3700
        %3721 = vmatprep.subr.bf16.mxu0 0
        %3722 = vmatpush1.bf16.msra.mxu0 0
        %3723 = vmatprep.subr.bf16.mxu0 0
        %3724 = vmatpush1.bf16.msra.mxu0 0
        %3725 = vmatprep.subr.bf16.mxu0 0
        %3726 = vmatpush1.bf16.msra.mxu0 0
        %3727 = vmatprep.subr.bf16.mxu0 0
        %3728 = vmatpush1.bf16.msra.mxu0 0
        %3729 = vmatprep.subr.bf16.mxu0 0
        %3730 = vmatpush1.bf16.msra.mxu0 0
        %3731 = vmatprep.subr.bf16.mxu0 0
        %3732 = vmatpush1.bf16.msra.mxu0 0
        %3733 = vmatprep.subr.bf16.mxu0 0
        %3734 = vmatpush1.bf16.msra.mxu0 0
        %3735 = vmatprep.subr.bf16.mxu0 0
        %3736 = vmatpush1.bf16.msra.mxu0 0
        %3737 = vmatprep.subr.bf16.mxu0 0
        %3738 = vmatpush1.bf16.msra.mxu0 0
        %3739 = vmatprep.subr.bf16.mxu0 0
        %3740 = vmatpush1.bf16.msra.mxu0 0
        %3741 = vmatprep.subr.bf16.mxu0 0
        %3742 = vmatpush1.bf16.msra.mxu0 0
        %3743 = vmatprep.mubr.bf16.mxu0 0
        %3744 = vmatmul.mubr.bf16.gmra.mrb[0].mxu0 %v3697
        %v3745 = vpop.f32.mrb[0].mxu0
        %v3746 = vadd.f32 %v3604, %v3745
        %v3747 = vpop.f32.mrb[0].mxu0
        %v3748 = vadd.f32 %v3604, %v3747
        %v3749 = vpop.f32.mrb[0].mxu0
        %v3750 = vpop.f32.mrb[0].mxu0
        %3751 = vdwg.mxu0
        %3752 = vmatprep.subr.bf16.mxu0 %v3663
        %3753 = vmatpush1.bf16.msra.mxu0 %v3662
        %3754 = vmatprep.subr.bf16.mxu0 %v3667
        %3755 = vmatpush1.bf16.msra.mxu0 %v3666
        %3756 = vmatprep.subr.bf16.mxu0 %v3671
        %3757 = vmatpush1.bf16.msra.mxu0 %v3670
        %3758 = vmatprep.subr.bf16.mxu0 %v3675
        %3759 = vmatpush1.bf16.msra.mxu0 %v3674
        %3760 = vmatprep.subr.bf16.mxu0 %v3709
        %3761 = vmatpush1.bf16.msra.mxu0 %v3706
        %3762 = vmatprep.subr.bf16.mxu0 0
        %3763 = vmatpush1.bf16.msra.mxu0 0
        %3764 = vmatprep.subr.bf16.mxu0 0
        %3765 = vmatpush1.bf16.msra.mxu0 0
        %3766 = vmatprep.subr.bf16.mxu0 0
        %3767 = vmatpush1.bf16.msra.mxu0 0
        %3768 = vmatprep.subr.bf16.mxu0 0
        %3769 = vmatpush1.bf16.msra.mxu0 0
        %3770 = vmatprep.subr.bf16.mxu0 0
        %3771 = vmatpush1.bf16.msra.mxu0 0
        %3772 = vmatprep.subr.bf16.mxu0 0
        %3773 = vmatpush1.bf16.msra.mxu0 0
        %3774 = vmatprep.subr.bf16.mxu0 0
        %3775 = vmatpush1.bf16.msra.mxu0 0
        %3776 = vmatprep.subr.bf16.mxu0 0
        %3777 = vmatpush1.bf16.msra.mxu0 0
        %3778 = vmatprep.subr.bf16.mxu0 0
        %3779 = vmatpush1.bf16.msra.mxu0 0
        %3780 = vmatprep.subr.bf16.mxu0 0
        %3781 = vmatpush1.bf16.msra.mxu0 0
        %3782 = vmatprep.subr.bf16.mxu0 0
        %3783 = vmatpush1.bf16.msra.mxu0 0
        %3784 = vmatprep.mubr.bf16.mxu0 0
        %3785 = vmatmul.mubr.bf16.gmra.mrb[0].mxu0 %v3697
        %v3786 = vpop.f32.mrb[0].mxu0
        %v3787 = vadd.f32 %v3604, %v3786
        %v3788 = vpop.f32.mrb[0].mxu0
        %v3789 = vadd.f32 %v3604, %v3788
        %v3790 = vpop.f32.mrb[0].mxu0
        %v3791 = vpop.f32.mrb[0].mxu0
        %3792 = vdwg.mxu0
        %v3793 = vmax.f32 %v3746, 0.0
        %v3794 = vmax.f32 %v3748, 0.0
        %v3795 = vmax.f32 %v3787, 0.0
        %v3796 = vmax.f32 %v3789, 0.0
        %3799 = vrot.lane.b32.xlu0 %v3793, 34
        %v3800 = vpop.permute.xlu0 %3799
        %3801 = vrot.lane.b32.xlu0 %v3794, 34
        %v3802 = vpop.permute.xlu0 %3801
        %v3803 = vsel %vm524, %v3800, %v3802
        %3807 = vst.msk [vmem:[#allocation2] sm:$0xff] %vm743, %v3800
        %3808 = vst [vmem:[#allocation2 + $0x8] sm:$0xff] %v3803
        %3809 = vst.msk [vmem:[#allocation2 + $0x10] sm:$0xff] %vm524, %v3802
        %3812 = vrot.lane.b32.xlu0 %v3795, 102
        %v3813 = vpop.permute.xlu0 %3812
        %3814 = vrot.lane.b32.xlu0 %v3796, 102
        %v3815 = vpop.permute.xlu0 %3814
        %v3816 = vsel %vm753, %v3813, %v3815
        %3820 = vst.msk [vmem:[#allocation2 + $0x10] sm:$0xff] %vm530, %v3813
        %3821 = vst [vmem:[#allocation2 + $0x18] sm:$0xff] %v3816
        %3822 = vst.msk [vmem:[#allocation2 + $0x20] sm:$0xff] %vm753, %v3815
        %v3823 = vld [vmem:[#allocation2] sm:$0xff]
        %v3824 = vld [vmem:[#allocation2 + $0x8] sm:$0xff]
        %v3825 = vld [vmem:[#allocation2 + $0x10] sm:$0xff]
        %v3826 = vmul.f32 %v3823, %v765
        %v3827 = vmul.f32 %v3824, %v769
        %v3828 = vmul.f32 %v3825, %v767
        %v3829 = vpack.c.bf16 %v3826, %v3826
        %v3830 = vpack.c.bf16 %v3827, %v3827
        %v3831 = vpack.c.bf16 %v3828, %v3828
        %v3835 = vunpack.c.l.b16 %v3829
        %v3836 = vunpack.c.l.b16 %v3830
        %v3837 = vunpack.c.l.b16 %v3831
        %v3838 = vpack.c.b16 %v3836, %v3835
        %v3839 = vpack.c.b16 %v3837, %v3837
        %3840 = vrot.lane.b32.xlu0 %v3838, 111
        %v3841 = vpop.permute.xlu0 %3840
        %3842 = vrot.lane.b32.xlu0 %v3839, 111
        %v3843 = vpop.permute.xlu0 %3842
        %v3844 = vrot.slane %v3841, 4
        %v3845 = vrot.slane %v3843, 4
        %v3846 = vsel %vm793, %v3844, %v3845
        %v3847 = vsel %vm795, %v3841, %v3846
        %3849 = vst [vmem:[#allocation3] sm:$0xff] %v3847
        %v3850 = vld [vmem:[#allocation2 + $0x10] sm:$0xff]
        %v3851 = vld [vmem:[#allocation2 + $0x18] sm:$0xff]
        %v3852 = vld [vmem:[#allocation2 + $0x20] sm:$0xff]
        %v3853 = vmul.f32 %v3850, %v803
        %v3854 = vmul.f32 %v3851, %v807
        %v3855 = vmul.f32 %v3852, %v805
        %v3856 = vpack.c.bf16 %v3853, %v3853
        %v3857 = vpack.c.bf16 %v3854, %v3854
        %v3858 = vpack.c.bf16 %v3855, %v3855
        %v3862 = vunpack.c.l.b16 %v3856
        %v3863 = vunpack.c.l.b16 %v3857
        %v3864 = vunpack.c.l.b16 %v3858
        %v3865 = vpack.c.b16 %v3863, %v3862
        %v3866 = vpack.c.b16 %v3864, %v3864
        %3867 = vrot.lane.b32.xlu0 %v3865, 43
        %v3868 = vpop.permute.xlu0 %3867
        %3869 = vrot.lane.b32.xlu0 %v3866, 43
        %v3870 = vpop.permute.xlu0 %3869
        %v3871 = vrot.slane %v3868, 4
        %v3872 = vrot.slane %v3870, 4
        %v3873 = vsel %vm793, %v3871, %v3872
        %v3874 = vsel %vm832, %v3868, %v3873
        %3876 = vst [vmem:[#allocation3 + $0x8] sm:$0xff] %v3874
        %v3877 = vld [vmem:[#allocation2] sm:$0xff]
        %v3878 = vld [vmem:[#allocation2 + $0x8] sm:$0xff]
        %v3879 = vld [vmem:[#allocation2 + $0x10] sm:$0xff]
        %v3880 = vpack.c.bf16 %v3877, %v3877
        %v3881 = vpack.c.bf16 %v3878, %v3878
        %v3882 = vpack.c.bf16 %v3879, %v3879
        %v3886 = vunpack.c.l.b16 %v3880
        %v3887 = vunpack.c.l.b16 %v3881
        %v3888 = vunpack.c.l.b16 %v3882
        %v3889 = vpack.c.b16 %v3887, %v3886
        %v3890 = vpack.c.b16 %v3888, %v3888
        %3891 = vrot.lane.b32.xlu0 %v3889, 110
        %v3892 = vpop.permute.xlu0 %3891
        %3893 = vrot.lane.b32.xlu0 %v3890, 110
        %v3894 = vpop.permute.xlu0 %3893
        %v3895 = vrot.slane %v3892, 4
        %v3896 = vrot.slane %v3894, 4
        %v3897 = vsel %vm793, %v3895, %v3896
        %v3898 = vsel %vm857, %v3892, %v3897
        %3900 = vst [vmem:[#allocation3 + $0x10] sm:$0xff] %v3898
        %v3901 = vld [vmem:[#allocation2 + $0x10] sm:$0xff]
        %v3902 = vld [vmem:[#allocation2 + $0x18] sm:$0xff]
        %v3903 = vld [vmem:[#allocation2 + $0x20] sm:$0xff]
        %v3904 = vpack.c.bf16 %v3901, %v3901
        %v3905 = vpack.c.bf16 %v3902, %v3902
        %v3906 = vpack.c.bf16 %v3903, %v3903
        %v3910 = vunpack.c.l.b16 %v3904
        %v3911 = vunpack.c.l.b16 %v3905
        %v3912 = vunpack.c.l.b16 %v3906
        %v3913 = vpack.c.b16 %v3911, %v3910
        %v3914 = vpack.c.b16 %v3912, %v3912
        %3915 = vrot.lane.b32.xlu0 %v3913, 42
        %v3916 = vpop.permute.xlu0 %3915
        %3917 = vrot.lane.b32.xlu0 %v3914, 42
        %v3918 = vpop.permute.xlu0 %3917
        %v3919 = vrot.slane %v3916, 4
        %v3920 = vrot.slane %v3918, 4
        %v3921 = vsel %vm793, %v3919, %v3920
        %v3922 = vsel %vm882, %v3916, %v3921
        %3924 = vst [vmem:[#allocation3 + $0x18] sm:$0xff] %v3922
        %v3925 = vld [vmem:[#allocation2] sm:$0xff]
        %v3926 = vld [vmem:[#allocation2 + $0x8] sm:$0xff]
        %v3927 = vld [vmem:[#allocation2 + $0x10] sm:$0xff]
        %v3928 = vmul.f32 %v3925, %v890
        %v3929 = vmul.f32 %v3926, %v894
        %v3930 = vmul.f32 %v3927, %v892
        %v3931 = vpack.c.bf16 %v3928, %v3928
        %v3932 = vpack.c.bf16 %v3929, %v3929
        %v3933 = vpack.c.bf16 %v3930, %v3930
        %v3937 = vunpack.c.l.b16 %v3931
        %v3938 = vunpack.c.l.b16 %v3932
        %v3939 = vunpack.c.l.b16 %v3933
        %v3940 = vpack.c.b16 %v3938, %v3937
        %v3941 = vpack.c.b16 %v3939, %v3939
        %3942 = vrot.lane.b32.xlu0 %v3940, 109
        %v3943 = vpop.permute.xlu0 %3942
        %3944 = vrot.lane.b32.xlu0 %v3941, 109
        %v3945 = vpop.permute.xlu0 %3944
        %v3946 = vrot.slane %v3943, 4
        %v3947 = vrot.slane %v3945, 4
        %v3948 = vsel %vm793, %v3946, %v3947
        %v3949 = vsel %vm919, %v3943, %v3948
        %3951 = vst [vmem:[#allocation3 + $0x20] sm:$0xff] %v3949
        %v3952 = vld [vmem:[#allocation2 + $0x10] sm:$0xff]
        %v3953 = vld [vmem:[#allocation2 + $0x18] sm:$0xff]
        %v3954 = vld [vmem:[#allocation2 + $0x20] sm:$0xff]
        %v3955 = vmul.f32 %v3952, %v927
        %v3956 = vmul.f32 %v3953, %v931
        %v3957 = vmul.f32 %v3954, %v929
        %v3958 = vpack.c.bf16 %v3955, %v3955
        %v3959 = vpack.c.bf16 %v3956, %v3956
        %v3960 = vpack.c.bf16 %v3957, %v3957
        %v3964 = vunpack.c.l.b16 %v3958
        %v3965 = vunpack.c.l.b16 %v3959
        %v3966 = vunpack.c.l.b16 %v3960
        %v3967 = vpack.c.b16 %v3965, %v3964
        %v3968 = vpack.c.b16 %v3966, %v3966
        %3969 = vrot.lane.b32.xlu0 %v3967, 41
        %v3970 = vpop.permute.xlu0 %3969
        %3971 = vrot.lane.b32.xlu0 %v3968, 41
        %v3972 = vpop.permute.xlu0 %3971
        %v3973 = vrot.slane %v3970, 4
        %v3974 = vrot.slane %v3972, 4
        %v3975 = vsel %vm793, %v3973, %v3974
        %v3976 = vsel %vm956, %v3970, %v3975
        %3978 = vst [vmem:[#allocation3 + $0x28] sm:$0xff] %v3976
        %v3979 = vld [vmem:[#allocation2] sm:$0xff]
        %v3980 = vld [vmem:[#allocation2 + $0x8] sm:$0xff]
        %v3981 = vld [vmem:[#allocation2 + $0x10] sm:$0xff]
        %v3982 = vmul.f32 %v3979, %v964
        %v3983 = vmul.f32 %v3980, %v968
        %v3984 = vmul.f32 %v3981, %v966
        %v3985 = vpack.c.bf16 %v3982, %v3982
        %v3986 = vpack.c.bf16 %v3983, %v3983
        %v3987 = vpack.c.bf16 %v3984, %v3984
        %v3991 = vunpack.c.l.b16 %v3985
        %v3992 = vunpack.c.l.b16 %v3986
        %v3993 = vunpack.c.l.b16 %v3987
        %v3994 = vpack.c.b16 %v3992, %v3991
        %v3995 = vpack.c.b16 %v3993, %v3993
        %3996 = vrot.lane.b32.xlu0 %v3994, 95
        %v3997 = vpop.permute.xlu0 %3996
        %3998 = vrot.lane.b32.xlu0 %v3995, 95
        %v3999 = vpop.permute.xlu0 %3998
        %v4000 = vrot.slane %v3997, 4
        %v4001 = vrot.slane %v3999, 4
        %v4002 = vsel %vm793, %v4000, %v4001
        %v4003 = vsel %vm993, %v3997, %v4002
        %4005 = vst [vmem:[#allocation3 + $0x30] sm:$0xff] %v4003
        %v4006 = vld [vmem:[#allocation2 + $0x10] sm:$0xff]
        %v4007 = vld [vmem:[#allocation2 + $0x18] sm:$0xff]
        %v4008 = vld [vmem:[#allocation2 + $0x20] sm:$0xff]
        %v4009 = vmul.f32 %v4006, %v1001
        %v4010 = vmul.f32 %v4007, %v1005
        %v4011 = vmul.f32 %v4008, %v1003
        %v4012 = vpack.c.bf16 %v4009, %v4009
        %v4013 = vpack.c.bf16 %v4010, %v4010
        %v4014 = vpack.c.bf16 %v4011, %v4011
        %v4018 = vunpack.c.l.b16 %v4012
        %v4019 = vunpack.c.l.b16 %v4013
        %v4020 = vunpack.c.l.b16 %v4014
        %v4021 = vpack.c.b16 %v4019, %v4018
        %v4022 = vpack.c.b16 %v4020, %v4020
        %4023 = vrot.lane.b32.xlu0 %v4021, 27
        %v4024 = vpop.permute.xlu0 %4023
        %4025 = vrot.lane.b32.xlu0 %v4022, 27
        %v4026 = vpop.permute.xlu0 %4025
        %v4027 = vrot.slane %v4024, 4
        %v4028 = vrot.slane %v4026, 4
        %v4029 = vsel %vm793, %v4027, %v4028
        %v4030 = vsel %vm1030, %v4024, %v4029
        %4032 = vst [vmem:[#allocation3 + $0x38] sm:$0xff] %v4030
        %v4033 = vld [vmem:[#allocation2] sm:$0xff]
        %v4034 = vld [vmem:[#allocation2 + $0x8] sm:$0xff]
        %v4035 = vld [vmem:[#allocation2 + $0x10] sm:$0xff]
        %v4036 = vpack.c.bf16 %v4033, %v4033
        %v4037 = vpack.c.bf16 %v4034, %v4034
        %v4038 = vpack.c.bf16 %v4035, %v4035
        %v4042 = vunpack.c.l.b16 %v4036
        %v4043 = vunpack.c.l.b16 %v4037
        %v4044 = vunpack.c.l.b16 %v4038
        %v4045 = vpack.c.b16 %v4043, %v4042
        %v4046 = vpack.c.b16 %v4044, %v4044
        %4047 = vrot.lane.b32.xlu0 %v4045, 94
        %v4048 = vpop.permute.xlu0 %4047
        %4049 = vrot.lane.b32.xlu0 %v4046, 94
        %v4050 = vpop.permute.xlu0 %4049
        %v4051 = vrot.slane %v4048, 4
        %v4052 = vrot.slane %v4050, 4
        %v4053 = vsel %vm793, %v4051, %v4052
        %v4054 = vsel %vm1055, %v4048, %v4053
        %4056 = vst [vmem:[#allocation3 + $0x40] sm:$0xff] %v4054
        %v4057 = vld [vmem:[#allocation2 + $0x10] sm:$0xff]
        %v4058 = vld [vmem:[#allocation2 + $0x18] sm:$0xff]
        %v4059 = vld [vmem:[#allocation2 + $0x20] sm:$0xff]
        %v4060 = vpack.c.bf16 %v4057, %v4057
        %v4061 = vpack.c.bf16 %v4058, %v4058
        %v4062 = vpack.c.bf16 %v4059, %v4059
        %v4066 = vunpack.c.l.b16 %v4060
        %v4067 = vunpack.c.l.b16 %v4061
        %v4068 = vunpack.c.l.b16 %v4062
        %v4069 = vpack.c.b16 %v4067, %v4066
        %v4070 = vpack.c.b16 %v4068, %v4068
        %4071 = vrot.lane.b32.xlu0 %v4069, 26
        %v4072 = vpop.permute.xlu0 %4071
        %4073 = vrot.lane.b32.xlu0 %v4070, 26
        %v4074 = vpop.permute.xlu0 %4073
        %v4075 = vrot.slane %v4072, 4
        %v4076 = vrot.slane %v4074, 4
        %v4077 = vsel %vm793, %v4075, %v4076
        %v4078 = vsel %vm1080, %v4072, %v4077
        %4080 = vst [vmem:[#allocation3 + $0x48] sm:$0xff] %v4078
        %v4081 = vld [vmem:[#allocation2] sm:$0xff]
        %v4082 = vld [vmem:[#allocation2 + $0x8] sm:$0xff]
        %v4083 = vld [vmem:[#allocation2 + $0x10] sm:$0xff]
        %v4084 = vmul.f32 %v4081, %v1088
        %v4085 = vmul.f32 %v4082, %v1092
        %v4086 = vmul.f32 %v4083, %v1090
        %v4087 = vpack.c.bf16 %v4084, %v4084
        %v4088 = vpack.c.bf16 %v4085, %v4085
        %v4089 = vpack.c.bf16 %v4086, %v4086
        %v4093 = vunpack.c.l.b16 %v4087
        %v4094 = vunpack.c.l.b16 %v4088
        %v4095 = vunpack.c.l.b16 %v4089
        %v4096 = vpack.c.b16 %v4094, %v4093
        %v4097 = vpack.c.b16 %v4095, %v4095
        %4098 = vrot.lane.b32.xlu0 %v4096, 93
        %v4099 = vpop.permute.xlu0 %4098
        %4100 = vrot.lane.b32.xlu0 %v4097, 93
        %v4101 = vpop.permute.xlu0 %4100
        %v4102 = vrot.slane %v4099, 4
        %v4103 = vrot.slane %v4101, 4
        %v4104 = vsel %vm793, %v4102, %v4103
        %v4105 = vsel %vm1117, %v4099, %v4104
        %4107 = vst [vmem:[#allocation3 + $0x50] sm:$0xff] %v4105
        %v4108 = vld [vmem:[#allocation2 + $0x10] sm:$0xff]
        %v4109 = vld [vmem:[#allocation2 + $0x18] sm:$0xff]
        %v4110 = vld [vmem:[#allocation2 + $0x20] sm:$0xff]
        %v4111 = vmul.f32 %v4108, %v1125
        %v4112 = vmul.f32 %v4109, %v1129
        %v4113 = vmul.f32 %v4110, %v1127
        %v4114 = vpack.c.bf16 %v4111, %v4111
        %v4115 = vpack.c.bf16 %v4112, %v4112
        %v4116 = vpack.c.bf16 %v4113, %v4113
        %v4120 = vunpack.c.l.b16 %v4114
        %v4121 = vunpack.c.l.b16 %v4115
        %v4122 = vunpack.c.l.b16 %v4116
        %v4123 = vpack.c.b16 %v4121, %v4120
        %v4124 = vpack.c.b16 %v4122, %v4122
        %4125 = vrot.lane.b32.xlu0 %v4123, 25
        %v4126 = vpop.permute.xlu0 %4125
        %4127 = vrot.lane.b32.xlu0 %v4124, 25
        %v4128 = vpop.permute.xlu0 %4127
        %v4129 = vrot.slane %v4126, 4
        %v4130 = vrot.slane %v4128, 4
        %v4131 = vsel %vm793, %v4129, %v4130
        %v4132 = vsel %vm1154, %v4126, %v4131
        %4134 = vst [vmem:[#allocation3 + $0x58] sm:$0xff] %v4132
        %v4135 = vld [vmem:[#allocation2] sm:$0xff]
        %v4136 = vld [vmem:[#allocation2 + $0x8] sm:$0xff]
        %v4137 = vld [vmem:[#allocation2 + $0x10] sm:$0xff]
        %v4138 = vmul.f32 %v4135, %v1162
        %v4139 = vmul.f32 %v4136, %v1166
        %v4140 = vmul.f32 %v4137, %v1164
        %v4141 = vpack.c.bf16 %v4138, %v4138
        %v4142 = vpack.c.bf16 %v4139, %v4139
        %v4143 = vpack.c.bf16 %v4140, %v4140
        %v4147 = vunpack.c.l.b16 %v4141
        %v4148 = vunpack.c.l.b16 %v4142
        %v4149 = vunpack.c.l.b16 %v4143
        %v4150 = vpack.c.b16 %v4148, %v4147
        %v4151 = vpack.c.b16 %v4149, %v4149
        %4152 = vrot.lane.b32.xlu0 %v4150, 79
        %v4153 = vpop.permute.xlu0 %4152
        %4154 = vrot.lane.b32.xlu0 %v4151, 79
        %v4155 = vpop.permute.xlu0 %4154
        %v4156 = vrot.slane %v4153, 4
        %v4157 = vrot.slane %v4155, 4
        %v4158 = vsel %vm793, %v4156, %v4157
        %v4159 = vsel %vm1191, %v4153, %v4158
        %4161 = vst [vmem:[#allocation3 + $0x60] sm:$0xff] %v4159
        %v4162 = vld [vmem:[#allocation2 + $0x10] sm:$0xff]
        %v4163 = vld [vmem:[#allocation2 + $0x18] sm:$0xff]
        %v4164 = vld [vmem:[#allocation2 + $0x20] sm:$0xff]
        %v4165 = vmul.f32 %v4162, %v1199
        %v4166 = vmul.f32 %v4163, %v1203
        %v4167 = vmul.f32 %v4164, %v1201
        %v4168 = vpack.c.bf16 %v4165, %v4165
        %v4169 = vpack.c.bf16 %v4166, %v4166
        %v4170 = vpack.c.bf16 %v4167, %v4167
        %v4174 = vunpack.c.l.b16 %v4168
        %v4175 = vunpack.c.l.b16 %v4169
        %v4176 = vunpack.c.l.b16 %v4170
        %v4177 = vpack.c.b16 %v4175, %v4174
        %v4178 = vpack.c.b16 %v4176, %v4176
        %4179 = vrot.lane.b32.xlu0 %v4177, 11
        %v4180 = vpop.permute.xlu0 %4179
        %4181 = vrot.lane.b32.xlu0 %v4178, 11
        %v4182 = vpop.permute.xlu0 %4181
        %v4183 = vrot.slane %v4180, 4
        %v4184 = vrot.slane %v4182, 4
        %v4185 = vsel %vm793, %v4183, %v4184
        %v4186 = vsel %vm1228, %v4180, %v4185
        %4188 = vst [vmem:[#allocation3 + $0x68] sm:$0xff] %v4186
        %v4189 = vld [vmem:[#allocation2] sm:$0xff]
        %v4190 = vld [vmem:[#allocation2 + $0x8] sm:$0xff]
        %v4191 = vld [vmem:[#allocation2 + $0x10] sm:$0xff]
        %v4192 = vpack.c.bf16 %v4189, %v4189
        %v4193 = vpack.c.bf16 %v4190, %v4190
        %v4194 = vpack.c.bf16 %v4191, %v4191
        %v4198 = vunpack.c.l.b16 %v4192
        %v4199 = vunpack.c.l.b16 %v4193
        %v4200 = vunpack.c.l.b16 %v4194
        %v4201 = vpack.c.b16 %v4199, %v4198
        %v4202 = vpack.c.b16 %v4200, %v4200
        %4203 = vrot.lane.b32.xlu0 %v4201, 78
        %v4204 = vpop.permute.xlu0 %4203
        %4205 = vrot.lane.b32.xlu0 %v4202, 78
        %v4206 = vpop.permute.xlu0 %4205
        %v4207 = vrot.slane %v4204, 4
        %v4208 = vrot.slane %v4206, 4
        %v4209 = vsel %vm793, %v4207, %v4208
        %v4210 = vsel %vm1253, %v4204, %v4209
        %4212 = vst [vmem:[#allocation3 + $0x70] sm:$0xff] %v4210
        %v4213 = vld [vmem:[#allocation2 + $0x10] sm:$0xff]
        %v4214 = vld [vmem:[#allocation2 + $0x18] sm:$0xff]
        %v4215 = vld [vmem:[#allocation2 + $0x20] sm:$0xff]
        %v4216 = vpack.c.bf16 %v4213, %v4213
        %v4217 = vpack.c.bf16 %v4214, %v4214
        %v4218 = vpack.c.bf16 %v4215, %v4215
        %v4222 = vunpack.c.l.b16 %v4216
        %v4223 = vunpack.c.l.b16 %v4217
        %v4224 = vunpack.c.l.b16 %v4218
        %v4225 = vpack.c.b16 %v4223, %v4222
        %v4226 = vpack.c.b16 %v4224, %v4224
        %4227 = vrot.lane.b32.xlu0 %v4225, 10
        %v4228 = vpop.permute.xlu0 %4227
        %4229 = vrot.lane.b32.xlu0 %v4226, 10
        %v4230 = vpop.permute.xlu0 %4229
        %v4231 = vrot.slane %v4228, 4
        %v4232 = vrot.slane %v4230, 4
        %v4233 = vsel %vm793, %v4231, %v4232
        %v4234 = vsel %vm1278, %v4228, %v4233
        %4236 = vst [vmem:[#allocation3 + $0x78] sm:$0xff] %v4234
        %v4237 = vld [vmem:[#allocation2] sm:$0xff]
        %v4238 = vld [vmem:[#allocation2 + $0x8] sm:$0xff]
        %v4239 = vld [vmem:[#allocation2 + $0x10] sm:$0xff]
        %v4240 = vmul.f32 %v4237, %v1286
        %v4241 = vmul.f32 %v4238, %v1290
        %v4242 = vmul.f32 %v4239, %v1288
        %v4243 = vpack.c.bf16 %v4240, %v4240
        %v4244 = vpack.c.bf16 %v4241, %v4241
        %v4245 = vpack.c.bf16 %v4242, %v4242
        %v4249 = vunpack.c.l.b16 %v4243
        %v4250 = vunpack.c.l.b16 %v4244
        %v4251 = vunpack.c.l.b16 %v4245
        %v4252 = vpack.c.b16 %v4250, %v4249
        %v4253 = vpack.c.b16 %v4251, %v4251
        %4254 = vrot.lane.b32.xlu0 %v4252, 77
        %v4255 = vpop.permute.xlu0 %4254
        %4256 = vrot.lane.b32.xlu0 %v4253, 77
        %v4257 = vpop.permute.xlu0 %4256
        %v4258 = vrot.slane %v4255, 4
        %v4259 = vrot.slane %v4257, 4
        %v4260 = vsel %vm793, %v4258, %v4259
        %v4261 = vsel %vm1315, %v4255, %v4260
        %4263 = vst [vmem:[#allocation3 + $0x80] sm:$0xff] %v4261
        %v4264 = vld [vmem:[#allocation2 + $0x10] sm:$0xff]
        %v4265 = vld [vmem:[#allocation2 + $0x18] sm:$0xff]
        %v4266 = vld [vmem:[#allocation2 + $0x20] sm:$0xff]
        %v4267 = vmul.f32 %v4264, %v1323
        %v4268 = vmul.f32 %v4265, %v1327
        %v4269 = vmul.f32 %v4266, %v1325
        %v4270 = vpack.c.bf16 %v4267, %v4267
        %v4271 = vpack.c.bf16 %v4268, %v4268
        %v4272 = vpack.c.bf16 %v4269, %v4269
        %v4276 = vunpack.c.l.b16 %v4270
        %v4277 = vunpack.c.l.b16 %v4271
        %v4278 = vunpack.c.l.b16 %v4272
        %v4279 = vpack.c.b16 %v4277, %v4276
        %v4280 = vpack.c.b16 %v4278, %v4278
        %4281 = vrot.lane.b32.xlu0 %v4279, 9
        %v4282 = vpop.permute.xlu0 %4281
        %4283 = vrot.lane.b32.xlu0 %v4280, 9
        %v4284 = vpop.permute.xlu0 %4283
        %v4285 = vrot.slane %v4282, 4
        %v4286 = vrot.slane %v4284, 4
        %v4287 = vsel %vm793, %v4285, %v4286
        %v4288 = vsel %vm1352, %v4282, %v4287
        %4290 = vst [vmem:[#allocation3 + $0x88] sm:$0xff] %v4288
        %v4291 = vld [vmem:[#allocation3] sm:$0xff]
        %v4292 = vld [vmem:[#allocation3 + $0x8] sm:$0xff]
        %v4293 = vld [vmem:[#allocation3 + $0x10] sm:$0xff]
        %v4294 = vld [vmem:[#allocation3 + $0x18] sm:$0xff]
        %v4295 = vld [vmem:[#allocation3 + $0x20] sm:$0xff]
        %v4296 = vld [vmem:[#allocation3 + $0x28] sm:$0xff]
        %v4297 = vld [vmem:[#allocation3 + $0x30] sm:$0xff]
        %v4298 = vld [vmem:[#allocation3 + $0x38] sm:$0xff]
        %v4299 = vld [vmem:[#allocation3 + $0x40] sm:$0xff]
        %v4300 = vld [vmem:[#allocation3 + $0x48] sm:$0xff]
        %v4301 = vld [vmem:[#allocation3 + $0x50] sm:$0xff]
        %v4302 = vld [vmem:[#allocation3 + $0x58] sm:$0xff]
        %v4303 = vld [vmem:[#allocation3 + $0x60] sm:$0xff]
        %v4304 = vld [vmem:[#allocation3 + $0x68] sm:$0xff]
        %v4305 = vld [vmem:[#allocation3 + $0x70] sm:$0xff]
        %v4306 = vld [vmem:[#allocation3 + $0x78] sm:$0xff]
        %v4307 = vld [vmem:[#allocation3 + $0x80] sm:$0xff]
        %v4308 = vld [vmem:[#allocation3 + $0x88] sm:$0xff]
        %v4309 = vld [vmem:[%s14] sm:$0x7]
        %v4310 = vld [vmem:[%s15] sm:$0x3f]
        %4312 = vset.pattern.permute.xlu0 0
        %4313 = vperm.xlu0 %4312, %v4310
        %v4314 = vpop.permute.xlu0 %4313
        %v4334 = vunpack.c.l.b16 %v4291
        %v4335 = vunpack.c.h.b16 %v4291
        %v4336 = vunpack.c.l.b16 %v4292
        %v4337 = vunpack.c.h.b16 %v4292
        %v4338 = vunpack.c.l.b16 %v4293
        %v4339 = vunpack.c.h.b16 %v4293
        %v4340 = vunpack.c.l.b16 %v4294
        %v4341 = vunpack.c.h.b16 %v4294
        %v4342 = vunpack.c.l.b16 %v4295
        %v4343 = vunpack.c.h.b16 %v4295
        %v4344 = vunpack.c.l.b16 %v4296
        %v4345 = vunpack.c.h.b16 %v4296
        %v4346 = vunpack.c.l.b16 %v4297
        %v4347 = vunpack.c.h.b16 %v4297
        %v4348 = vunpack.c.l.b16 %v4298
        %v4349 = vunpack.c.h.b16 %v4298
        %v4350 = vunpack.c.l.b16 %v4299
        %v4351 = vunpack.c.h.b16 %v4299
        %v4352 = vunpack.c.l.b16 %v4300
        %v4353 = vunpack.c.h.b16 %v4300
        %v4354 = vunpack.c.l.b16 %v4301
        %v4355 = vunpack.c.h.b16 %v4301
        %v4356 = vunpack.c.l.b16 %v4302
        %v4357 = vunpack.c.h.b16 %v4302
        %v4358 = vunpack.c.l.b16 %v4303
        %v4359 = vunpack.c.h.b16 %v4303
        %v4360 = vunpack.c.l.b16 %v4304
        %v4361 = vunpack.c.h.b16 %v4304
        %v4362 = vunpack.c.l.b16 %v4305
        %v4363 = vunpack.c.h.b16 %v4305
        %v4364 = vunpack.c.l.b16 %v4306
        %v4365 = vunpack.c.h.b16 %v4306
        %v4366 = vunpack.c.l.b16 %v4307
        %v4367 = vunpack.c.h.b16 %v4307
        %v4368 = vunpack.c.l.b16 %v4308
        %v4369 = vunpack.c.h.b16 %v4308
        %v4370 = vpack.c.b16 %v4338, %v4334
        %v4371 = vpack.c.b16 %v4339, %v4335
        %v4372 = vpack.c.b16 %v4340, %v4336
        %v4373 = vpack.c.b16 %v4341, %v4337
        %v4374 = vpack.c.b16 %v4346, %v4342
        %v4375 = vpack.c.b16 %v4347, %v4343
        %v4376 = vpack.c.b16 %v4348, %v4344
        %v4377 = vpack.c.b16 %v4349, %v4345
        %v4378 = vpack.c.b16 %v4354, %v4350
        %v4379 = vpack.c.b16 %v4355, %v4351
        %v4380 = vpack.c.b16 %v4356, %v4352
        %v4381 = vpack.c.b16 %v4357, %v4353
        %v4382 = vpack.c.b16 %v4362, %v4358
        %v4383 = vpack.c.b16 %v4363, %v4359
        %v4384 = vpack.c.b16 %v4364, %v4360
        %v4385 = vpack.c.b16 %v4365, %v4361
        %v4386 = vpack.c.b16 %v4366, %v4366
        %v4387 = vpack.c.b16 %v4367, %v4367
        %v4388 = vpack.c.b16 %v4368, %v4368
        %v4389 = vpack.c.b16 %v4369, %v4369
        %v4407 = vsel %vm1471, %v4309, 0
        %v4410 = vsel %vm1475, %v4386, 0
        %v4413 = vsel %vm1475, %v4387, 0
        %v4416 = vsel %vm1475, %v4388, 0
        %v4419 = vsel %vm1475, %v4389, 0
        %4421 = vmatprep.subr.bf16.mxu0 %v4371
        %4422 = vmatpush1.bf16.msra.mxu0 %v4370
        %4423 = vmatprep.subr.bf16.mxu0 %v4375
        %4424 = vmatpush1.bf16.msra.mxu0 %v4374
        %4425 = vmatprep.subr.bf16.mxu0 %v4379
        %4426 = vmatpush1.bf16.msra.mxu0 %v4378
        %4427 = vmatprep.subr.bf16.mxu0 %v4383
        %4428 = vmatpush1.bf16.msra.mxu0 %v4382
        %4429 = vmatprep.subr.bf16.mxu0 %v4413
        %4430 = vmatpush1.bf16.msra.mxu0 %v4410
        %4431 = vmatprep.subr.bf16.mxu0 0
        %4432 = vmatpush1.bf16.msra.mxu0 0
        %4433 = vmatprep.subr.bf16.mxu0 0
        %4434 = vmatpush1.bf16.msra.mxu0 0
        %4435 = vmatprep.subr.bf16.mxu0 0
        %4436 = vmatpush1.bf16.msra.mxu0 0
        %4437 = vmatprep.subr.bf16.mxu0 0
        %4438 = vmatpush1.bf16.msra.mxu0 0
        %4439 = vmatprep.subr.bf16.mxu0 0
        %4440 = vmatpush1.bf16.msra.mxu0 0
        %4441 = vmatprep.subr.bf16.mxu0 0
        %4442 = vmatpush1.bf16.msra.mxu0 0
        %4443 = vmatprep.subr.bf16.mxu0 0
        %4444 = vmatpush1.bf16.msra.mxu0 0
        %4445 = vmatprep.subr.bf16.mxu0 0
        %4446 = vmatpush1.bf16.msra.mxu0 0
        %4447 = vmatprep.subr.bf16.mxu0 0
        %4448 = vmatpush1.bf16.msra.mxu0 0
        %4449 = vmatprep.subr.bf16.mxu0 0
        %4450 = vmatpush1.bf16.msra.mxu0 0
        %4451 = vmatprep.subr.bf16.mxu0 0
        %4452 = vmatpush1.bf16.msra.mxu0 0
        %4453 = vmatprep.mubr.bf16.mxu0 0
        %4454 = vmatmul.mubr.bf16.gmra.mrb[0].mxu0 %v4407
        %v4455 = vpop.f32.mrb[0].mxu0
        %v4456 = vadd.f32 %v4314, %v4455
        %v4457 = vpop.f32.mrb[0].mxu0
        %v4458 = vadd.f32 %v4314, %v4457
        %v4459 = vpop.f32.mrb[0].mxu0
        %v4460 = vpop.f32.mrb[0].mxu0
        %4461 = vdwg.mxu0
        %4462 = vmatprep.subr.bf16.mxu0 %v4373
        %4463 = vmatpush1.bf16.msra.mxu0 %v4372
        %4464 = vmatprep.subr.bf16.mxu0 %v4377
        %4465 = vmatpush1.bf16.msra.mxu0 %v4376
        %4466 = vmatprep.subr.bf16.mxu0 %v4381
        %4467 = vmatpush1.bf16.msra.mxu0 %v4380
        %4468 = vmatprep.subr.bf16.mxu0 %v4385
        %4469 = vmatpush1.bf16.msra.mxu0 %v4384
        %4470 = vmatprep.subr.bf16.mxu0 %v4419
        %4471 = vmatpush1.bf16.msra.mxu0 %v4416
        %4472 = vmatprep.subr.bf16.mxu0 0
        %4473 = vmatpush1.bf16.msra.mxu0 0
        %4474 = vmatprep.subr.bf16.mxu0 0
        %4475 = vmatpush1.bf16.msra.mxu0 0
        %4476 = vmatprep.subr.bf16.mxu0 0
        %4477 = vmatpush1.bf16.msra.mxu0 0
        %4478 = vmatprep.subr.bf16.mxu0 0
        %4479 = vmatpush1.bf16.msra.mxu0 0
        %4480 = vmatprep.subr.bf16.mxu0 0
        %4481 = vmatpush1.bf16.msra.mxu0 0
        %4482 = vmatprep.subr.bf16.mxu0 0
        %4483 = vmatpush1.bf16.msra.mxu0 0
        %4484 = vmatprep.subr.bf16.mxu0 0
        %4485 = vmatpush1.bf16.msra.mxu0 0
        %4486 = vmatprep.subr.bf16.mxu0 0
        %4487 = vmatpush1.bf16.msra.mxu0 0
        %4488 = vmatprep.subr.bf16.mxu0 0
        %4489 = vmatpush1.bf16.msra.mxu0 0
        %4490 = vmatprep.subr.bf16.mxu0 0
        %4491 = vmatpush1.bf16.msra.mxu0 0
        %4492 = vmatprep.subr.bf16.mxu0 0
        %4493 = vmatpush1.bf16.msra.mxu0 0
        %4494 = vmatprep.mubr.bf16.mxu0 0
        %4495 = vmatmul.mubr.bf16.gmra.mrb[0].mxu0 %v4407
        %v4496 = vpop.f32.mrb[0].mxu0
        %v4497 = vadd.f32 %v4314, %v4496
        %v4498 = vpop.f32.mrb[0].mxu0
        %v4499 = vadd.f32 %v4314, %v4498
        %v4500 = vpop.f32.mrb[0].mxu0
        %v4501 = vpop.f32.mrb[0].mxu0
        %4502 = vdwg.mxu0
        %4503 = vst [vmem:[%s515] sm:$0x3f] %v4456
        %4504 = vst [vmem:[%s515 + $0x8] sm:$0x3f] %v4458
        %4505 = vst [vmem:[%s515 + $0x10] sm:$0x3f] %v4497
        %4506 = vst [vmem:[%s515 + $0x18] sm:$0x3f] %v4499
        %s4507 = sand.u32 %s379, 1
        %s4508 = scalar_lea.sflag [#allocation5], %s4507
        %s4509 = sand.u32 %s379, 1
        %s4510 = smul.addr %s4509, 32
        %s4511 = scalar_lea.vmem [#allocation4], %s4510
        // Predicated region
        $region85: #{tpu_custom_call.1} parent=83 // pred_check
          %p4512 = pneg %p389
        $region86: #{tpu_custom_call.1} parent=83 // pred_check_branch
          %4514 = sbr.rel (%p4512) target = $region88
        $region87: #{tpu_custom_call.1} parent=83 // pred_region
          %s4515 = smul.u32 4, %s30
          %s4517 = ssub.s32 512, 512
          %4518 = vsyncadd %s4508, %s4517
          %s4519 = smul.addr %s4515, 128
          %s4520 = scalar_lea.hbm %s16, %s4519
          %s4522 = sshll.u32 %s4511, 4
          %s4523 = int_to_ptr.vmem [resolvable:$true] %s4522
          %4525 = dma.vmem_to_hbm [thread:$0]  %s4523, 512, %s4520, %s4508
        $region88: #{tpu_custom_call.1} parent=83 // pred_fallthru
          _
      $region84: #{tpu_custom_call.1} parent=5 // pred_fallthru
        _
      %p4526 = scmp.le.s32.totalorder 2, %s25
      // Predicated region
      $region89: #{tpu_custom_call.1} parent=5 // pred_check
        %p4527 = pneg %p4526
      $region90: #{tpu_custom_call.1} parent=5 // pred_check_branch
        %4529 = sbr.rel (%p4527) target = $region92
      $region91: #{tpu_custom_call.1} parent=5 // pred_region
        %s4530 = ssub.s32 %s25, 2
        // Predicated region
        $region93: #{tpu_custom_call.1} parent=91 // pred_check
          %p4531 = pneg %p395
        $region94: #{tpu_custom_call.1} parent=91 // pred_check_branch
          %4533 = sbr.rel (%p4531) target = $region96
        $region95: #{tpu_custom_call.1} parent=91 // pred_region
          %s4534 = sand.u32 %s380, 1
          %s4535 = scalar_lea.sflag [#allocation5], %s4534
          %s4536 = sand.u32 %s380, 1
          %s4537 = smul.addr %s4536, 32
          %s4538 = scalar_lea.vmem [#allocation4], %s4537
          %4539 = dma.done %s4535, 512
        $region96: #{tpu_custom_call.1} parent=91 // pred_fallthru
          _
      $region92: #{tpu_custom_call.1} parent=5 // pred_fallthru
        _
    $region6: #{tpu_custom_call.1} parent=1 // loop_footer
      %s29 = sadd.s32 1, %s25
    $region7: #{tpu_custom_call.1} parent=1 // loop_footer_branch
      %24 = sbr.rel target = $region3
    $region8: #{tpu_custom_call.1} parent=1 // loop_exit
      _
    %4540 = vsyncpa [#allocation5], 1
    %s4541 = scalar_lea.sflag [#allocation5], 1
    %4542 = vsyncpa %s4541, 1

</llo_original>
